<compile_context>
chip_gen: v5e
topology: v5e:2x2
jax: 0.10.0
libtpu: 0.0.40
codegen_flags: <defaults>
</compile_context>

<pallas_src>
import numpy as np
import jax
import jax.numpy as jnp
from jax.experimental import pallas as pl
from jax.experimental.pallas import tpu as pltpu

# Board geometry (Connect-4): 6x7 board, 2 input planes.
H, W = 6, 7
PH, PW = H + 2, W + 2          # zero-padded spatial grid (pad=1)
P = PH * PW                    # 72 flattened padded positions per sample
MARGIN = 16                    # row margin so every shifted tap store is in-bounds
C1, C2, C3 = 32, 64, 128
K1 = 9 * 2                     # conv1 fused contraction (9 taps x 2 channels)
K1PAD = 32                     # conv1 K padded 18 -> 32 (tiny, keeps MXU happy)
CW_ROWS = K1PAD + 9 * C1 + 9 * C2     # stacked conv-weight rows: 32+288+576 = 896
FC1, FC2, FC_OUT = 256, 128, 7
FC3_PAD = 128                  # fc3 output padded to a lane-dense 128 columns
BN_EPS = 1e-5
G_FC1 = 6                      # grid steps over fc1's K (position blocks)
JB = (H * W) // G_FC1          # 7 position blocks (7*128 K rows) per step

# 3x3 tap offsets in flattened padded coords (dh*PW + dw); enumeration order
# t = (dh+1)*3 + (dw+1) = kh*3 + kw matches the packed weight row order.
TAP_OFFSETS = tuple(dh * PW + dw for dh in (-1, 0, 1) for dw in (-1, 0, 1))


# ---------------------------------------------------------------------------
# The single fused kernel (grid = (G_FC1,) over fc1's K so fc1_w streaming
# overlaps the conv phase; axis is a reduction -> "arbitrary").
# ---------------------------------------------------------------------------
def _qnet_kernel(xt_ref, cw_ref, bias_ref, fc1w_ref, fc2w_ref, fc3w_ref,
                 o_ref,
                 tap2_ref, tap3_ref, y3_ref, fcin_ref, acc_ref):
    g = pl.program_id(0)
    n_batch = o_ref.shape[0]
    rows = n_batch * P

    # ------------------ conv phase: first grid step only -------------------
    @pl.when(g == 0)
    def _conv_phase():
        # Valid-board mask from row-index arithmetic (no mask operand / DMA):
        # row r = n*P + ph*PW + pw is a real cell iff ph in [1,H], pw in [1,W].
        r = jax.lax.broadcasted_iota(jnp.int32, (rows, 1), 0)
        q = r
        for _ in range(n_batch - 1):          # q = r mod P (batch is tiny)
            q = jnp.where(q >= P, q - P, q)
        ph = jnp.zeros_like(q)
        for k in range(1, PH):                # ph = q // PW without a vector div
            ph = ph + (q >= k * PW).astype(jnp.int32)
        pw = q - PW * ph
        valid = (ph >= 1) & (ph <= H) & (pw >= 1) & (pw <= W)   # (rows, 1) bool

        def stash(dst_ref, act_f32, cout):
            # Scatter the masked activation into the NEXT conv's tap buffer:
            # column block t of row (MARGIN + r) must hold act[r + off_t], so the
            # whole activation is stored once per tap at a shifted row start.
            # jnp.where (not multiply) keeps any stale-scratch garbage/NaN in the
            # unwritten margin rows from leaking through the spatial padding.
            masked = jnp.where(valid, act_f32, 0.0).astype(jnp.bfloat16)
            z = jnp.zeros((2 * MARGIN, 9 * cout), jnp.bfloat16)
            dst_ref[pl.ds(0, 2 * MARGIN), :] = z          # zero head strip
            dst_ref[pl.ds(rows, 2 * MARGIN), :] = z       # zero tail strip
            for t, off in enumerate(TAP_OFFSETS):
                dst_ref[pl.ds(MARGIN - off, rows), t * cout:(t + 1) * cout] = masked

        # conv1 -> relu (bn1 folded): ONE K=32 matmul over wrapper-built taps.
        y1 = jnp.maximum(
            jnp.dot(xt_ref[...], cw_ref[0:K1PAD, 0:C1],
                    preferred_element_type=jnp.float32) + bias_ref[0:1, 0:C1],
            0.0)                                                  # (rows, 32) f32
        stash(tap2_ref, y1, C1)

        # conv2 -> relu (bn2 folded): ONE K=288 matmul.
        y2 = jnp.maximum(
            jnp.dot(tap2_ref[pl.ds(MARGIN, rows), :],
                    cw_ref[K1PAD:K1PAD + 9 * C1, 0:C2],
                    preferred_element_type=jnp.float32) + bias_ref[1:2, 0:C2],
            0.0)                                                  # (rows, 64) f32
        stash(tap3_ref, y2, C2)

        # conv3 -> relu (bn3 folded): ONE K=576 matmul.
        y3 = jnp.maximum(
            jnp.dot(tap3_ref[pl.ds(MARGIN, rows), :],
                    cw_ref[K1PAD + 9 * C1:CW_ROWS, :],
                    preferred_element_type=jnp.float32) + bias_ref[2:3, 0:C3],
            0.0)                                                  # (rows, 128) f32
        y3_ref[...] = y3.astype(jnp.bfloat16)

        # Gather the 42 valid board rows per sample into the fc1 input layout
        # fcin[j, n, c] with j = h*W + w: N*6 contiguous (7,128) block copies,
        # ref-to-ref, so y3 is not held live across the copies.  fcin is fully
        # written here (all 42 j-rows for every sample).
        for n in range(n_batch):
            for h in range(H):
                src = n * P + (h + 1) * PW + 1
                fcin_ref[pl.ds(h * W, W), n, :] = y3_ref[pl.ds(src, W), :]

        acc_ref[...] = jnp.zeros(acc_ref.shape, jnp.float32)

    # ------------- fc1 partial: every grid step eats one K-chunk ------------
    # h1[n, o] = sum_j sum_c fcin[j, n, c] * W1[j, c, o]   (j = position blocks)
    a = fcin_ref[pl.ds(g * JB, JB), :, :]                    # (JB, N, 128) bf16
    part = jnp.einsum('knc,kco->kno', a, fc1w_ref[...],
                      preferred_element_type=jnp.float32)    # (JB, N, 256) f32
    acc_ref[...] += jnp.sum(part, axis=0)

    # -------------------- fc tail: last grid step only ----------------------
    @pl.when(g == pl.num_programs(0) - 1)
    def _fc_tail():
        # dropout1 / dropout2 are eval-mode identity.
        h1 = jnp.maximum(acc_ref[...] + bias_ref[3:4, :], 0.0).astype(jnp.bfloat16)
        h2 = jnp.maximum(
            jnp.dot(h1, fc2w_ref[...], preferred_element_type=jnp.float32)
            + bias_ref[4:5, 0:FC2], 0.0).astype(jnp.bfloat16)
        # fc3 (columns >= 7 are zero padding; wrapper slices them off)
        o_ref[...] = (jnp.dot(h2, fc3w_ref[...], preferred_element_type=jnp.float32)
                      + bias_ref[5:6, 0:FC3_PAD])


# ---------------------------------------------------------------------------
# Parameter init (PyTorch layouts, matching QNetwork's explicit init) + packing
# ---------------------------------------------------------------------------
def _kaiming_uniform(key, shape, fan_in):
    # nn.init.kaiming_uniform_(..., nonlinearity='relu'): bound = sqrt(6/fan_in)
    bound = float(np.sqrt(6.0 / fan_in))
    return jax.random.uniform(key, shape, jnp.float32, -bound, bound)


def init_raw_params(key):
    ks = jax.random.split(key, 6)
    p = {
        "conv1_w": _kaiming_uniform(ks[0], (C1, 2, 3, 3), 2 * 9),
        "conv1_b": jnp.zeros((C1,), jnp.float32),
        "conv2_w": _kaiming_uniform(ks[1], (C2, C1, 3, 3), C1 * 9),
        "conv2_b": jnp.zeros((C2,), jnp.float32),
        "conv3_w": _kaiming_uniform(ks[2], (C3, C2, 3, 3), C2 * 9),
        "conv3_b": jnp.zeros((C3,), jnp.float32),
        "fc1_w": _kaiming_uniform(ks[3], (FC1, C3 * H * W), C3 * H * W),
        "fc1_b": jnp.zeros((FC1,), jnp.float32),
        "fc2_w": _kaiming_uniform(ks[4], (FC2, FC1), FC1),
        "fc2_b": jnp.zeros((FC2,), jnp.float32),
        "fc3_w": _kaiming_uniform(ks[5], (FC_OUT, FC2), FC2),
        "fc3_b": jnp.zeros((FC_OUT,), jnp.float32),
    }
    for name, c in (("bn1", C1), ("bn2", C2), ("bn3", C3)):
        p[f"{name}_gamma"] = jnp.ones((c,), jnp.float32)
        p[f"{name}_beta"] = jnp.zeros((c,), jnp.float32)
        p[f"{name}_mean"] = jnp.zeros((c,), jnp.float32)
        p[f"{name}_var"] = jnp.ones((c,), jnp.float32)
    return p


def pack_params(raw):
    """One-time packing (zero per-forward cost): fused-K conv tap matrices with
    BN folded in, stacked into one buffer; six biases in one operand; fc1 as
    (42, 128, 256) position-block weights; lane-padded fc3; bf16 matmul operands."""

    def bn_scale(name):
        return raw[f"{name}_gamma"] / jnp.sqrt(raw[f"{name}_var"] + BN_EPS)

    def conv_taps(w_oihw, b, bn_name):
        # bn(relu(conv(x))) == relu(conv_{s*w, s*b}(x)) for the fresh, eval-mode
        # BN here (positive scale, zero shift).  See TODO(synk) at top of file.
        s = bn_scale(bn_name)
        cout, cin, _, _ = w_oihw.shape
        w = jnp.transpose(w_oihw, (2, 3, 1, 0)).reshape(9 * cin, cout) * s[None, :]
        return w, b * s

    w1, b1 = conv_taps(raw["conv1_w"], raw["conv1_b"], "bn1")   # (18, 32)
    w2, b2 = conv_taps(raw["conv2_w"], raw["conv2_b"], "bn2")   # (288, 64)
    w3, b3 = conv_taps(raw["conv3_w"], raw["conv3_b"], "bn3")   # (576, 128)

    # One stacked conv-weight operand; row blocks start at 8-aligned offsets.
    cw = jnp.zeros((CW_ROWS, C3), jnp.float32)
    cw = cw.at[0:K1, 0:C1].set(w1)
    cw = cw.at[K1PAD:K1PAD + 9 * C1, 0:C2].set(w2)
    cw = cw.at[K1PAD + 9 * C1:, :].set(w3)
    packed = {"conv_w": cw.astype(jnp.bfloat16)}

    # fc1: PyTorch flattens NCHW (index c*42 + h*7 + w); pack as position-block
    # weights W1p[j, c, o] so the kernel's (j, n, c) activation layout feeds it
    # directly (no in-kernel flatten / transpose).
    wfc1 = raw["fc1_w"].reshape(FC1, C3, H * W)                 # (o, c, j)
    packed["fc1_w"] = jnp.transpose(wfc1, (2, 1, 0)).astype(jnp.bfloat16)

    packed["fc2_w"] = jnp.transpose(raw["fc2_w"]).astype(jnp.bfloat16)

    # fc3: pad 7 -> 128 output columns so the final store is lane-dense.
    wfc3 = jnp.transpose(raw["fc3_w"])                          # (128, 7)
    packed["fc3_w"] = jnp.pad(
        wfc3, ((0, 0), (0, FC3_PAD - FC_OUT))).astype(jnp.bfloat16)

    # All six biases in one (8, 256) f32 operand (rows: b1,b2,b3,fc1,fc2,fc3).
    bias = jnp.zeros((8, FC1), jnp.float32)
    bias = bias.at[0, 0:C1].set(b1)
    bias = bias.at[1, 0:C2].set(b2)
    bias = bias.at[2, 0:C3].set(b3)
    bias = bias.at[3, :].set(raw["fc1_b"])
    bias = bias.at[4, 0:FC2].set(raw["fc2_b"])
    bias = bias.at[5, 0:FC_OUT].set(raw["fc3_b"])
    packed["bias"] = bias
    return packed


# ---------------------------------------------------------------------------
# Forward pass
# ---------------------------------------------------------------------------
def qnetwork_forward(x_nchw, packed):
    n_batch = x_nchw.shape[0]
    rows = n_batch * P

    # Tiny input-formatting glue: build conv1's 9-tap im2col operand once,
    # (rows, 18) K-padded to 32, bf16 (~9 KB -- no 2->128 channel inflation).
    x_nhwc = jnp.transpose(x_nchw, (0, 2, 3, 1)).astype(jnp.float32)  # (N,6,7,2)
    xp2 = jnp.pad(x_nhwc, ((0, 0), (2, 2), (2, 2), (0, 0)))           # (N,10,11,2)
    taps = [xp2[:, 1 + dh:1 + dh + PH, 1 + dw:1 + dw + PW, :]
            for dh in (-1, 0, 1) for dw in (-1, 0, 1)]
    x_taps = jnp.concatenate(taps, axis=-1).reshape(rows, K1)
    x_taps = jnp.pad(x_taps, ((0, 0), (0, K1PAD - K1))).astype(jnp.bfloat16)

    grid_spec = pltpu.PrefetchScalarGridSpec(
        num_scalar_prefetch=0,
        grid=(G_FC1,),
        in_specs=[
            pl.BlockSpec((rows, K1PAD), lambda g: (0, 0)),            # conv1 taps
            pl.BlockSpec((CW_ROWS, C3), lambda g: (0, 0)),            # conv weights
            pl.BlockSpec((8, FC1), lambda g: (0, 0)),                 # biases
            pl.BlockSpec((JB, C3, FC1), lambda g: (g, 0, 0)),         # fc1_w chunks
            pl.BlockSpec((FC1, FC2), lambda g: (0, 0)),               # fc2_w
            pl.BlockSpec((FC2, FC3_PAD), lambda g: (0, 0)),           # fc3_w (pad)
        ],
        out_specs=pl.BlockSpec((n_batch, FC3_PAD), lambda g: (0, 0)),
        scratch_shapes=[
            pltpu.VMEM((2 * MARGIN + rows, 9 * C1), jnp.bfloat16),    # conv2 taps
            pltpu.VMEM((2 * MARGIN + rows, 9 * C2), jnp.bfloat16),    # conv3 taps
            pltpu.VMEM((rows, C3), jnp.bfloat16),                     # y3
            pltpu.VMEM((H * W, n_batch, C3), jnp.bfloat16),           # fc1 input
            pltpu.VMEM((n_batch, FC1), jnp.float32),                  # fc1 acc
        ],
    )

    out = pl.pallas_call(
        _qnet_kernel,
        out_shape=jax.ShapeDtypeStruct((n_batch, FC3_PAD), jnp.float32),
        grid_spec=grid_spec,
        compiler_params=pltpu.CompilerParams(
            dimension_semantics=("arbitrary",)),
    )(x_taps, packed["conv_w"], packed["bias"], packed["fc1_w"],
      packed["fc2_w"], packed["fc3_w"])

    return out[:, :FC_OUT]                                            # (N, 7)


if __name__ == "__main__":
    key = jax.random.PRNGKey(0)
    k_x, k_p = jax.random.split(key)

    # Input consistent with the module: fc1 expects 128*6*7 -> 6x7 board, 2 planes.
    x = jax.random.normal(k_x, (2, 2, H, W), dtype=jnp.float32)       # NCHW
    params = pack_params(init_raw_params(k_p))

    fwd = jax.jit(qnetwork_forward)
    q = fwd(x, params)
    jax.block_until_ready(q)
    assert q.shape == (2, FC_OUT) and q.dtype == jnp.float32
    assert bool(jnp.all(jnp.isfinite(q)))
    print("KERNEL_OK")
</pallas_src>

<mosaic_0001>
module attributes {stable_mosaic.version = 11 : i64} {
  func.func @_qnet_kernel(%arg0: i32, %arg1: memref<144x32xbf16, #tpu.memory_space<vmem>>, %arg2: memref<896x128xbf16, #tpu.memory_space<vmem>>, %arg3: memref<8x256xf32, #tpu.memory_space<vmem>>, %arg4: memref<7x128x256xbf16, #tpu.memory_space<vmem>>, %arg5: memref<256x128xbf16, #tpu.memory_space<vmem>>, %arg6: memref<128x128xbf16, #tpu.memory_space<vmem>>, %arg7: memref<2x128xf32, #tpu.memory_space<vmem>>, %arg8: memref<176x288xbf16, #tpu.memory_space<vmem>>, %arg9: memref<176x576xbf16, #tpu.memory_space<vmem>>, %arg10: memref<144x128xbf16, #tpu.memory_space<vmem>>, %arg11: memref<42x2x128xbf16, #tpu.memory_space<vmem>>, %arg12: memref<2x256xf32, #tpu.memory_space<vmem>>) attributes {dimension_semantics = [#tpu.dimension_semantics<arbitrary>], iteration_bounds = array<i64: 6>, scalar_prefetch = 0 : i64, scratch_operands = 5 : i64, tpu.core_type = #tpu.core_type<tc>, window_params = [{pipeline_mode = #tpu.pipeline_mode<synchronous>, transform_indices = @transform_0, window_bounds = array<i64: 144, 32>}, {pipeline_mode = #tpu.pipeline_mode<synchronous>, transform_indices = @transform_1, window_bounds = array<i64: 896, 128>}, {pipeline_mode = #tpu.pipeline_mode<synchronous>, transform_indices = @transform_2, window_bounds = array<i64: 8, 256>}, {transform_indices = @transform_3, window_bounds = array<i64: 7, 128, 256>}, {pipeline_mode = #tpu.pipeline_mode<synchronous>, transform_indices = @transform_4, window_bounds = array<i64: 256, 128>}, {pipeline_mode = #tpu.pipeline_mode<synchronous>, transform_indices = @transform_5, window_bounds = array<i64: 128, 128>}, {pipeline_mode = #tpu.pipeline_mode<synchronous>, transform_indices = @transform_6, window_bounds = array<i64: 2, 128>}]} {
    %c0_i32 = arith.constant 0 : i32
    %0 = arith.cmpi eq, %arg0, %c0_i32 : i32
    %1 = arith.extui %0 : i1 to i32
    %c0_i32_0 = arith.constant 0 : i32
    %2 = arith.cmpi ne, %1, %c0_i32_0 : i32
    scf.if %2 {
      %15 = tpu.iota {dimensions = array<i32: 0>} : vector<144x1xi32>
      %c72_i32 = arith.constant 72 : i32
      %16 = vector.broadcast %c72_i32 : i32 to vector<144x1xi32>
      %17 = arith.cmpi sge, %15, %16 : vector<144x1xi32>
      %c72_i32_11 = arith.constant 72 : i32
      %18 = vector.broadcast %c72_i32_11 : i32 to vector<144x1xi32>
      %19 = arith.subi %15, %18 : vector<144x1xi32>
      %20 = arith.select %17, %19, %15 : vector<144x1xi1>, vector<144x1xi32>
      %c0_i32_12 = arith.constant 0 : i32
      %21 = vector.broadcast %c0_i32_12 : i32 to vector<144x1xi32>
      %c9_i32 = arith.constant 9 : i32
      %22 = vector.broadcast %c9_i32 : i32 to vector<144x1xi32>
      %23 = arith.cmpi sge, %20, %22 : vector<144x1xi32>
      %24 = arith.extui %23 : vector<144x1xi1> to vector<144x1xi32>
      %25 = arith.addi %21, %24 : vector<144x1xi32>
      %c18_i32 = arith.constant 18 : i32
      %26 = vector.broadcast %c18_i32 : i32 to vector<144x1xi32>
      %27 = arith.cmpi sge, %20, %26 : vector<144x1xi32>
      %28 = arith.extui %27 : vector<144x1xi1> to vector<144x1xi32>
      %29 = arith.addi %25, %28 : vector<144x1xi32>
      %c27_i32 = arith.constant 27 : i32
      %30 = vector.broadcast %c27_i32 : i32 to vector<144x1xi32>
      %31 = arith.cmpi sge, %20, %30 : vector<144x1xi32>
      %32 = arith.extui %31 : vector<144x1xi1> to vector<144x1xi32>
      %33 = arith.addi %29, %32 : vector<144x1xi32>
      %c36_i32 = arith.constant 36 : i32
      %34 = vector.broadcast %c36_i32 : i32 to vector<144x1xi32>
      %35 = arith.cmpi sge, %20, %34 : vector<144x1xi32>
      %36 = arith.extui %35 : vector<144x1xi1> to vector<144x1xi32>
      %37 = arith.addi %33, %36 : vector<144x1xi32>
      %c45_i32 = arith.constant 45 : i32
      %38 = vector.broadcast %c45_i32 : i32 to vector<144x1xi32>
      %39 = arith.cmpi sge, %20, %38 : vector<144x1xi32>
      %40 = arith.extui %39 : vector<144x1xi1> to vector<144x1xi32>
      %41 = arith.addi %37, %40 : vector<144x1xi32>
      %c54_i32 = arith.constant 54 : i32
      %42 = vector.broadcast %c54_i32 : i32 to vector<144x1xi32>
      %43 = arith.cmpi sge, %20, %42 : vector<144x1xi32>
      %44 = arith.extui %43 : vector<144x1xi1> to vector<144x1xi32>
      %45 = arith.addi %41, %44 : vector<144x1xi32>
      %c63_i32 = arith.constant 63 : i32
      %46 = vector.broadcast %c63_i32 : i32 to vector<144x1xi32>
      %47 = arith.cmpi sge, %20, %46 : vector<144x1xi32>
      %48 = arith.extui %47 : vector<144x1xi1> to vector<144x1xi32>
      %49 = arith.addi %45, %48 : vector<144x1xi32>
      %c9_i32_13 = arith.constant 9 : i32
      %50 = vector.broadcast %c9_i32_13 : i32 to vector<144x1xi32>
      %51 = arith.muli %50, %49 : vector<144x1xi32>
      %52 = arith.subi %20, %51 : vector<144x1xi32>
      %c1_i32 = arith.constant 1 : i32
      %53 = vector.broadcast %c1_i32 : i32 to vector<144x1xi32>
      %54 = arith.cmpi sge, %49, %53 : vector<144x1xi32>
      %c6_i32 = arith.constant 6 : i32
      %55 = vector.broadcast %c6_i32 : i32 to vector<144x1xi32>
      %56 = arith.cmpi sle, %49, %55 : vector<144x1xi32>
      %57 = arith.andi %54, %56 : vector<144x1xi1>
      %c1_i32_14 = arith.constant 1 : i32
      %58 = vector.broadcast %c1_i32_14 : i32 to vector<144x1xi32>
      %59 = arith.cmpi sge, %52, %58 : vector<144x1xi32>
      %60 = arith.andi %57, %59 : vector<144x1xi1>
      %c7_i32_15 = arith.constant 7 : i32
      %61 = vector.broadcast %c7_i32_15 : i32 to vector<144x1xi32>
      %62 = arith.cmpi sle, %52, %61 : vector<144x1xi32>
      %63 = arith.andi %60, %62 : vector<144x1xi1>
      %c0_16 = arith.constant 0 : index
      %c0_17 = arith.constant 0 : index
      %64 = vector.load %arg1[%c0_16, %c0_17] : memref<144x32xbf16, #tpu.memory_space<vmem>>, vector<144x32xbf16>
      %c0_18 = arith.constant 0 : index
      %c0_19 = arith.constant 0 : index
      %65 = vector.load %arg2[%c0_18, %c0_19] : memref<896x128xbf16, #tpu.memory_space<vmem>>, vector<32x32xbf16>
      %cst_20 = arith.constant dense<0.000000e+00> : vector<144x32xf32>
      %66 = tpu.matmul %64, %65, %cst_20 {dimension_numbers = #tpu.dot_dimension_numbers<[1], [0], [0], [1], [0, 0, 1, 1], [], []>} : vector<144x32xbf16>, vector<32x32xbf16>, vector<144x32xf32> -> vector<144x32xf32>
      %c0_21 = arith.constant 0 : index
      %c0_22 = arith.constant 0 : index
      %67 = vector.load %arg3[%c0_21, %c0_22] : memref<8x256xf32, #tpu.memory_space<vmem>>, vector<1x32xf32>
      %68 = vector.broadcast %67 : vector<1x32xf32> to vector<144x32xf32>
      %69 = arith.addf %66, %68 : vector<144x32xf32>
      %cst_23 = arith.constant 0.000000e+00 : f32
      %70 = vector.broadcast %cst_23 : f32 to vector<144x32xf32>
      %71 = arith.maximumf %69, %70 : vector<144x32xf32>
      %cst_24 = arith.constant 0.000000e+00 : f32
      %72 = vector.shape_cast %63 : vector<144x1xi1> to vector<144x1xi1>
      %73 = vector.broadcast %72 : vector<144x1xi1> to vector<144x32xi1>
      %74 = vector.broadcast %cst_24 : f32 to vector<144x32xf32>
      %75 = arith.select %73, %71, %74 : vector<144x32xi1>, vector<144x32xf32>
      %76 = arith.truncf %75 : vector<144x32xf32> to vector<144x32xbf16>
      %cst_25 = arith.constant 0.000000e+00 : bf16
      %77 = vector.broadcast %cst_25 : bf16 to vector<32x288xbf16>
      %c0_26 = arith.constant 0 : index
      %c0_27 = arith.constant 0 : index
      %78 = vector.load %arg8[%c0_26, %c0_27] : memref<176x288xbf16, #tpu.memory_space<vmem>>, vector<32x288xbf16>
      tpu.vector_store %arg8[%c0_26, %c0_27], %77 {strides = array<i32>} : memref<176x288xbf16, #tpu.memory_space<vmem>>, vector<32x288xbf16>,
      %c144 = arith.constant 144 : index
      %c0_28 = arith.constant 0 : index
      %79 = vector.load %arg8[%c144, %c0_28] : memref<176x288xbf16, #tpu.memory_space<vmem>>, vector<32x288xbf16>
      tpu.vector_store %arg8[%c144, %c0_28], %77 {strides = array<i32>} : memref<176x288xbf16, #tpu.memory_space<vmem>>, vector<32x288xbf16>,
      %c26 = arith.constant 26 : index
      %c0_29 = arith.constant 0 : index
      %80 = vector.load %arg8[%c26, %c0_29] : memref<176x288xbf16, #tpu.memory_space<vmem>>, vector<144x32xbf16>
      tpu.vector_store %arg8[%c26, %c0_29], %76 {strides = array<i32>} : memref<176x288xbf16, #tpu.memory_space<vmem>>, vector<144x32xbf16>,
      %c25 = arith.constant 25 : index
      %c32 = arith.constant 32 : index
      %81 = vector.load %arg8[%c25, %c32] : memref<176x288xbf16, #tpu.memory_space<vmem>>, vector<144x32xbf16>
      tpu.vector_store %arg8[%c25, %c32], %76 {strides = array<i32>} : memref<176x288xbf16, #tpu.memory_space<vmem>>, vector<144x32xbf16>,
      %c24 = arith.constant 24 : index
      %c64 = arith.constant 64 : index
      %82 = vector.load %arg8[%c24, %c64] : memref<176x288xbf16, #tpu.memory_space<vmem>>, vector<144x32xbf16>
      tpu.vector_store %arg8[%c24, %c64], %76 {strides = array<i32>} : memref<176x288xbf16, #tpu.memory_space<vmem>>, vector<144x32xbf16>,
      %c17 = arith.constant 17 : index
      %c96 = arith.constant 96 : index
      %83 = vector.load %arg8[%c17, %c96] : memref<176x288xbf16, #tpu.memory_space<vmem>>, vector<144x32xbf16>
      tpu.vector_store %arg8[%c17, %c96], %76 {strides = array<i32>} : memref<176x288xbf16, #tpu.memory_space<vmem>>, vector<144x32xbf16>,
      %c16 = arith.constant 16 : index
      %c128 = arith.constant 128 : index
      %84 = vector.load %arg8[%c16, %c128] : memref<176x288xbf16, #tpu.memory_space<vmem>>, vector<144x32xbf16>
      tpu.vector_store %arg8[%c16, %c128], %76 {strides = array<i32>} : memref<176x288xbf16, #tpu.memory_space<vmem>>, vector<144x32xbf16>,
      %c15 = arith.constant 15 : index
      %c160 = arith.constant 160 : index
      %85 = vector.load %arg8[%c15, %c160] : memref<176x288xbf16, #tpu.memory_space<vmem>>, vector<144x32xbf16>
      tpu.vector_store %arg8[%c15, %c160], %76 {strides = array<i32>} : memref<176x288xbf16, #tpu.memory_space<vmem>>, vector<144x32xbf16>,
      %c8 = arith.constant 8 : index
      %c192 = arith.constant 192 : index
      %86 = vector.load %arg8[%c8, %c192] : memref<176x288xbf16, #tpu.memory_space<vmem>>, vector<144x32xbf16>
      tpu.vector_store %arg8[%c8, %c192], %76 {strides = array<i32>} : memref<176x288xbf16, #tpu.memory_space<vmem>>, vector<144x32xbf16>,
      %c7 = arith.constant 7 : index
      %c224 = arith.constant 224 : index
      %87 = vector.load %arg8[%c7, %c224] : memref<176x288xbf16, #tpu.memory_space<vmem>>, vector<144x32xbf16>
      tpu.vector_store %arg8[%c7, %c224], %76 {strides = array<i32>} : memref<176x288xbf16, #tpu.memory_space<vmem>>, vector<144x32xbf16>,
      %c6 = arith.constant 6 : index
      %c256 = arith.constant 256 : index
      %88 = vector.load %arg8[%c6, %c256] : memref<176x288xbf16, #tpu.memory_space<vmem>>, vector<144x32xbf16>
      tpu.vector_store %arg8[%c6, %c256], %76 {strides = array<i32>} : memref<176x288xbf16, #tpu.memory_space<vmem>>, vector<144x32xbf16>,
      %c16_30 = arith.constant 16 : index
      %c0_31 = arith.constant 0 : index
      %89 = vector.load %arg8[%c16_30, %c0_31] : memref<176x288xbf16, #tpu.memory_space<vmem>>, vector<144x288xbf16>
      %c32_32 = arith.constant 32 : index
      %c0_33 = arith.constant 0 : index
      %90 = vector.load %arg2[%c32_32, %c0_33] : memref<896x128xbf16, #tpu.memory_space<vmem>>, vector<288x64xbf16>
      %cst_34 = arith.constant dense<0.000000e+00> : vector<144x64xf32>
      %91 = tpu.matmul %89, %90, %cst_34 {dimension_numbers = #tpu.dot_dimension_numbers<[1], [0], [0], [1], [0, 0, 1, 1], [], []>} : vector<144x288xbf16>, vector<288x64xbf16>, vector<144x64xf32> -> vector<144x64xf32>
      %c1 = arith.constant 1 : index
      %c0_35 = arith.constant 0 : index
      %92 = vector.load %arg3[%c1, %c0_35] : memref<8x256xf32, #tpu.memory_space<vmem>>, vector<1x64xf32>
      %93 = vector.broadcast %92 : vector<1x64xf32> to vector<144x64xf32>
      %94 = arith.addf %91, %93 : vector<144x64xf32>
      %cst_36 = arith.constant 0.000000e+00 : f32
      %95 = vector.broadcast %cst_36 : f32 to vector<144x64xf32>
      %96 = arith.maximumf %94, %95 : vector<144x64xf32>
      %cst_37 = arith.constant 0.000000e+00 : f32
      %97 = vector.shape_cast %63 : vector<144x1xi1> to vector<144x1xi1>
      %98 = vector.broadcast %97 : vector<144x1xi1> to vector<144x64xi1>
      %99 = vector.broadcast %cst_37 : f32 to vector<144x64xf32>
      %100 = arith.select %98, %96, %99 : vector<144x64xi1>, vector<144x64xf32>
      %101 = arith.truncf %100 : vector<144x64xf32> to vector<144x64xbf16>
      %cst_38 = arith.constant 0.000000e+00 : bf16
      %102 = vector.broadcast %cst_38 : bf16 to vector<32x576xbf16>
      %c0_39 = arith.constant 0 : index
      %c0_40 = arith.constant 0 : index
      %103 = vector.load %arg9[%c0_39, %c0_40] : memref<176x576xbf16, #tpu.memory_space<vmem>>, vector<32x576xbf16>
      tpu.vector_store %arg9[%c0_39, %c0_40], %102 {strides = array<i32>} : memref<176x576xbf16, #tpu.memory_space<vmem>>, vector<32x576xbf16>,
      %c144_41 = arith.constant 144 : index
      %c0_42 = arith.constant 0 : index
      %104 = vector.load %arg9[%c144_41, %c0_42] : memref<176x576xbf16, #tpu.memory_space<vmem>>, vector<32x576xbf16>
      tpu.vector_store %arg9[%c144_41, %c0_42], %102 {strides = array<i32>} : memref<176x576xbf16, #tpu.memory_space<vmem>>, vector<32x576xbf16>,
      %c26_43 = arith.constant 26 : index
      %c0_44 = arith.constant 0 : index
      %105 = vector.load %arg9[%c26_43, %c0_44] : memref<176x576xbf16, #tpu.memory_space<vmem>>, vector<144x64xbf16>
      tpu.vector_store %arg9[%c26_43, %c0_44], %101 {strides = array<i32>} : memref<176x576xbf16, #tpu.memory_space<vmem>>, vector<144x64xbf16>,
      %c25_45 = arith.constant 25 : index
      %c64_46 = arith.constant 64 : index
      %106 = vector.load %arg9[%c25_45, %c64_46] : memref<176x576xbf16, #tpu.memory_space<vmem>>, vector<144x64xbf16>
      tpu.vector_store %arg9[%c25_45, %c64_46], %101 {strides = array<i32>} : memref<176x576xbf16, #tpu.memory_space<vmem>>, vector<144x64xbf16>,
      %c24_47 = arith.constant 24 : index
      %c128_48 = arith.constant 128 : index
      %107 = vector.load %arg9[%c24_47, %c128_48] : memref<176x576xbf16, #tpu.memory_space<vmem>>, vector<144x64xbf16>
      tpu.vector_store %arg9[%c24_47, %c128_48], %101 {strides = array<i32>} : memref<176x576xbf16, #tpu.memory_space<vmem>>, vector<144x64xbf16>,
      %c17_49 = arith.constant 17 : index
      %c192_50 = arith.constant 192 : index
      %108 = vector.load %arg9[%c17_49, %c192_50] : memref<176x576xbf16, #tpu.memory_space<vmem>>, vector<144x64xbf16>
      tpu.vector_store %arg9[%c17_49, %c192_50], %101 {strides = array<i32>} : memref<176x576xbf16, #tpu.memory_space<vmem>>, vector<144x64xbf16>,
      %c16_51 = arith.constant 16 : index
      %c256_52 = arith.constant 256 : index
      %109 = vector.load %arg9[%c16_51, %c256_52] : memref<176x576xbf16, #tpu.memory_space<vmem>>, vector<144x64xbf16>
      tpu.vector_store %arg9[%c16_51, %c256_52], %101 {strides = array<i32>} : memref<176x576xbf16, #tpu.memory_space<vmem>>, vector<144x64xbf16>,
      %c15_53 = arith.constant 15 : index
      %c320 = arith.constant 320 : index
      %110 = vector.load %arg9[%c15_53, %c320] : memref<176x576xbf16, #tpu.memory_space<vmem>>, vector<144x64xbf16>
      tpu.vector_store %arg9[%c15_53, %c320], %101 {strides = array<i32>} : memref<176x576xbf16, #tpu.memory_space<vmem>>, vector<144x64xbf16>,
      %c8_54 = arith.constant 8 : index
      %c384 = arith.constant 384 : index
      %111 = vector.load %arg9[%c8_54, %c384] : memref<176x576xbf16, #tpu.memory_space<vmem>>, vector<144x64xbf16>
      tpu.vector_store %arg9[%c8_54, %c384], %101 {strides = array<i32>} : memref<176x576xbf16, #tpu.memory_space<vmem>>, vector<144x64xbf16>,
      %c7_55 = arith.constant 7 : index
      %c448 = arith.constant 448 : index
      %112 = vector.load %arg9[%c7_55, %c448] : memref<176x576xbf16, #tpu.memory_space<vmem>>, vector<144x64xbf16>
      tpu.vector_store %arg9[%c7_55, %c448], %101 {strides = array<i32>} : memref<176x576xbf16, #tpu.memory_space<vmem>>, vector<144x64xbf16>,
      %c6_56 = arith.constant 6 : index
      %c512 = arith.constant 512 : index
      %113 = vector.load %arg9[%c6_56, %c512] : memref<176x576xbf16, #tpu.memory_space<vmem>>, vector<144x64xbf16>
      tpu.vector_store %arg9[%c6_56, %c512], %101 {strides = array<i32>} : memref<176x576xbf16, #tpu.memory_space<vmem>>, vector<144x64xbf16>,
      %c16_57 = arith.constant 16 : index
      %c0_58 = arith.constant 0 : index
      %114 = vector.load %arg9[%c16_57, %c0_58] : memref<176x576xbf16, #tpu.memory_space<vmem>>, vector<144x576xbf16>
      %c320_59 = arith.constant 320 : index
      %c0_60 = arith.constant 0 : index
      %115 = vector.load %arg2[%c320_59, %c0_60] : memref<896x128xbf16, #tpu.memory_space<vmem>>, vector<576x128xbf16>
      %cst_61 = arith.constant dense<0.000000e+00> : vector<144x128xf32>
      %116 = tpu.matmul %114, %115, %cst_61 {dimension_numbers = #tpu.dot_dimension_numbers<[1], [0], [0], [1], [0, 0, 1, 1], [], []>} : vector<144x576xbf16>, vector<576x128xbf16>, vector<144x128xf32> -> vector<144x128xf32>
      %c2 = arith.constant 2 : index
      %c0_62 = arith.constant 0 : index
      %117 = vector.load %arg3[%c2, %c0_62] : memref<8x256xf32, #tpu.memory_space<vmem>>, vector<1x128xf32>
      %118 = vector.broadcast %117 : vector<1x128xf32> to vector<144x128xf32>
      %119 = arith.addf %116, %118 : vector<144x128xf32>
      %cst_63 = arith.constant 0.000000e+00 : f32
      %120 = vector.broadcast %cst_63 : f32 to vector<144x128xf32>
      %121 = arith.maximumf %119, %120 : vector<144x128xf32>
      %122 = arith.truncf %121 : vector<144x128xf32> to vector<144x128xbf16>
      %c0_64 = arith.constant 0 : index
      %c0_65 = arith.constant 0 : index
      %123 = vector.load %arg10[%c0_64, %c0_65] : memref<144x128xbf16, #tpu.memory_space<vmem>>, vector<144x128xbf16>
      tpu.vector_store %arg10[%c0_64, %c0_65], %122 {strides = array<i32>} : memref<144x128xbf16, #tpu.memory_space<vmem>>, vector<144x128xbf16>,
      %c10 = arith.constant 10 : index
      %c0_66 = arith.constant 0 : index
      %124 = vector.load %arg10[%c10, %c0_66] : memref<144x128xbf16, #tpu.memory_space<vmem>>, vector<7x128xbf16>
      %c0_67 = arith.constant 0 : index
      %c0_68 = arith.constant 0 : index
      %c0_69 = arith.constant 0 : index
      %125 = vector.load %arg11[%c0_67, %c0_68, %c0_69] : memref<42x2x128xbf16, #tpu.memory_space<vmem>>, vector<7x1x128xbf16>
      %126 = vector.shape_cast %125 : vector<7x1x128xbf16> to vector<7x128xbf16>
      %127 = vector.shape_cast %124 : vector<7x128xbf16> to vector<7x1x128xbf16>
      tpu.vector_store %arg11[%c0_67, %c0_68, %c0_69], %127 {strides = array<i32>} : memref<42x2x128xbf16, #tpu.memory_space<vmem>>, vector<7x1x128xbf16>,
      %c19 = arith.constant 19 : index
      %c0_70 = arith.constant 0 : index
      %128 = vector.load %arg10[%c19, %c0_70] : memref<144x128xbf16, #tpu.memory_space<vmem>>, vector<7x128xbf16>
      %c7_71 = arith.constant 7 : index
      %c0_72 = arith.constant 0 : index
      %c0_73 = arith.constant 0 : index
      %129 = vector.load %arg11[%c7_71, %c0_72, %c0_73] : memref<42x2x128xbf16, #tpu.memory_space<vmem>>, vector<7x1x128xbf16>
      %130 = vector.shape_cast %129 : vector<7x1x128xbf16> to vector<7x128xbf16>
      %131 = vector.shape_cast %128 : vector<7x128xbf16> to vector<7x1x128xbf16>
      tpu.vector_store %arg11[%c7_71, %c0_72, %c0_73], %131 {strides = array<i32>} : memref<42x2x128xbf16, #tpu.memory_space<vmem>>, vector<7x1x128xbf16>,
      %c28 = arith.constant 28 : index
      %c0_74 = arith.constant 0 : index
      %132 = vector.load %arg10[%c28, %c0_74] : memref<144x128xbf16, #tpu.memory_space<vmem>>, vector<7x128xbf16>
      %c14 = arith.constant 14 : index
      %c0_75 = arith.constant 0 : index
      %c0_76 = arith.constant 0 : index
      %133 = vector.load %arg11[%c14, %c0_75, %c0_76] : memref<42x2x128xbf16, #tpu.memory_space<vmem>>, vector<7x1x128xbf16>
      %134 = vector.shape_cast %133 : vector<7x1x128xbf16> to vector<7x128xbf16>
      %135 = vector.shape_cast %132 : vector<7x128xbf16> to vector<7x1x128xbf16>
      tpu.vector_store %arg11[%c14, %c0_75, %c0_76], %135 {strides = array<i32>} : memref<42x2x128xbf16, #tpu.memory_space<vmem>>, vector<7x1x128xbf16>,
      %c37 = arith.constant 37 : index
      %c0_77 = arith.constant 0 : index
      %136 = vector.load %arg10[%c37, %c0_77] : memref<144x128xbf16, #tpu.memory_space<vmem>>, vector<7x128xbf16>
      %c21 = arith.constant 21 : index
      %c0_78 = arith.constant 0 : index
      %c0_79 = arith.constant 0 : index
      %137 = vector.load %arg11[%c21, %c0_78, %c0_79] : memref<42x2x128xbf16, #tpu.memory_space<vmem>>, vector<7x1x128xbf16>
      %138 = vector.shape_cast %137 : vector<7x1x128xbf16> to vector<7x128xbf16>
      %139 = vector.shape_cast %136 : vector<7x128xbf16> to vector<7x1x128xbf16>
      tpu.vector_store %arg11[%c21, %c0_78, %c0_79], %139 {strides = array<i32>} : memref<42x2x128xbf16, #tpu.memory_space<vmem>>, vector<7x1x128xbf16>,
      %c46 = arith.constant 46 : index
      %c0_80 = arith.constant 0 : index
      %140 = vector.load %arg10[%c46, %c0_80] : memref<144x128xbf16, #tpu.memory_space<vmem>>, vector<7x128xbf16>
      %c28_81 = arith.constant 28 : index
      %c0_82 = arith.constant 0 : index
      %c0_83 = arith.constant 0 : index
      %141 = vector.load %arg11[%c28_81, %c0_82, %c0_83] : memref<42x2x128xbf16, #tpu.memory_space<vmem>>, vector<7x1x128xbf16>
      %142 = vector.shape_cast %141 : vector<7x1x128xbf16> to vector<7x128xbf16>
      %143 = vector.shape_cast %140 : vector<7x128xbf16> to vector<7x1x128xbf16>
      tpu.vector_store %arg11[%c28_81, %c0_82, %c0_83], %143 {strides = array<i32>} : memref<42x2x128xbf16, #tpu.memory_space<vmem>>, vector<7x1x128xbf16>,
      %c55 = arith.constant 55 : index
      %c0_84 = arith.constant 0 : index
      %144 = vector.load %arg10[%c55, %c0_84] : memref<144x128xbf16, #tpu.memory_space<vmem>>, vector<7x128xbf16>
      %c35 = arith.constant 35 : index
      %c0_85 = arith.constant 0 : index
      %c0_86 = arith.constant 0 : index
      %145 = vector.load %arg11[%c35, %c0_85, %c0_86] : memref<42x2x128xbf16, #tpu.memory_space<vmem>>, vector<7x1x128xbf16>
      %146 = vector.shape_cast %145 : vector<7x1x128xbf16> to vector<7x128xbf16>
      %147 = vector.shape_cast %144 : vector<7x128xbf16> to vector<7x1x128xbf16>
      tpu.vector_store %arg11[%c35, %c0_85, %c0_86], %147 {strides = array<i32>} : memref<42x2x128xbf16, #tpu.memory_space<vmem>>, vector<7x1x128xbf16>,
      %c82 = arith.constant 82 : index
      %c0_87 = arith.constant 0 : index
      %148 = vector.load %arg10[%c82, %c0_87] : memref<144x128xbf16, #tpu.memory_space<vmem>>, vector<7x128xbf16>
      %c0_88 = arith.constant 0 : index
      %c1_89 = arith.constant 1 : index
      %c0_90 = arith.constant 0 : index
      %149 = vector.load %arg11[%c0_88, %c1_89, %c0_90] : memref<42x2x128xbf16, #tpu.memory_space<vmem>>, vector<7x1x128xbf16>
      %150 = vector.shape_cast %149 : vector<7x1x128xbf16> to vector<7x128xbf16>
      %151 = vector.shape_cast %148 : vector<7x128xbf16> to vector<7x1x128xbf16>
      tpu.vector_store %arg11[%c0_88, %c1_89, %c0_90], %151 {strides = array<i32>} : memref<42x2x128xbf16, #tpu.memory_space<vmem>>, vector<7x1x128xbf16>,
      %c91 = arith.constant 91 : index
      %c0_91 = arith.constant 0 : index
      %152 = vector.load %arg10[%c91, %c0_91] : memref<144x128xbf16, #tpu.memory_space<vmem>>, vector<7x128xbf16>
      %c7_92 = arith.constant 7 : index
      %c1_93 = arith.constant 1 : index
      %c0_94 = arith.constant 0 : index
      %153 = vector.load %arg11[%c7_92, %c1_93, %c0_94] : memref<42x2x128xbf16, #tpu.memory_space<vmem>>, vector<7x1x128xbf16>
      %154 = vector.shape_cast %153 : vector<7x1x128xbf16> to vector<7x128xbf16>
      %155 = vector.shape_cast %152 : vector<7x128xbf16> to vector<7x1x128xbf16>
      tpu.vector_store %arg11[%c7_92, %c1_93, %c0_94], %155 {strides = array<i32>} : memref<42x2x128xbf16, #tpu.memory_space<vmem>>, vector<7x1x128xbf16>,
      %c100 = arith.constant 100 : index
      %c0_95 = arith.constant 0 : index
      %156 = vector.load %arg10[%c100, %c0_95] : memref<144x128xbf16, #tpu.memory_space<vmem>>, vector<7x128xbf16>
      %c14_96 = arith.constant 14 : index
      %c1_97 = arith.constant 1 : index
      %c0_98 = arith.constant 0 : index
      %157 = vector.load %arg11[%c14_96, %c1_97, %c0_98] : memref<42x2x128xbf16, #tpu.memory_space<vmem>>, vector<7x1x128xbf16>
      %158 = vector.shape_cast %157 : vector<7x1x128xbf16> to vector<7x128xbf16>
      %159 = vector.shape_cast %156 : vector<7x128xbf16> to vector<7x1x128xbf16>
      tpu.vector_store %arg11[%c14_96, %c1_97, %c0_98], %159 {strides = array<i32>} : memref<42x2x128xbf16, #tpu.memory_space<vmem>>, vector<7x1x128xbf16>,
      %c109 = arith.constant 109 : index
      %c0_99 = arith.constant 0 : index
      %160 = vector.load %arg10[%c109, %c0_99] : memref<144x128xbf16, #tpu.memory_space<vmem>>, vector<7x128xbf16>
      %c21_100 = arith.constant 21 : index
      %c1_101 = arith.constant 1 : index
      %c0_102 = arith.constant 0 : index
      %161 = vector.load %arg11[%c21_100, %c1_101, %c0_102] : memref<42x2x128xbf16, #tpu.memory_space<vmem>>, vector<7x1x128xbf16>
      %162 = vector.shape_cast %161 : vector<7x1x128xbf16> to vector<7x128xbf16>
      %163 = vector.shape_cast %160 : vector<7x128xbf16> to vector<7x1x128xbf16>
      tpu.vector_store %arg11[%c21_100, %c1_101, %c0_102], %163 {strides = array<i32>} : memref<42x2x128xbf16, #tpu.memory_space<vmem>>, vector<7x1x128xbf16>,
      %c118 = arith.constant 118 : index
      %c0_103 = arith.constant 0 : index
      %164 = vector.load %arg10[%c118, %c0_103] : memref<144x128xbf16, #tpu.memory_space<vmem>>, vector<7x128xbf16>
      %c28_104 = arith.constant 28 : index
      %c1_105 = arith.constant 1 : index
      %c0_106 = arith.constant 0 : index
      %165 = vector.load %arg11[%c28_104, %c1_105, %c0_106] : memref<42x2x128xbf16, #tpu.memory_space<vmem>>, vector<7x1x128xbf16>
      %166 = vector.shape_cast %165 : vector<7x1x128xbf16> to vector<7x128xbf16>
      %167 = vector.shape_cast %164 : vector<7x128xbf16> to vector<7x1x128xbf16>
      tpu.vector_store %arg11[%c28_104, %c1_105, %c0_106], %167 {strides = array<i32>} : memref<42x2x128xbf16, #tpu.memory_space<vmem>>, vector<7x1x128xbf16>,
      %c127 = arith.constant 127 : index
      %c0_107 = arith.constant 0 : index
      %168 = vector.load %arg10[%c127, %c0_107] : memref<144x128xbf16, #tpu.memory_space<vmem>>, vector<7x128xbf16>
      %c35_108 = arith.constant 35 : index
      %c1_109 = arith.constant 1 : index
      %c0_110 = arith.constant 0 : index
      %169 = vector.load %arg11[%c35_108, %c1_109, %c0_110] : memref<42x2x128xbf16, #tpu.memory_space<vmem>>, vector<7x1x128xbf16>
      %170 = vector.shape_cast %169 : vector<7x1x128xbf16> to vector<7x128xbf16>
      %171 = vector.shape_cast %168 : vector<7x128xbf16> to vector<7x1x128xbf16>
      tpu.vector_store %arg11[%c35_108, %c1_109, %c0_110], %171 {strides = array<i32>} : memref<42x2x128xbf16, #tpu.memory_space<vmem>>, vector<7x1x128xbf16>,
      %cst_111 = arith.constant 0.000000e+00 : f32
      %172 = vector.broadcast %cst_111 : f32 to vector<2x256xf32>
      %c0_112 = arith.constant 0 : index
      %c0_113 = arith.constant 0 : index
      %173 = vector.load %arg12[%c0_112, %c0_113] : memref<2x256xf32, #tpu.memory_space<vmem>>, vector<2x256xf32>
      tpu.vector_store %arg12[%c0_112, %c0_113], %172 {strides = array<i32>} : memref<2x256xf32, #tpu.memory_space<vmem>>, vector<2x256xf32>,
    } else {
    }
    %c7_i32 = arith.constant 7 : i32
    %3 = arith.muli %arg0, %c7_i32 : i32
    %4 = arith.index_cast %3 : i32 to index
    %c0 = arith.constant 0 : index
    %c0_1 = arith.constant 0 : index
    %5 = vector.load %arg11[%4, %c0, %c0_1] : memref<42x2x128xbf16, #tpu.memory_space<vmem>>, vector<7x2x128xbf16>
    %c0_2 = arith.constant 0 : index
    %c0_3 = arith.constant 0 : index
    %c0_4 = arith.constant 0 : index
    %6 = vector.load %arg4[%c0_2, %c0_3, %c0_4] : memref<7x128x256xbf16, #tpu.memory_space<vmem>>, vector<7x128x256xbf16>
    "tpu.trace_start"() <{level = 10 : i32, message = "knc,kco->kno"}> : () -> ()
    %cst = arith.constant dense<0.000000e+00> : vector<7x2x256xf32>
    %7 = tpu.matmul %5, %6, %cst {dimension_numbers = #tpu.dot_dimension_numbers<[2], [1], [1], [2], [0, 0, 0, 1, 1, 2], [0], [0]>} : vector<7x2x128xbf16>, vector<7x128x256xbf16>, vector<7x2x256xf32> -> vector<7x2x256xf32>
    "tpu.trace_stop"() : () -> ()
    %c0_5 = arith.constant 0 : index
    %c0_6 = arith.constant 0 : index
    %8 = vector.load %arg12[%c0_5, %c0_6] : memref<2x256xf32, #tpu.memory_space<vmem>>, vector<2x256xf32>
    %cst_7 = arith.constant dense<0.000000e+00> : vector<2x256xf32>
    %9 = vector.multi_reduction <add>, %7, %cst_7 [0] : vector<7x2x256xf32> to vector<2x256xf32>
    %10 = arith.addf %8, %9 : vector<2x256xf32>
    %c0_8 = arith.constant 0 : index
    %c0_9 = arith.constant 0 : index
    %11 = vector.load %arg12[%c0_8, %c0_9] : memref<2x256xf32, #tpu.memory_space<vmem>>, vector<2x256xf32>
    tpu.vector_store %arg12[%c0_8, %c0_9], %10 {strides = array<i32>} : memref<2x256xf32, #tpu.memory_space<vmem>>, vector<2x256xf32>,
    %c5_i32 = arith.constant 5 : i32
    %12 = arith.cmpi eq, %arg0, %c5_i32 : i32
    %13 = arith.extui %12 : i1 to i32
    %c0_i32_10 = arith.constant 0 : i32
    %14 = arith.cmpi ne, %13, %c0_i32_10 : i32
    scf.if %14 {
      %c0_11 = arith.constant 0 : index
      %c0_12 = arith.constant 0 : index
      %15 = vector.load %arg12[%c0_11, %c0_12] : memref<2x256xf32, #tpu.memory_space<vmem>>, vector<2x256xf32>
      %c3 = arith.constant 3 : index
      %c0_13 = arith.constant 0 : index
      %16 = vector.load %arg3[%c3, %c0_13] : memref<8x256xf32, #tpu.memory_space<vmem>>, vector<1x256xf32>
      %17 = vector.broadcast %16 : vector<1x256xf32> to vector<2x256xf32>
      %18 = arith.addf %15, %17 : vector<2x256xf32>
      %cst_14 = arith.constant 0.000000e+00 : f32
      %19 = vector.broadcast %cst_14 : f32 to vector<2x256xf32>
      %20 = arith.maximumf %18, %19 : vector<2x256xf32>
      %21 = arith.truncf %20 : vector<2x256xf32> to vector<2x256xbf16>
      %c0_15 = arith.constant 0 : index
      %c0_16 = arith.constant 0 : index
      %22 = vector.load %arg5[%c0_15, %c0_16] : memref<256x128xbf16, #tpu.memory_space<vmem>>, vector<256x128xbf16>
      %cst_17 = arith.constant dense<0.000000e+00> : vector<2x128xf32>
      %23 = tpu.matmul %21, %22, %cst_17 {dimension_numbers = #tpu.dot_dimension_numbers<[1], [0], [0], [1], [0, 0, 1, 1], [], []>} : vector<2x256xbf16>, vector<256x128xbf16>, vector<2x128xf32> -> vector<2x128xf32>
      %c4 = arith.constant 4 : index
      %c0_18 = arith.constant 0 : index
      %24 = vector.load %arg3[%c4, %c0_18] : memref<8x256xf32, #tpu.memory_space<vmem>>, vector<1x128xf32>
      %25 = vector.broadcast %24 : vector<1x128xf32> to vector<2x128xf32>
      %26 = arith.addf %23, %25 : vector<2x128xf32>
      %cst_19 = arith.constant 0.000000e+00 : f32
      %27 = vector.broadcast %cst_19 : f32 to vector<2x128xf32>
      %28 = arith.maximumf %26, %27 : vector<2x128xf32>
      %29 = arith.truncf %28 : vector<2x128xf32> to vector<2x128xbf16>
      %c0_20 = arith.constant 0 : index
      %c0_21 = arith.constant 0 : index
      %30 = vector.load %arg6[%c0_20, %c0_21] : memref<128x128xbf16, #tpu.memory_space<vmem>>, vector<128x128xbf16>
      %cst_22 = arith.constant dense<0.000000e+00> : vector<2x128xf32>
      %31 = tpu.matmul %29, %30, %cst_22 {dimension_numbers = #tpu.dot_dimension_numbers<[1], [0], [0], [1], [0, 0, 1, 1], [], []>} : vector<2x128xbf16>, vector<128x128xbf16>, vector<2x128xf32> -> vector<2x128xf32>
      %c5 = arith.constant 5 : index
      %c0_23 = arith.constant 0 : index
      %32 = vector.load %arg3[%c5, %c0_23] : memref<8x256xf32, #tpu.memory_space<vmem>>, vector<1x128xf32>
      %33 = vector.broadcast %32 : vector<1x128xf32> to vector<2x128xf32>
      %34 = arith.addf %31, %33 : vector<2x128xf32>
      %c0_24 = arith.constant 0 : index
      %c0_25 = arith.constant 0 : index
      %35 = vector.load %arg7[%c0_24, %c0_25] : memref<2x128xf32, #tpu.memory_space<vmem>>, vector<2x128xf32>
      tpu.vector_store %arg7[%c0_24, %c0_25], %34 {strides = array<i32>} : memref<2x128xf32, #tpu.memory_space<vmem>>, vector<2x128xf32>,
    } else {
    }
    return
  }
  func.func @transform_0(%arg0: i32) -> (i32, i32) {
    %c0_i32 = arith.constant 0 : i32
    %c0_i32_0 = arith.constant 0 : i32
    %c0_i32_1 = arith.constant 0 : i32
    return %c0_i32, %c0_i32_0 : i32, i32
  }
  func.func @transform_1(%arg0: i32) -> (i32, i32) {
    %c0_i32 = arith.constant 0 : i32
    %c0_i32_0 = arith.constant 0 : i32
    %c0_i32_1 = arith.constant 0 : i32
    return %c0_i32, %c0_i32_0 : i32, i32
  }
  func.func @transform_2(%arg0: i32) -> (i32, i32) {
    %c0_i32 = arith.constant 0 : i32
    %c0_i32_0 = arith.constant 0 : i32
    %c0_i32_1 = arith.constant 0 : i32
    return %c0_i32, %c0_i32_0 : i32, i32
  }
  func.func @transform_3(%arg0: i32) -> (i32, i32, i32) {
    %c0_i32 = arith.constant 0 : i32
    %c0_i32_0 = arith.constant 0 : i32
    %c0_i32_1 = arith.constant 0 : i32
    return %arg0, %c0_i32, %c0_i32_0 : i32, i32, i32
  }
  func.func @transform_4(%arg0: i32) -> (i32, i32) {
    %c0_i32 = arith.constant 0 : i32
    %c0_i32_0 = arith.constant 0 : i32
    %c0_i32_1 = arith.constant 0 : i32
    return %c0_i32, %c0_i32_0 : i32, i32
  }
  func.func @transform_5(%arg0: i32) -> (i32, i32) {
    %c0_i32 = arith.constant 0 : i32
    %c0_i32_0 = arith.constant 0 : i32
    %c0_i32_1 = arith.constant 0 : i32
    return %c0_i32, %c0_i32_0 : i32, i32
  }
  func.func @transform_6(%arg0: i32) -> (i32, i32) {
    %c0_i32 = arith.constant 0 : i32
    %c0_i32_0 = arith.constant 0 : i32
    %c0_i32_1 = arith.constant 0 : i32
    return %c0_i32, %c0_i32_0 : i32, i32
  }
}

</mosaic_0001>

<llo_original>
// kernel: qnetwork_forward.1
$region0: #{qnetwork_forward.1}
  #allocation0 [shape = 'u32[]', space=smem, size = 0x4, offset = 0x4, fixed_abs, tag = 'smem constant byte address 0x4 - core index']
  #allocation1 [shape = 'u32[72,128]{1,0:T(1,128)}', space=vmem, size = 0x9000, scoped, tag = 'internal scratch']
  #allocation2 [shape = 'bf16[176,288]{1,0:T(8,128)(2,1)}', space=vmem, size = 0x21000, scoped, tag = 'scratch operand']
  #allocation3 [shape = 'bf16[176,576]{1,0:T(8,128)(2,1)}', space=vmem, size = 0x37000, scoped, tag = 'scratch operand']
  #allocation4 [shape = 'bf16[144,128]{1,0:T(8,128)(2,1)}', space=vmem, size = 0x9000, scoped, tag = 'scratch operand']
  #allocation5 [shape = 'bf16[42,2,128]{2,1,0:T(2,128)(2,1)}', space=vmem, size = 0x5400, scoped, tag = 'scratch operand']
  #allocation6 [shape = 'f32[2,256]{1,0:T(2,128)}', space=vmem, size = 0x800, scoped, tag = 'scratch operand']
  %s0 = inlined_call_operand.vmem [shape: bf16[144,32], index: 0, kind: input, shape index: {}]
  %s1 = inlined_call_operand.hbm [shape: bf16[896,128], index: 1, kind: input, shape index: {}]
  %s2 = inlined_call_operand.hbm [shape: f32[8,256], index: 2, kind: input, shape index: {}]
  %s3 = inlined_call_operand.hbm [shape: bf16[42,128,256], index: 3, kind: input, shape index: {}]
  %s4 = inlined_call_operand.hbm [shape: bf16[256,128], index: 4, kind: input, shape index: {}]
  %s5 = inlined_call_operand.hbm [shape: bf16[128,128], index: 5, kind: input, shape index: {}]
  %s6 = inlined_call_operand.hbm [shape: f32[2,128], index: 6, kind: output, shape index: {}]
  %s7 = sld [smem:[#allocation0]]
  $region85: #{qnetwork_forward.1} parent=0
    _
  %s9 = ssub.s32 1, %s7
  %s10 = scalar_select 0, %s9, %s7
  $region1: #{qnetwork_forward.1} parent=0
    #allocation7 [shape = 'u8[229376]{0}', space=vmem, size = 0x38000, scoped, tag = 'input window, operand 1, single buffered']
    #allocation8 [shape = 's32[2]{0}', space=sflag, size = 0x8, scoped, tag = 'scoped memory for qnetwork_forward.1']
    #allocation9 [shape = 's32[2]{0}', space=sflag, size = 0x8, scoped, tag = 'scoped memory for qnetwork_forward.1']
    #allocation10 [shape = 'u8[8192]{0}', space=vmem, size = 0x2000, scoped, tag = 'input window, operand 2, single buffered']
    #allocation11 [shape = 's32[1]{0}', space=sflag, size = 0x4, scoped, tag = 'scoped memory for qnetwork_forward.1']
    #allocation12 [shape = 'u8[917504]{0}', space=vmem, size = 0xe0000, scoped, tag = 'input window, operand 3']
    #allocation13 [shape = 'u8[65536]{0}', space=vmem, size = 0x10000, scoped, tag = 'input window, operand 4, single buffered']
    #allocation14 [shape = 'u8[32768]{0}', space=vmem, size = 0x8000, scoped, tag = 'input window, operand 5, single buffered']
    #allocation15 [shape = 's32[1]{0}', space=sflag, size = 0x4, scoped, tag = 'scoped memory for qnetwork_forward.1']
    #allocation16 [shape = 'u8[1024]{0}', space=vmem, size = 0x400, scoped, tag = 'output window, operand 0, single buffered']
    %11 = vsyncpa [#allocation8], 0
    %12 = vsyncpa [#allocation11], 0
    %13 = vsyncpa [#allocation15], 0
    %14 = vsyncpa [#allocation9], 0
    loop: start=0, step=1, limit=8
    $region2: #{qnetwork_forward.1} parent=1 // loop_pre_header
      _
    $region3: #{qnetwork_forward.1} parent=1 // loop_header
      %s16 = sphi 0, %s20
      %p17 = scmp.ge.s32.totalorder %s16, 8
      %s24 = sphi 0, %s24
      %s26 = sphi 0, %s24
      %s27 = sphi 0, %s26
      %s41 = sphi 0, %s27
      %s45 = sphi 0, %s45
      %s47 = sphi 0, %s45
      %s48 = sphi 0, %s47
      %s62 = sphi 0, %s48
      %s66 = sphi 0, %s66
      %s68 = sphi 0, %s66
      %s69 = sphi 0, %s68
      %s83 = sphi 0, %s69
      %s89 = sphi 0, %s91
      %s92 = sphi 0, %s89
      %s93 = sphi 0, %s92
      %s109 = sphi 0, %s93
      %s113 = sphi 0, %s113
      %s115 = sphi 0, %s113
      %s116 = sphi 0, %s115
      %s130 = sphi 0, %s116
      %s134 = sphi 0, %s134
      %s136 = sphi 0, %s134
      %s137 = sphi 0, %s136
      %s151 = sphi 0, %s137
      %s155 = sphi 0, %s155
      %s157 = sphi 0, %s155
      %s158 = sphi 0, %s157
      %s172 = sphi 0, %s158
    $region4: #{qnetwork_forward.1} parent=1 // loop_header_branch
      %19 = sbr.rel (%p17) target = $region8
    $region5: #{qnetwork_forward.1} parent=1 // loop_body
      %s21 = ssub.s32 %s16, 1
      %s22 = ssub.s32 %s16, 2
      %s23 = sadd.s32 %s16, 1
      %s25 = sadd.s32 %s24, 1
      %p28 = scmp.eq.s32.totalorder %s16, 5
      %p29 = scmp.ne.s32.totalorder %s24, %s26
      %p30 = scmp.eq.s32.totalorder %s16, 0
      %p31 = por %p29, %p30
      %p32 = scmp.ne.s32.totalorder %s24, %s26
      %p33 = scmp.eq.s32.totalorder %s21, 5
      %p34 = por %p32, %p33
      %p35 = scmp.ne.s32.totalorder %s26, %s27
      %p36 = scmp.eq.s32.totalorder %s21, 0
      %p37 = por %p35, %p36
      %p38 = scmp.ne.s32.totalorder %s26, %s27
      %p39 = scmp.eq.s32.totalorder %s22, 5
      %p40 = por %p38, %p39
      %p42 = scmp.ne.s32.totalorder %s27, %s41
      %p43 = scmp.eq.s32.totalorder %s22, 0
      %p44 = por %p42, %p43
      %s46 = sadd.s32 %s45, 1
      %p49 = scmp.eq.s32.totalorder %s16, 5
      %p50 = scmp.ne.s32.totalorder %s45, %s47
      %p51 = scmp.eq.s32.totalorder %s16, 0
      %p52 = por %p50, %p51
      %p53 = scmp.ne.s32.totalorder %s45, %s47
      %p54 = scmp.eq.s32.totalorder %s21, 5
      %p55 = por %p53, %p54
      %p56 = scmp.ne.s32.totalorder %s47, %s48
      %p57 = scmp.eq.s32.totalorder %s21, 0
      %p58 = por %p56, %p57
      %p59 = scmp.ne.s32.totalorder %s47, %s48
      %p60 = scmp.eq.s32.totalorder %s22, 5
      %p61 = por %p59, %p60
      %p63 = scmp.ne.s32.totalorder %s48, %s62
      %p64 = scmp.eq.s32.totalorder %s22, 0
      %p65 = por %p63, %p64
      %s67 = sadd.s32 %s66, 1
      %p70 = scmp.eq.s32.totalorder %s16, 5
      %p71 = scmp.ne.s32.totalorder %s66, %s68
      %p72 = scmp.eq.s32.totalorder %s16, 0
      %p73 = por %p71, %p72
      %p74 = scmp.ne.s32.totalorder %s66, %s68
      %p75 = scmp.eq.s32.totalorder %s21, 5
      %p76 = por %p74, %p75
      %p77 = scmp.ne.s32.totalorder %s68, %s69
      %p78 = scmp.eq.s32.totalorder %s21, 0
      %p79 = por %p77, %p78
      %p80 = scmp.ne.s32.totalorder %s68, %s69
      %p81 = scmp.eq.s32.totalorder %s22, 5
      %p82 = por %p80, %p81
      %p84 = scmp.ne.s32.totalorder %s69, %s83
      %p85 = scmp.eq.s32.totalorder %s22, 0
      %p86 = por %p84, %p85
      %s87 = ssub.s32 %s16, %s23
      %p88 = scmp.eq.s32.totalorder %s87, 0
      %s90 = sadd.s32 %s89, 1
      %s91 = scalar_select %p88, %s89, %s90
      %p94 = pneg %p88
      %p95 = scmp.eq.s32.totalorder %s16, 5
      %p96 = por %p94, %p95
      %p97 = scmp.ne.s32.totalorder %s89, %s92
      %p98 = scmp.eq.s32.totalorder %s16, 0
      %p99 = por %p97, %p98
      %p100 = scmp.ne.s32.totalorder %s89, %s92
      %p101 = scmp.eq.s32.totalorder %s21, 5
      %p102 = por %p100, %p101
      %p103 = scmp.ne.s32.totalorder %s92, %s93
      %p104 = scmp.eq.s32.totalorder %s21, 0
      %p105 = por %p103, %p104
      %p106 = scmp.ne.s32.totalorder %s92, %s93
      %p107 = scmp.eq.s32.totalorder %s22, 5
      %p108 = por %p106, %p107
      %p110 = scmp.ne.s32.totalorder %s93, %s109
      %p111 = scmp.eq.s32.totalorder %s22, 0
      %p112 = por %p110, %p111
      %s114 = sadd.s32 %s113, 1
      %p117 = scmp.eq.s32.totalorder %s16, 5
      %p118 = scmp.ne.s32.totalorder %s113, %s115
      %p119 = scmp.eq.s32.totalorder %s16, 0
      %p120 = por %p118, %p119
      %p121 = scmp.ne.s32.totalorder %s113, %s115
      %p122 = scmp.eq.s32.totalorder %s21, 5
      %p123 = por %p121, %p122
      %p124 = scmp.ne.s32.totalorder %s115, %s116
      %p125 = scmp.eq.s32.totalorder %s21, 0
      %p126 = por %p124, %p125
      %p127 = scmp.ne.s32.totalorder %s115, %s116
      %p128 = scmp.eq.s32.totalorder %s22, 5
      %p129 = por %p127, %p128
      %p131 = scmp.ne.s32.totalorder %s116, %s130
      %p132 = scmp.eq.s32.totalorder %s22, 0
      %p133 = por %p131, %p132
      %s135 = sadd.s32 %s134, 1
      %p138 = scmp.eq.s32.totalorder %s16, 5
      %p139 = scmp.ne.s32.totalorder %s134, %s136
      %p140 = scmp.eq.s32.totalorder %s16, 0
      %p141 = por %p139, %p140
      %p142 = scmp.ne.s32.totalorder %s134, %s136
      %p143 = scmp.eq.s32.totalorder %s21, 5
      %p144 = por %p142, %p143
      %p145 = scmp.ne.s32.totalorder %s136, %s137
      %p146 = scmp.eq.s32.totalorder %s21, 0
      %p147 = por %p145, %p146
      %p148 = scmp.ne.s32.totalorder %s136, %s137
      %p149 = scmp.eq.s32.totalorder %s22, 5
      %p150 = por %p148, %p149
      %p152 = scmp.ne.s32.totalorder %s137, %s151
      %p153 = scmp.eq.s32.totalorder %s22, 0
      %p154 = por %p152, %p153
      %s156 = sadd.s32 %s155, 1
      %p159 = scmp.eq.s32.totalorder %s16, 5
      %p160 = scmp.ne.s32.totalorder %s155, %s157
      %p161 = scmp.eq.s32.totalorder %s16, 0
      %p162 = por %p160, %p161
      %p163 = scmp.ne.s32.totalorder %s155, %s157
      %p164 = scmp.eq.s32.totalorder %s21, 5
      %p165 = por %p163, %p164
      %p166 = scmp.ne.s32.totalorder %s157, %s158
      %p167 = scmp.eq.s32.totalorder %s21, 0
      %p168 = por %p166, %p167
      %p169 = scmp.ne.s32.totalorder %s157, %s158
      %p170 = scmp.eq.s32.totalorder %s22, 5
      %p171 = por %p169, %p170
      %p173 = scmp.ne.s32.totalorder %s158, %s172
      %p174 = scmp.eq.s32.totalorder %s22, 0
      %p175 = por %p173, %p174
      %p176 = scmp.le.s32.totalorder 1, %s16
      %p177 = scmp.lt.s32.totalorder %s16, 7
      %p178 = pnand %p176, %p177
      %p179 = pneg %p178
      // Predicated region
      $region9: #{qnetwork_forward.1} parent=5 // pred_check
        _
      $region10: #{qnetwork_forward.1} parent=5 // pred_check_branch
        %181 = sbr.rel (%p178) target = $region12
      $region11: #{qnetwork_forward.1} parent=5 // pred_region
        %s182 = ssub.s32 %s16, 1
        // Predicated region
        $region13: #{qnetwork_forward.1} parent=11 // pred_check
          %p183 = pneg %p37
        $region14: #{qnetwork_forward.1} parent=11 // pred_check_branch
          %185 = sbr.rel (%p183) target = $region16
        $region15: #{qnetwork_forward.1} parent=11 // pred_region
          _
        $region16: #{qnetwork_forward.1} parent=11 // pred_fallthru
          _
        // Predicated region
        $region17: #{qnetwork_forward.1} parent=11 // pred_check
          %p186 = pneg %p58
        $region18: #{qnetwork_forward.1} parent=11 // pred_check_branch
          %188 = sbr.rel (%p186) target = $region20
        $region19: #{qnetwork_forward.1} parent=11 // pred_region
          %190 = vsyncadd [#allocation8], 0
          %s191 = sshll.u32 %s1, 4
          %s192 = int_to_ptr.hbm [resolvable:$true] %s191
          %s193 = sshll.u32 [#allocation7], 4
          %s194 = int_to_ptr.vmem [resolvable:$true] %s193
          %199 = dma.hbm_to_vmem [thread:$0]  %s192, 7168, %s194, [#allocation8], 64, 64, 4
        $region20: #{qnetwork_forward.1} parent=11 // pred_fallthru
          _
        // Predicated region
        $region21: #{qnetwork_forward.1} parent=11 // pred_check
          %p200 = pneg %p79
        $region22: #{qnetwork_forward.1} parent=11 // pred_check_branch
          %202 = sbr.rel (%p200) target = $region24
        $region23: #{qnetwork_forward.1} parent=11 // pred_region
          %204 = vsyncadd [#allocation11], 0
          %s206 = sshll.u32 %s2, 4
          %s207 = int_to_ptr.hbm [resolvable:$true] %s206
          %s208 = sshll.u32 [#allocation10], 4
          %s209 = int_to_ptr.vmem [resolvable:$true] %s208
          %211 = dma.hbm_to_vmem [thread:$0]  %s207, 256, %s209, [#allocation11]
        $region24: #{qnetwork_forward.1} parent=11 // pred_fallthru
          _
        // Predicated region
        $region25: #{qnetwork_forward.1} parent=11 // pred_check
          %p212 = pneg %p126
        $region26: #{qnetwork_forward.1} parent=11 // pred_check_branch
          %214 = sbr.rel (%p212) target = $region28
        $region27: #{qnetwork_forward.1} parent=11 // pred_region
          %216 = vsyncadd [#allocation11], 0
          %s217 = sshll.u32 %s4, 4
          %s218 = int_to_ptr.hbm [resolvable:$true] %s217
          %s219 = sshll.u32 [#allocation13], 4
          %s220 = int_to_ptr.vmem [resolvable:$true] %s219
          %225 = dma.hbm_to_vmem [thread:$0]  %s218, 2048, %s220, [#allocation11], 64, 64, 4
        $region28: #{qnetwork_forward.1} parent=11 // pred_fallthru
          _
        // Predicated region
        $region29: #{qnetwork_forward.1} parent=11 // pred_check
          %p226 = pneg %p147
        $region30: #{qnetwork_forward.1} parent=11 // pred_check_branch
          %228 = sbr.rel (%p226) target = $region32
        $region31: #{qnetwork_forward.1} parent=11 // pred_region
          %230 = vsyncadd [#allocation15], 0
          %s231 = sshll.u32 %s5, 4
          %s232 = int_to_ptr.hbm [resolvable:$true] %s231
          %s233 = sshll.u32 [#allocation14], 4
          %s234 = int_to_ptr.vmem [resolvable:$true] %s233
          %239 = dma.hbm_to_vmem [thread:$0]  %s232, 1024, %s234, [#allocation15], 64, 64, 4
        $region32: #{qnetwork_forward.1} parent=11 // pred_fallthru
          _
      $region12: #{qnetwork_forward.1} parent=5 // pred_fallthru
        _
      %p240 = scmp.lt.s32.totalorder %s16, 6
      // Predicated region
      $region33: #{qnetwork_forward.1} parent=5 // pred_check
        %p241 = pneg %p240
      $region34: #{qnetwork_forward.1} parent=5 // pred_check_branch
        %243 = sbr.rel (%p241) target = $region36
      $region35: #{qnetwork_forward.1} parent=5 // pred_region
        // Predicated region
        $region37: #{qnetwork_forward.1} parent=35 // pred_check
          %p244 = pneg %p99
        $region38: #{qnetwork_forward.1} parent=35 // pred_check_branch
          %246 = sbr.rel (%p244) target = $region40
        $region39: #{qnetwork_forward.1} parent=35 // pred_region
          %s247 = sand.u32 %s16, 1
          %s248 = scalar_lea.sflag [#allocation8], %s247
          %s249 = sand.u32 %s89, 1
          %s250 = smul.addr %s249, 896
          %s251 = scalar_lea.vmem [#allocation12], %s250
          %s252 = smul.u32 7, %s16
          %254 = vsyncadd %s248, 0
          %s255 = smul.addr %s252, 32
          %s256 = smul.addr %s255, 4
          %s257 = scalar_lea.hbm %s3, %s256
          %s258 = sshll.u32 %s257, 4
          %s259 = int_to_ptr.hbm [resolvable:$true] %s258
          %s260 = sshll.u32 %s251, 4
          %s261 = int_to_ptr.vmem [resolvable:$true] %s260
          %266 = dma.hbm_to_vmem [thread:$0]  %s259, 14336, %s261, %s248, 128, 128, 8
        $region40: #{qnetwork_forward.1} parent=35 // pred_fallthru
          _
      $region36: #{qnetwork_forward.1} parent=5 // pred_fallthru
        _
      %p267 = scmp.le.s32.totalorder 1, %s16
      %p268 = scmp.lt.s32.totalorder %s16, 7
      %p269 = pnand %p267, %p268
      %p270 = pneg %p269
      // Predicated region
      $region41: #{qnetwork_forward.1} parent=5 // pred_check
        _
      $region42: #{qnetwork_forward.1} parent=5 // pred_check_branch
        %272 = sbr.rel (%p269) target = $region44
      $region43: #{qnetwork_forward.1} parent=5 // pred_region
        %s273 = ssub.s32 %s16, 1
        // Predicated region
        $region45: #{qnetwork_forward.1} parent=43 // pred_check
          %p274 = pneg %p58
        $region46: #{qnetwork_forward.1} parent=43 // pred_check_branch
          %276 = sbr.rel (%p274) target = $region48
        $region47: #{qnetwork_forward.1} parent=43 // pred_region
          %278 = dma.done [#allocation8], 7168
        $region48: #{qnetwork_forward.1} parent=43 // pred_fallthru
          _
        // Predicated region
        $region49: #{qnetwork_forward.1} parent=43 // pred_check
          %p279 = pneg %p79
        $region50: #{qnetwork_forward.1} parent=43 // pred_check_branch
          %281 = sbr.rel (%p279) target = $region52
        $region51: #{qnetwork_forward.1} parent=43 // pred_region
          %283 = dma.done [#allocation11], 256
        $region52: #{qnetwork_forward.1} parent=43 // pred_fallthru
          _
        %s284 = sand.u32 %s21, 1
        %s285 = scalar_lea.sflag [#allocation8], %s284
        %s286 = sand.u32 %s92, 1
        %s287 = smul.addr %s286, 896
        %s288 = scalar_lea.vmem [#allocation12], %s287
        // Predicated region
        $region53: #{qnetwork_forward.1} parent=43 // pred_check
          %p289 = pneg %p105
        $region54: #{qnetwork_forward.1} parent=43 // pred_check_branch
          %291 = sbr.rel (%p289) target = $region56
        $region55: #{qnetwork_forward.1} parent=43 // pred_region
          %293 = dma.done %s285, 14336
        $region56: #{qnetwork_forward.1} parent=43 // pred_fallthru
          _
        // Predicated region
        $region57: #{qnetwork_forward.1} parent=43 // pred_check
          %p294 = pneg %p126
        $region58: #{qnetwork_forward.1} parent=43 // pred_check_branch
          %296 = sbr.rel (%p294) target = $region60
        $region59: #{qnetwork_forward.1} parent=43 // pred_region
          %298 = dma.done [#allocation11], 2048
        $region60: #{qnetwork_forward.1} parent=43 // pred_fallthru
          _
        // Predicated region
        $region61: #{qnetwork_forward.1} parent=43 // pred_check
          %p299 = pneg %p147
        $region62: #{qnetwork_forward.1} parent=43 // pred_check_branch
          %301 = sbr.rel (%p299) target = $region64
        $region63: #{qnetwork_forward.1} parent=43 // pred_region
          %303 = dma.done [#allocation15], 1024
        $region64: #{qnetwork_forward.1} parent=43 // pred_fallthru
          _
        %p304 = pneg %p37
        %p305 = pneg %p34
        %p306 = pneg %p58
        %p307 = pneg %p55
        %p308 = pneg %p79
        %p309 = pneg %p76
        %s310 = sand.u32 %s21, 1
        %s311 = scalar_lea.sflag [#allocation8], %s310
        %s312 = sand.u32 %s92, 1
        %s313 = smul.addr %s312, 896
        %s314 = scalar_lea.vmem [#allocation12], %s313
        %p315 = pneg %p105
        %p316 = pneg %p102
        %p317 = pneg %p126
        %p318 = pneg %p123
        %p319 = pneg %p147
        %p320 = pneg %p144
        %p321 = pneg %p168
        %p322 = pneg %p165
        %s323 = smul.u32 7, %s21
        %p325 = scmp.eq.s32.totalorder %s21, 0
        // Predicated region
        $region65: #{qnetwork_forward.1} parent=43 // pred_check
          %p326 = pneg %p325
        $region66: #{qnetwork_forward.1} parent=43 // pred_check_branch
          %328 = sbr.rel (%p326) target = $region68
        $region67: #{qnetwork_forward.1} parent=43 // pred_region
          %v329 = vlaneseq
          %v330 = vshrl.u32 %v329, 7
          %v331 = vadd.s32 %v330, 8
          %v332 = vadd.s32 %v330, 16
          %v333 = vadd.s32 %v330, 24
          %v334 = vadd.s32 %v330, 32
          %v335 = vadd.s32 %v330, 40
          %v336 = vadd.s32 %v330, 48
          %v337 = vadd.s32 %v330, 56
          %v338 = vadd.s32 %v330, 64
          %v339 = vadd.s32 %v330, 72
          %v340 = vadd.s32 %v330, 80
          %v341 = vadd.s32 %v330, 88
          %v342 = vadd.s32 %v330, 96
          %v343 = vadd.s32 %v330, 104
          %v344 = vadd.s32 %v330, 112
          %v345 = vadd.s32 %v330, 120
          %v346 = vadd.s32 %v330, 128
          %v347 = vadd.s32 %v330, 136
          %vm348 = vcmp.ge.s32.totalorder %v330, 72
          %vm349 = vcmp.ge.s32.totalorder %v331, 72
          %vm350 = vcmp.ge.s32.totalorder %v332, 72
          %vm351 = vcmp.ge.s32.totalorder %v333, 72
          %vm352 = vcmp.ge.s32.totalorder %v334, 72
          %vm353 = vcmp.ge.s32.totalorder %v335, 72
          %vm354 = vcmp.ge.s32.totalorder %v336, 72
          %vm355 = vcmp.ge.s32.totalorder %v337, 72
          %vm356 = vcmp.ge.s32.totalorder %v338, 72
          %vm357 = vcmp.ge.s32.totalorder %v339, 72
          %vm358 = vcmp.ge.s32.totalorder %v340, 72
          %vm359 = vcmp.ge.s32.totalorder %v341, 72
          %vm360 = vcmp.ge.s32.totalorder %v342, 72
          %vm361 = vcmp.ge.s32.totalorder %v343, 72
          %vm362 = vcmp.ge.s32.totalorder %v344, 72
          %vm363 = vcmp.ge.s32.totalorder %v345, 72
          %vm364 = vcmp.ge.s32.totalorder %v346, 72
          %vm365 = vcmp.ge.s32.totalorder %v347, 72
          %v366 = vsub.s32 %v330, 72
          %v367 = vsub.s32 %v331, 72
          %v368 = vsub.s32 %v332, 72
          %v369 = vsub.s32 %v333, 72
          %v370 = vsub.s32 %v334, 72
          %v371 = vsub.s32 %v335, 72
          %v372 = vsub.s32 %v336, 72
          %v373 = vsub.s32 %v337, 72
          %v374 = vsub.s32 %v338, 72
          %v375 = vsub.s32 %v340, 72
          %v376 = vsub.s32 %v341, 72
          %v377 = vsub.s32 %v342, 72
          %v378 = vsub.s32 %v343, 72
          %v379 = vsub.s32 %v344, 72
          %v380 = vsub.s32 %v345, 72
          %v381 = vsub.s32 %v346, 72
          %v382 = vsub.s32 %v347, 72
          %v383 = vsel %vm348, %v366, %v330
          %v384 = vsel %vm349, %v367, %v331
          %v385 = vsel %vm350, %v368, %v332
          %v386 = vsel %vm351, %v369, %v333
          %v387 = vsel %vm352, %v370, %v334
          %v388 = vsel %vm353, %v371, %v335
          %v389 = vsel %vm354, %v372, %v336
          %v390 = vsel %vm355, %v373, %v337
          %v391 = vsel %vm356, %v374, %v338
          %v392 = vsel %vm357, %v330, %v339
          %v393 = vsel %vm358, %v375, %v340
          %v394 = vsel %vm359, %v376, %v341
          %v395 = vsel %vm360, %v377, %v342
          %v396 = vsel %vm361, %v378, %v343
          %v397 = vsel %vm362, %v379, %v344
          %v398 = vsel %vm363, %v380, %v345
          %v399 = vsel %vm364, %v381, %v346
          %v400 = vsel %vm365, %v382, %v347
          %vm401 = vcmp.ge.s32.totalorder %v383, 9
          %vm402 = vcmp.ge.s32.totalorder %v384, 9
          %vm403 = vcmp.ge.s32.totalorder %v385, 9
          %vm404 = vcmp.ge.s32.totalorder %v386, 9
          %vm405 = vcmp.ge.s32.totalorder %v387, 9
          %vm406 = vcmp.ge.s32.totalorder %v388, 9
          %vm407 = vcmp.ge.s32.totalorder %v389, 9
          %vm408 = vcmp.ge.s32.totalorder %v390, 9
          %vm409 = vcmp.ge.s32.totalorder %v391, 9
          %vm410 = vcmp.ge.s32.totalorder %v392, 9
          %vm411 = vcmp.ge.s32.totalorder %v393, 9
          %vm412 = vcmp.ge.s32.totalorder %v394, 9
          %vm413 = vcmp.ge.s32.totalorder %v395, 9
          %vm414 = vcmp.ge.s32.totalorder %v396, 9
          %vm415 = vcmp.ge.s32.totalorder %v397, 9
          %vm416 = vcmp.ge.s32.totalorder %v398, 9
          %vm417 = vcmp.ge.s32.totalorder %v399, 9
          %vm418 = vcmp.ge.s32.totalorder %v400, 9
          %v419 = vsel %vm401, 1, 0
          %v420 = vsel %vm402, 1, 0
          %v421 = vsel %vm403, 1, 0
          %v422 = vsel %vm404, 1, 0
          %v423 = vsel %vm405, 1, 0
          %v424 = vsel %vm406, 1, 0
          %v425 = vsel %vm407, 1, 0
          %v426 = vsel %vm408, 1, 0
          %v427 = vsel %vm409, 1, 0
          %v428 = vsel %vm410, 1, 0
          %v429 = vsel %vm411, 1, 0
          %v430 = vsel %vm412, 1, 0
          %v431 = vsel %vm413, 1, 0
          %v432 = vsel %vm414, 1, 0
          %v433 = vsel %vm415, 1, 0
          %v434 = vsel %vm416, 1, 0
          %v435 = vsel %vm417, 1, 0
          %v436 = vsel %vm418, 1, 0
          %vm437 = vcmp.ge.s32.totalorder %v383, 18
          %vm438 = vcmp.ge.s32.totalorder %v384, 18
          %vm439 = vcmp.ge.s32.totalorder %v385, 18
          %vm440 = vcmp.ge.s32.totalorder %v386, 18
          %vm441 = vcmp.ge.s32.totalorder %v387, 18
          %vm442 = vcmp.ge.s32.totalorder %v388, 18
          %vm443 = vcmp.ge.s32.totalorder %v389, 18
          %vm444 = vcmp.ge.s32.totalorder %v390, 18
          %vm445 = vcmp.ge.s32.totalorder %v391, 18
          %vm446 = vcmp.ge.s32.totalorder %v392, 18
          %vm447 = vcmp.ge.s32.totalorder %v393, 18
          %vm448 = vcmp.ge.s32.totalorder %v394, 18
          %vm449 = vcmp.ge.s32.totalorder %v395, 18
          %vm450 = vcmp.ge.s32.totalorder %v396, 18
          %vm451 = vcmp.ge.s32.totalorder %v397, 18
          %vm452 = vcmp.ge.s32.totalorder %v398, 18
          %vm453 = vcmp.ge.s32.totalorder %v399, 18
          %vm454 = vcmp.ge.s32.totalorder %v400, 18
          %v455 = vsel %vm437, 1, 0
          %v456 = vsel %vm438, 1, 0
          %v457 = vsel %vm439, 1, 0
          %v458 = vsel %vm440, 1, 0
          %v459 = vsel %vm441, 1, 0
          %v460 = vsel %vm442, 1, 0
          %v461 = vsel %vm443, 1, 0
          %v462 = vsel %vm444, 1, 0
          %v463 = vsel %vm445, 1, 0
          %v464 = vsel %vm446, 1, 0
          %v465 = vsel %vm447, 1, 0
          %v466 = vsel %vm448, 1, 0
          %v467 = vsel %vm449, 1, 0
          %v468 = vsel %vm450, 1, 0
          %v469 = vsel %vm451, 1, 0
          %v470 = vsel %vm452, 1, 0
          %v471 = vsel %vm453, 1, 0
          %v472 = vsel %vm454, 1, 0
          %v473 = vadd.s32 %v419, %v455
          %v474 = vadd.s32 %v420, %v456
          %v475 = vadd.s32 %v421, %v457
          %v476 = vadd.s32 %v422, %v458
          %v477 = vadd.s32 %v423, %v459
          %v478 = vadd.s32 %v424, %v460
          %v479 = vadd.s32 %v425, %v461
          %v480 = vadd.s32 %v426, %v462
          %v481 = vadd.s32 %v427, %v463
          %v482 = vadd.s32 %v428, %v464
          %v483 = vadd.s32 %v429, %v465
          %v484 = vadd.s32 %v430, %v466
          %v485 = vadd.s32 %v431, %v467
          %v486 = vadd.s32 %v432, %v468
          %v487 = vadd.s32 %v433, %v469
          %v488 = vadd.s32 %v434, %v470
          %v489 = vadd.s32 %v435, %v471
          %v490 = vadd.s32 %v436, %v472
          %vm491 = vcmp.ge.s32.totalorder %v383, 27
          %vm492 = vcmp.ge.s32.totalorder %v384, 27
          %vm493 = vcmp.ge.s32.totalorder %v385, 27
          %vm494 = vcmp.ge.s32.totalorder %v386, 27
          %vm495 = vcmp.ge.s32.totalorder %v387, 27
          %vm496 = vcmp.ge.s32.totalorder %v388, 27
          %vm497 = vcmp.ge.s32.totalorder %v389, 27
          %vm498 = vcmp.ge.s32.totalorder %v390, 27
          %vm499 = vcmp.ge.s32.totalorder %v391, 27
          %vm500 = vcmp.ge.s32.totalorder %v392, 27
          %vm501 = vcmp.ge.s32.totalorder %v393, 27
          %vm502 = vcmp.ge.s32.totalorder %v394, 27
          %vm503 = vcmp.ge.s32.totalorder %v395, 27
          %vm504 = vcmp.ge.s32.totalorder %v396, 27
          %vm505 = vcmp.ge.s32.totalorder %v397, 27
          %vm506 = vcmp.ge.s32.totalorder %v398, 27
          %vm507 = vcmp.ge.s32.totalorder %v399, 27
          %vm508 = vcmp.ge.s32.totalorder %v400, 27
          %v509 = vsel %vm491, 1, 0
          %v510 = vsel %vm492, 1, 0
          %v511 = vsel %vm493, 1, 0
          %v512 = vsel %vm494, 1, 0
          %v513 = vsel %vm495, 1, 0
          %v514 = vsel %vm496, 1, 0
          %v515 = vsel %vm497, 1, 0
          %v516 = vsel %vm498, 1, 0
          %v517 = vsel %vm499, 1, 0
          %v518 = vsel %vm500, 1, 0
          %v519 = vsel %vm501, 1, 0
          %v520 = vsel %vm502, 1, 0
          %v521 = vsel %vm503, 1, 0
          %v522 = vsel %vm504, 1, 0
          %v523 = vsel %vm505, 1, 0
          %v524 = vsel %vm506, 1, 0
          %v525 = vsel %vm507, 1, 0
          %v526 = vsel %vm508, 1, 0
          %v527 = vadd.s32 %v473, %v509
          %v528 = vadd.s32 %v474, %v510
          %v529 = vadd.s32 %v475, %v511
          %v530 = vadd.s32 %v476, %v512
          %v531 = vadd.s32 %v477, %v513
          %v532 = vadd.s32 %v478, %v514
          %v533 = vadd.s32 %v479, %v515
          %v534 = vadd.s32 %v480, %v516
          %v535 = vadd.s32 %v481, %v517
          %v536 = vadd.s32 %v482, %v518
          %v537 = vadd.s32 %v483, %v519
          %v538 = vadd.s32 %v484, %v520
          %v539 = vadd.s32 %v485, %v521
          %v540 = vadd.s32 %v486, %v522
          %v541 = vadd.s32 %v487, %v523
          %v542 = vadd.s32 %v488, %v524
          %v543 = vadd.s32 %v489, %v525
          %v544 = vadd.s32 %v490, %v526
          %vm545 = vcmp.ge.s32.totalorder %v383, 36
          %vm546 = vcmp.ge.s32.totalorder %v384, 36
          %vm547 = vcmp.ge.s32.totalorder %v385, 36
          %vm548 = vcmp.ge.s32.totalorder %v386, 36
          %vm549 = vcmp.ge.s32.totalorder %v387, 36
          %vm550 = vcmp.ge.s32.totalorder %v388, 36
          %vm551 = vcmp.ge.s32.totalorder %v389, 36
          %vm552 = vcmp.ge.s32.totalorder %v390, 36
          %vm553 = vcmp.ge.s32.totalorder %v391, 36
          %vm554 = vcmp.ge.s32.totalorder %v392, 36
          %vm555 = vcmp.ge.s32.totalorder %v393, 36
          %vm556 = vcmp.ge.s32.totalorder %v394, 36
          %vm557 = vcmp.ge.s32.totalorder %v395, 36
          %vm558 = vcmp.ge.s32.totalorder %v396, 36
          %vm559 = vcmp.ge.s32.totalorder %v397, 36
          %vm560 = vcmp.ge.s32.totalorder %v398, 36
          %vm561 = vcmp.ge.s32.totalorder %v399, 36
          %vm562 = vcmp.ge.s32.totalorder %v400, 36
          %v563 = vsel %vm545, 1, 0
          %v564 = vsel %vm546, 1, 0
          %v565 = vsel %vm547, 1, 0
          %v566 = vsel %vm548, 1, 0
          %v567 = vsel %vm549, 1, 0
          %v568 = vsel %vm550, 1, 0
          %v569 = vsel %vm551, 1, 0
          %v570 = vsel %vm552, 1, 0
          %v571 = vsel %vm553, 1, 0
          %v572 = vsel %vm554, 1, 0
          %v573 = vsel %vm555, 1, 0
          %v574 = vsel %vm556, 1, 0
          %v575 = vsel %vm557, 1, 0
          %v576 = vsel %vm558, 1, 0
          %v577 = vsel %vm559, 1, 0
          %v578 = vsel %vm560, 1, 0
          %v579 = vsel %vm561, 1, 0
          %v580 = vsel %vm562, 1, 0
          %v581 = vadd.s32 %v527, %v563
          %v582 = vadd.s32 %v528, %v564
          %v583 = vadd.s32 %v529, %v565
          %v584 = vadd.s32 %v530, %v566
          %v585 = vadd.s32 %v531, %v567
          %v586 = vadd.s32 %v532, %v568
          %v587 = vadd.s32 %v533, %v569
          %v588 = vadd.s32 %v534, %v570
          %v589 = vadd.s32 %v535, %v571
          %v590 = vadd.s32 %v536, %v572
          %v591 = vadd.s32 %v537, %v573
          %v592 = vadd.s32 %v538, %v574
          %v593 = vadd.s32 %v539, %v575
          %v594 = vadd.s32 %v540, %v576
          %v595 = vadd.s32 %v541, %v577
          %v596 = vadd.s32 %v542, %v578
          %v597 = vadd.s32 %v543, %v579
          %v598 = vadd.s32 %v544, %v580
          %vm599 = vcmp.ge.s32.totalorder %v383, 45
          %vm600 = vcmp.ge.s32.totalorder %v384, 45
          %vm601 = vcmp.ge.s32.totalorder %v385, 45
          %vm602 = vcmp.ge.s32.totalorder %v386, 45
          %vm603 = vcmp.ge.s32.totalorder %v387, 45
          %vm604 = vcmp.ge.s32.totalorder %v388, 45
          %vm605 = vcmp.ge.s32.totalorder %v389, 45
          %vm606 = vcmp.ge.s32.totalorder %v390, 45
          %vm607 = vcmp.ge.s32.totalorder %v391, 45
          %vm608 = vcmp.ge.s32.totalorder %v392, 45
          %vm609 = vcmp.ge.s32.totalorder %v393, 45
          %vm610 = vcmp.ge.s32.totalorder %v394, 45
          %vm611 = vcmp.ge.s32.totalorder %v395, 45
          %vm612 = vcmp.ge.s32.totalorder %v396, 45
          %vm613 = vcmp.ge.s32.totalorder %v397, 45
          %vm614 = vcmp.ge.s32.totalorder %v398, 45
          %vm615 = vcmp.ge.s32.totalorder %v399, 45
          %vm616 = vcmp.ge.s32.totalorder %v400, 45
          %v617 = vsel %vm599, 1, 0
          %v618 = vsel %vm600, 1, 0
          %v619 = vsel %vm601, 1, 0
          %v620 = vsel %vm602, 1, 0
          %v621 = vsel %vm603, 1, 0
          %v622 = vsel %vm604, 1, 0
          %v623 = vsel %vm605, 1, 0
          %v624 = vsel %vm606, 1, 0
          %v625 = vsel %vm607, 1, 0
          %v626 = vsel %vm608, 1, 0
          %v627 = vsel %vm609, 1, 0
          %v628 = vsel %vm610, 1, 0
          %v629 = vsel %vm611, 1, 0
          %v630 = vsel %vm612, 1, 0
          %v631 = vsel %vm613, 1, 0
          %v632 = vsel %vm614, 1, 0
          %v633 = vsel %vm615, 1, 0
          %v634 = vsel %vm616, 1, 0
          %v635 = vadd.s32 %v581, %v617
          %v636 = vadd.s32 %v582, %v618
          %v637 = vadd.s32 %v583, %v619
          %v638 = vadd.s32 %v584, %v620
          %v639 = vadd.s32 %v585, %v621
          %v640 = vadd.s32 %v586, %v622
          %v641 = vadd.s32 %v587, %v623
          %v642 = vadd.s32 %v588, %v624
          %v643 = vadd.s32 %v589, %v625
          %v644 = vadd.s32 %v590, %v626
          %v645 = vadd.s32 %v591, %v627
          %v646 = vadd.s32 %v592, %v628
          %v647 = vadd.s32 %v593, %v629
          %v648 = vadd.s32 %v594, %v630
          %v649 = vadd.s32 %v595, %v631
          %v650 = vadd.s32 %v596, %v632
          %v651 = vadd.s32 %v597, %v633
          %v652 = vadd.s32 %v598, %v634
          %vm653 = vcmp.ge.s32.totalorder %v383, 54
          %vm654 = vcmp.ge.s32.totalorder %v384, 54
          %vm655 = vcmp.ge.s32.totalorder %v385, 54
          %vm656 = vcmp.ge.s32.totalorder %v386, 54
          %vm657 = vcmp.ge.s32.totalorder %v387, 54
          %vm658 = vcmp.ge.s32.totalorder %v388, 54
          %vm659 = vcmp.ge.s32.totalorder %v389, 54
          %vm660 = vcmp.ge.s32.totalorder %v390, 54
          %vm661 = vcmp.ge.s32.totalorder %v391, 54
          %vm662 = vcmp.ge.s32.totalorder %v392, 54
          %vm663 = vcmp.ge.s32.totalorder %v393, 54
          %vm664 = vcmp.ge.s32.totalorder %v394, 54
          %vm665 = vcmp.ge.s32.totalorder %v395, 54
          %vm666 = vcmp.ge.s32.totalorder %v396, 54
          %vm667 = vcmp.ge.s32.totalorder %v397, 54
          %vm668 = vcmp.ge.s32.totalorder %v398, 54
          %vm669 = vcmp.ge.s32.totalorder %v399, 54
          %vm670 = vcmp.ge.s32.totalorder %v400, 54
          %v671 = vsel %vm653, 1, 0
          %v672 = vsel %vm654, 1, 0
          %v673 = vsel %vm655, 1, 0
          %v674 = vsel %vm656, 1, 0
          %v675 = vsel %vm657, 1, 0
          %v676 = vsel %vm658, 1, 0
          %v677 = vsel %vm659, 1, 0
          %v678 = vsel %vm660, 1, 0
          %v679 = vsel %vm661, 1, 0
          %v680 = vsel %vm662, 1, 0
          %v681 = vsel %vm663, 1, 0
          %v682 = vsel %vm664, 1, 0
          %v683 = vsel %vm665, 1, 0
          %v684 = vsel %vm666, 1, 0
          %v685 = vsel %vm667, 1, 0
          %v686 = vsel %vm668, 1, 0
          %v687 = vsel %vm669, 1, 0
          %v688 = vsel %vm670, 1, 0
          %v689 = vadd.s32 %v635, %v671
          %v690 = vadd.s32 %v636, %v672
          %v691 = vadd.s32 %v637, %v673
          %v692 = vadd.s32 %v638, %v674
          %v693 = vadd.s32 %v639, %v675
          %v694 = vadd.s32 %v640, %v676
          %v695 = vadd.s32 %v641, %v677
          %v696 = vadd.s32 %v642, %v678
          %v697 = vadd.s32 %v643, %v679
          %v698 = vadd.s32 %v644, %v680
          %v699 = vadd.s32 %v645, %v681
          %v700 = vadd.s32 %v646, %v682
          %v701 = vadd.s32 %v647, %v683
          %v702 = vadd.s32 %v648, %v684
          %v703 = vadd.s32 %v649, %v685
          %v704 = vadd.s32 %v650, %v686
          %v705 = vadd.s32 %v651, %v687
          %v706 = vadd.s32 %v652, %v688
          %vm707 = vcmp.ge.s32.totalorder %v383, 63
          %vm708 = vcmp.ge.s32.totalorder %v384, 63
          %vm709 = vcmp.ge.s32.totalorder %v385, 63
          %vm710 = vcmp.ge.s32.totalorder %v386, 63
          %vm711 = vcmp.ge.s32.totalorder %v387, 63
          %vm712 = vcmp.ge.s32.totalorder %v388, 63
          %vm713 = vcmp.ge.s32.totalorder %v389, 63
          %vm714 = vcmp.ge.s32.totalorder %v390, 63
          %vm715 = vcmp.ge.s32.totalorder %v391, 63
          %vm716 = vcmp.ge.s32.totalorder %v392, 63
          %vm717 = vcmp.ge.s32.totalorder %v393, 63
          %vm718 = vcmp.ge.s32.totalorder %v394, 63
          %vm719 = vcmp.ge.s32.totalorder %v395, 63
          %vm720 = vcmp.ge.s32.totalorder %v396, 63
          %vm721 = vcmp.ge.s32.totalorder %v397, 63
          %vm722 = vcmp.ge.s32.totalorder %v398, 63
          %vm723 = vcmp.ge.s32.totalorder %v399, 63
          %vm724 = vcmp.ge.s32.totalorder %v400, 63
          %v725 = vsel %vm707, 1, 0
          %v726 = vsel %vm708, 1, 0
          %v727 = vsel %vm709, 1, 0
          %v728 = vsel %vm710, 1, 0
          %v729 = vsel %vm711, 1, 0
          %v730 = vsel %vm712, 1, 0
          %v731 = vsel %vm713, 1, 0
          %v732 = vsel %vm714, 1, 0
          %v733 = vsel %vm715, 1, 0
          %v734 = vsel %vm716, 1, 0
          %v735 = vsel %vm717, 1, 0
          %v736 = vsel %vm718, 1, 0
          %v737 = vsel %vm719, 1, 0
          %v738 = vsel %vm720, 1, 0
          %v739 = vsel %vm721, 1, 0
          %v740 = vsel %vm722, 1, 0
          %v741 = vsel %vm723, 1, 0
          %v742 = vsel %vm724, 1, 0
          %v743 = vadd.s32 %v689, %v725
          %v744 = vadd.s32 %v690, %v726
          %v745 = vadd.s32 %v691, %v727
          %v746 = vadd.s32 %v692, %v728
          %v747 = vadd.s32 %v693, %v729
          %v748 = vadd.s32 %v694, %v730
          %v749 = vadd.s32 %v695, %v731
          %v750 = vadd.s32 %v696, %v732
          %v751 = vadd.s32 %v697, %v733
          %v752 = vadd.s32 %v698, %v734
          %v753 = vadd.s32 %v699, %v735
          %v754 = vadd.s32 %v700, %v736
          %v755 = vadd.s32 %v701, %v737
          %v756 = vadd.s32 %v702, %v738
          %v757 = vadd.s32 %v703, %v739
          %v758 = vadd.s32 %v704, %v740
          %v759 = vadd.s32 %v705, %v741
          %v760 = vadd.s32 %v706, %v742
          %v761 = vmul.u32 %v743, 9
          %v762 = vmul.u32 %v744, 9
          %v763 = vmul.u32 %v745, 9
          %v764 = vmul.u32 %v746, 9
          %v765 = vmul.u32 %v747, 9
          %v766 = vmul.u32 %v748, 9
          %v767 = vmul.u32 %v749, 9
          %v768 = vmul.u32 %v750, 9
          %v769 = vmul.u32 %v751, 9
          %v770 = vmul.u32 %v752, 9
          %v771 = vmul.u32 %v753, 9
          %v772 = vmul.u32 %v754, 9
          %v773 = vmul.u32 %v755, 9
          %v774 = vmul.u32 %v756, 9
          %v775 = vmul.u32 %v757, 9
          %v776 = vmul.u32 %v758, 9
          %v777 = vmul.u32 %v759, 9
          %v778 = vmul.u32 %v760, 9
          %v779 = vsub.s32 %v383, %v761
          %v780 = vsub.s32 %v384, %v762
          %v781 = vsub.s32 %v385, %v763
          %v782 = vsub.s32 %v386, %v764
          %v783 = vsub.s32 %v387, %v765
          %v784 = vsub.s32 %v388, %v766
          %v785 = vsub.s32 %v389, %v767
          %v786 = vsub.s32 %v390, %v768
          %v787 = vsub.s32 %v391, %v769
          %v788 = vsub.s32 %v392, %v770
          %v789 = vsub.s32 %v393, %v771
          %v790 = vsub.s32 %v394, %v772
          %v791 = vsub.s32 %v395, %v773
          %v792 = vsub.s32 %v396, %v774
          %v793 = vsub.s32 %v397, %v775
          %v794 = vsub.s32 %v398, %v776
          %v795 = vsub.s32 %v399, %v777
          %v796 = vsub.s32 %v400, %v778
          %vm797 = vcmp.ge.s32.totalorder %v743, 1
          %vm798 = vcmp.ge.s32.totalorder %v744, 1
          %vm799 = vcmp.ge.s32.totalorder %v745, 1
          %vm800 = vcmp.ge.s32.totalorder %v746, 1
          %vm801 = vcmp.ge.s32.totalorder %v747, 1
          %vm802 = vcmp.ge.s32.totalorder %v748, 1
          %vm803 = vcmp.ge.s32.totalorder %v749, 1
          %vm804 = vcmp.ge.s32.totalorder %v750, 1
          %vm805 = vcmp.ge.s32.totalorder %v751, 1
          %vm806 = vcmp.ge.s32.totalorder %v752, 1
          %vm807 = vcmp.ge.s32.totalorder %v753, 1
          %vm808 = vcmp.ge.s32.totalorder %v754, 1
          %vm809 = vcmp.ge.s32.totalorder %v755, 1
          %vm810 = vcmp.ge.s32.totalorder %v756, 1
          %vm811 = vcmp.ge.s32.totalorder %v757, 1
          %vm812 = vcmp.ge.s32.totalorder %v758, 1
          %vm813 = vcmp.ge.s32.totalorder %v759, 1
          %vm814 = vcmp.ge.s32.totalorder %v760, 1
          %vm815 = vcmp.le.s32.totalorder %v743, 6
          %vm816 = vcmp.le.s32.totalorder %v744, 6
          %vm817 = vcmp.le.s32.totalorder %v745, 6
          %vm818 = vcmp.le.s32.totalorder %v746, 6
          %vm819 = vcmp.le.s32.totalorder %v747, 6
          %vm820 = vcmp.le.s32.totalorder %v748, 6
          %vm821 = vcmp.le.s32.totalorder %v749, 6
          %vm822 = vcmp.le.s32.totalorder %v750, 6
          %vm823 = vcmp.le.s32.totalorder %v751, 6
          %vm824 = vcmp.le.s32.totalorder %v752, 6
          %vm825 = vcmp.le.s32.totalorder %v753, 6
          %vm826 = vcmp.le.s32.totalorder %v754, 6
          %vm827 = vcmp.le.s32.totalorder %v755, 6
          %vm828 = vcmp.le.s32.totalorder %v756, 6
          %vm829 = vcmp.le.s32.totalorder %v757, 6
          %vm830 = vcmp.le.s32.totalorder %v758, 6
          %vm831 = vcmp.le.s32.totalorder %v759, 6
          %vm832 = vcmp.le.s32.totalorder %v760, 6
          %vm833 = vmand %vm797, %vm815
          %vm834 = vmand %vm798, %vm816
          %vm835 = vmand %vm799, %vm817
          %vm836 = vmand %vm800, %vm818
          %vm837 = vmand %vm801, %vm819
          %vm838 = vmand %vm802, %vm820
          %vm839 = vmand %vm803, %vm821
          %vm840 = vmand %vm804, %vm822
          %vm841 = vmand %vm805, %vm823
          %vm842 = vmand %vm806, %vm824
          %vm843 = vmand %vm807, %vm825
          %vm844 = vmand %vm808, %vm826
          %vm845 = vmand %vm809, %vm827
          %vm846 = vmand %vm810, %vm828
          %vm847 = vmand %vm811, %vm829
          %vm848 = vmand %vm812, %vm830
          %vm849 = vmand %vm813, %vm831
          %vm850 = vmand %vm814, %vm832
          %vm851 = vcmp.ge.s32.totalorder %v779, 1
          %vm852 = vcmp.ge.s32.totalorder %v780, 1
          %vm853 = vcmp.ge.s32.totalorder %v781, 1
          %vm854 = vcmp.ge.s32.totalorder %v782, 1
          %vm855 = vcmp.ge.s32.totalorder %v783, 1
          %vm856 = vcmp.ge.s32.totalorder %v784, 1
          %vm857 = vcmp.ge.s32.totalorder %v785, 1
          %vm858 = vcmp.ge.s32.totalorder %v786, 1
          %vm859 = vcmp.ge.s32.totalorder %v787, 1
          %vm860 = vcmp.ge.s32.totalorder %v788, 1
          %vm861 = vcmp.ge.s32.totalorder %v789, 1
          %vm862 = vcmp.ge.s32.totalorder %v790, 1
          %vm863 = vcmp.ge.s32.totalorder %v791, 1
          %vm864 = vcmp.ge.s32.totalorder %v792, 1
          %vm865 = vcmp.ge.s32.totalorder %v793, 1
          %vm866 = vcmp.ge.s32.totalorder %v794, 1
          %vm867 = vcmp.ge.s32.totalorder %v795, 1
          %vm868 = vcmp.ge.s32.totalorder %v796, 1
          %vm869 = vmand %vm833, %vm851
          %vm870 = vmand %vm834, %vm852
          %vm871 = vmand %vm835, %vm853
          %vm872 = vmand %vm836, %vm854
          %vm873 = vmand %vm837, %vm855
          %vm874 = vmand %vm838, %vm856
          %vm875 = vmand %vm839, %vm857
          %vm876 = vmand %vm840, %vm858
          %vm877 = vmand %vm841, %vm859
          %vm878 = vmand %vm842, %vm860
          %vm879 = vmand %vm843, %vm861
          %vm880 = vmand %vm844, %vm862
          %vm881 = vmand %vm845, %vm863
          %vm882 = vmand %vm846, %vm864
          %vm883 = vmand %vm847, %vm865
          %vm884 = vmand %vm848, %vm866
          %vm885 = vmand %vm849, %vm867
          %vm886 = vmand %vm850, %vm868
          %vm887 = vcmp.le.s32.totalorder %v779, 7
          %vm888 = vcmp.le.s32.totalorder %v780, 7
          %vm889 = vcmp.le.s32.totalorder %v781, 7
          %vm890 = vcmp.le.s32.totalorder %v782, 7
          %vm891 = vcmp.le.s32.totalorder %v783, 7
          %vm892 = vcmp.le.s32.totalorder %v784, 7
          %vm893 = vcmp.le.s32.totalorder %v785, 7
          %vm894 = vcmp.le.s32.totalorder %v786, 7
          %vm895 = vcmp.le.s32.totalorder %v787, 7
          %vm896 = vcmp.le.s32.totalorder %v788, 7
          %vm897 = vcmp.le.s32.totalorder %v789, 7
          %vm898 = vcmp.le.s32.totalorder %v790, 7
          %vm899 = vcmp.le.s32.totalorder %v791, 7
          %vm900 = vcmp.le.s32.totalorder %v792, 7
          %vm901 = vcmp.le.s32.totalorder %v793, 7
          %vm902 = vcmp.le.s32.totalorder %v794, 7
          %vm903 = vcmp.le.s32.totalorder %v795, 7
          %vm904 = vcmp.le.s32.totalorder %v796, 7
          %vm905 = vmand %vm869, %vm887
          %vm906 = vmand %vm870, %vm888
          %vm907 = vmand %vm871, %vm889
          %vm908 = vmand %vm872, %vm890
          %vm909 = vmand %vm873, %vm891
          %vm910 = vmand %vm874, %vm892
          %vm911 = vmand %vm875, %vm893
          %vm912 = vmand %vm876, %vm894
          %vm913 = vmand %vm877, %vm895
          %vm914 = vmand %vm878, %vm896
          %vm915 = vmand %vm879, %vm897
          %vm916 = vmand %vm880, %vm898
          %vm917 = vmand %vm881, %vm899
          %vm918 = vmand %vm882, %vm900
          %vm919 = vmand %vm883, %vm901
          %vm920 = vmand %vm884, %vm902
          %vm921 = vmand %vm885, %vm903
          %vm922 = vmand %vm886, %vm904
          %v923 = vld [vmem:[%s0] sm:$0xf]
          %v924 = vld [vmem:[%s0 + $0x4] sm:$0xf]
          %v925 = vld [vmem:[%s0 + $0x8] sm:$0xf]
          %v926 = vld [vmem:[%s0 + $0xc] sm:$0xf]
          %v927 = vld [vmem:[%s0 + $0x10] sm:$0xf]
          %v928 = vld [vmem:[%s0 + $0x14] sm:$0xf]
          %v929 = vld [vmem:[%s0 + $0x18] sm:$0xf]
          %v930 = vld [vmem:[%s0 + $0x1c] sm:$0xf]
          %v931 = vld [vmem:[%s0 + $0x20] sm:$0xf]
          %v932 = vld [vmem:[%s0 + $0x24] sm:$0xf]
          %v933 = vld [vmem:[%s0 + $0x28] sm:$0xf]
          %v934 = vld [vmem:[%s0 + $0x2c] sm:$0xf]
          %v935 = vld [vmem:[%s0 + $0x30] sm:$0xf]
          %v936 = vld [vmem:[%s0 + $0x34] sm:$0xf]
          %v937 = vld [vmem:[%s0 + $0x38] sm:$0xf]
          %v938 = vld [vmem:[%s0 + $0x3c] sm:$0xf]
          %v939 = vld [vmem:[%s0 + $0x40] sm:$0xf]
          %v940 = vld [vmem:[%s0 + $0x44] sm:$0xf]
          %v941 = vld [vmem:[#allocation7] sm:$0xf]
          %v942 = vld [vmem:[#allocation7 + $0x4] sm:$0xf]
          %v943 = vld [vmem:[#allocation7 + $0x8] sm:$0xf]
          %v944 = vld [vmem:[#allocation7 + $0xc] sm:$0xf]
          %v945 = vld [vmem:[#allocation10] ss:$0 sm:$0xff]
          %v964 = vunpack.c.l.b16 %v923
          %v965 = vunpack.c.l.b16 %v924
          %v966 = vunpack.c.l.b16 %v925
          %v967 = vunpack.c.l.b16 %v926
          %v968 = vunpack.c.l.b16 %v927
          %v969 = vunpack.c.l.b16 %v928
          %v970 = vunpack.c.l.b16 %v929
          %v971 = vunpack.c.l.b16 %v930
          %v972 = vunpack.c.l.b16 %v931
          %v973 = vunpack.c.l.b16 %v932
          %v974 = vunpack.c.l.b16 %v933
          %v975 = vunpack.c.l.b16 %v934
          %v976 = vunpack.c.l.b16 %v935
          %v977 = vunpack.c.l.b16 %v936
          %v978 = vunpack.c.l.b16 %v937
          %v979 = vunpack.c.l.b16 %v938
          %v980 = vunpack.c.l.b16 %v939
          %v981 = vunpack.c.l.b16 %v940
          %v982 = vpack.c.b16 %v965, %v964
          %v983 = vpack.c.b16 %v967, %v966
          %v984 = vpack.c.b16 %v969, %v968
          %v985 = vpack.c.b16 %v971, %v970
          %v986 = vpack.c.b16 %v973, %v972
          %v987 = vpack.c.b16 %v975, %v974
          %v988 = vpack.c.b16 %v977, %v976
          %v989 = vpack.c.b16 %v979, %v978
          %v990 = vpack.c.b16 %v981, %v980
          %v995 = vunpack.c.l.b16 %v941
          %v996 = vunpack.c.l.b16 %v942
          %v997 = vunpack.c.l.b16 %v943
          %v998 = vunpack.c.l.b16 %v944
          %v999 = vpack.c.b16 %v996, %v995
          %v1000 = vpack.c.b16 %v998, %v997
          %vm1003 = vcmask 261120
          %v1005 = vsel %vm1003, %v982, 0
          %v1008 = vsel %vm1003, %v983, 0
          %v1011 = vsel %vm1003, %v984, 0
          %v1014 = vsel %vm1003, %v985, 0
          %v1017 = vsel %vm1003, %v986, 0
          %v1020 = vsel %vm1003, %v987, 0
          %v1023 = vsel %vm1003, %v988, 0
          %v1026 = vsel %vm1003, %v989, 0
          %v1029 = vsel %vm1003, %v990, 0
          %1031 = vmatpush.bf16.msra.mxu0 0
          %1032 = vmatpush.bf16.msra.mxu0 0
          %1033 = vmatpush.bf16.msra.mxu0 0
          %1034 = vmatpush.bf16.msra.mxu0 0
          %1035 = vmatpush.bf16.msra.mxu0 0
          %1036 = vmatpush.bf16.msra.mxu0 0
          %1037 = vmatpush.bf16.msra.mxu0 %v1000
          %1038 = vmatpush.bf16.msra.mxu0 %v999
          %1039 = vmatmul.bf16.gmra.mxu0 %v1005
          %v1040 = vpop.f32.mrf.mxu0
          %v1041 = vadd.f32 %v945, %v1040
          %v1042 = vpop.f32.mrf.mxu0
          %v1043 = vadd.f32 %v945, %v1042
          %1044 = vmatmul.bf16.gmra.mxu0 %v1008
          %v1045 = vpop.f32.mrf.mxu0
          %v1046 = vadd.f32 %v945, %v1045
          %v1047 = vpop.f32.mrf.mxu0
          %v1048 = vadd.f32 %v945, %v1047
          %1049 = vmatmul.bf16.gmra.mxu0 %v1011
          %v1050 = vpop.f32.mrf.mxu0
          %v1051 = vadd.f32 %v945, %v1050
          %v1052 = vpop.f32.mrf.mxu0
          %v1053 = vadd.f32 %v945, %v1052
          %1054 = vmatmul.bf16.gmra.mxu0 %v1014
          %v1055 = vpop.f32.mrf.mxu0
          %v1056 = vadd.f32 %v945, %v1055
          %v1057 = vpop.f32.mrf.mxu0
          %v1058 = vadd.f32 %v945, %v1057
          %1059 = vmatmul.bf16.gmra.mxu0 %v1017
          %v1060 = vpop.f32.mrf.mxu0
          %v1061 = vadd.f32 %v945, %v1060
          %v1062 = vpop.f32.mrf.mxu0
          %v1063 = vadd.f32 %v945, %v1062
          %1064 = vmatmul.bf16.gmra.mxu0 %v1020
          %v1065 = vpop.f32.mrf.mxu0
          %v1066 = vadd.f32 %v945, %v1065
          %v1067 = vpop.f32.mrf.mxu0
          %v1068 = vadd.f32 %v945, %v1067
          %1069 = vmatmul.bf16.gmra.mxu0 %v1023
          %v1070 = vpop.f32.mrf.mxu0
          %v1071 = vadd.f32 %v945, %v1070
          %v1072 = vpop.f32.mrf.mxu0
          %v1073 = vadd.f32 %v945, %v1072
          %1074 = vmatmul.bf16.gmra.mxu0 %v1026
          %v1075 = vpop.f32.mrf.mxu0
          %v1076 = vadd.f32 %v945, %v1075
          %v1077 = vpop.f32.mrf.mxu0
          %v1078 = vadd.f32 %v945, %v1077
          %1079 = vmatmul.bf16.gmra.mxu0 %v1029
          %v1080 = vpop.f32.mrf.mxu0
          %v1081 = vadd.f32 %v945, %v1080
          %v1082 = vpop.f32.mrf.mxu0
          %v1083 = vadd.f32 %v945, %v1082
          %1084 = vdwg.mxu0
          %v1085 = vmax.f32 %v1041, 0.0
          %v1086 = vmax.f32 %v1043, 0.0
          %v1087 = vmax.f32 %v1046, 0.0
          %v1088 = vmax.f32 %v1048, 0.0
          %v1089 = vmax.f32 %v1051, 0.0
          %v1090 = vmax.f32 %v1053, 0.0
          %v1091 = vmax.f32 %v1056, 0.0
          %v1092 = vmax.f32 %v1058, 0.0
          %v1093 = vmax.f32 %v1061, 0.0
          %v1094 = vmax.f32 %v1063, 0.0
          %v1095 = vmax.f32 %v1066, 0.0
          %v1096 = vmax.f32 %v1068, 0.0
          %v1097 = vmax.f32 %v1071, 0.0
          %v1098 = vmax.f32 %v1073, 0.0
          %v1099 = vmax.f32 %v1076, 0.0
          %v1100 = vmax.f32 %v1078, 0.0
          %v1101 = vmax.f32 %v1081, 0.0
          %v1102 = vmax.f32 %v1083, 0.0
          %v1103 = vsel %vm905, 1, 0
          %v1104 = vsel %vm906, 1, 0
          %v1105 = vsel %vm907, 1, 0
          %v1106 = vsel %vm908, 1, 0
          %v1107 = vsel %vm909, 1, 0
          %v1108 = vsel %vm910, 1, 0
          %v1109 = vsel %vm911, 1, 0
          %v1110 = vsel %vm912, 1, 0
          %v1111 = vsel %vm913, 1, 0
          %v1112 = vsel %vm914, 1, 0
          %v1113 = vsel %vm915, 1, 0
          %v1114 = vsel %vm916, 1, 0
          %v1115 = vsel %vm917, 1, 0
          %v1116 = vsel %vm918, 1, 0
          %v1117 = vsel %vm919, 1, 0
          %v1118 = vsel %vm920, 1, 0
          %v1119 = vsel %vm921, 1, 0
          %v1120 = vsel %vm922, 1, 0
          %vm1121 = vcmp.eq.s32.totalorder %v1103, 1
          %vm1122 = vcmp.eq.s32.totalorder %v1104, 1
          %vm1123 = vcmp.eq.s32.totalorder %v1105, 1
          %vm1124 = vcmp.eq.s32.totalorder %v1106, 1
          %vm1125 = vcmp.eq.s32.totalorder %v1107, 1
          %vm1126 = vcmp.eq.s32.totalorder %v1108, 1
          %vm1127 = vcmp.eq.s32.totalorder %v1109, 1
          %vm1128 = vcmp.eq.s32.totalorder %v1110, 1
          %vm1129 = vcmp.eq.s32.totalorder %v1111, 1
          %vm1130 = vcmp.eq.s32.totalorder %v1112, 1
          %vm1131 = vcmp.eq.s32.totalorder %v1113, 1
          %vm1132 = vcmp.eq.s32.totalorder %v1114, 1
          %vm1133 = vcmp.eq.s32.totalorder %v1115, 1
          %vm1134 = vcmp.eq.s32.totalorder %v1116, 1
          %vm1135 = vcmp.eq.s32.totalorder %v1117, 1
          %vm1136 = vcmp.eq.s32.totalorder %v1118, 1
          %vm1137 = vcmp.eq.s32.totalorder %v1119, 1
          %vm1138 = vcmp.eq.s32.totalorder %v1120, 1
          %v1139 = vsel %vm1121, %v1085, 0.0
          %v1140 = vsel %vm1122, %v1086, 0.0
          %v1141 = vsel %vm1123, %v1087, 0.0
          %v1142 = vsel %vm1124, %v1088, 0.0
          %v1143 = vsel %vm1125, %v1089, 0.0
          %v1144 = vsel %vm1126, %v1090, 0.0
          %v1145 = vsel %vm1127, %v1091, 0.0
          %v1146 = vsel %vm1128, %v1092, 0.0
          %v1147 = vsel %vm1129, %v1093, 0.0
          %v1148 = vsel %vm1130, %v1094, 0.0
          %v1149 = vsel %vm1131, %v1095, 0.0
          %v1150 = vsel %vm1132, %v1096, 0.0
          %v1151 = vsel %vm1133, %v1097, 0.0
          %v1152 = vsel %vm1134, %v1098, 0.0
          %v1153 = vsel %vm1135, %v1099, 0.0
          %v1154 = vsel %vm1136, %v1100, 0.0
          %v1155 = vsel %vm1137, %v1101, 0.0
          %v1156 = vsel %vm1138, %v1102, 0.0
          %v1157 = vpack.c.bf16 %v1139, %v1139
          %v1158 = vpack.c.bf16 %v1140, %v1140
          %v1159 = vpack.c.bf16 %v1141, %v1141
          %v1160 = vpack.c.bf16 %v1142, %v1142
          %v1161 = vpack.c.bf16 %v1143, %v1143
          %v1162 = vpack.c.bf16 %v1144, %v1144
          %v1163 = vpack.c.bf16 %v1145, %v1145
          %v1164 = vpack.c.bf16 %v1146, %v1146
          %v1165 = vpack.c.bf16 %v1147, %v1147
          %v1166 = vpack.c.bf16 %v1148, %v1148
          %v1167 = vpack.c.bf16 %v1149, %v1149
          %v1168 = vpack.c.bf16 %v1150, %v1150
          %v1169 = vpack.c.bf16 %v1151, %v1151
          %v1170 = vpack.c.bf16 %v1152, %v1152
          %v1171 = vpack.c.bf16 %v1153, %v1153
          %v1172 = vpack.c.bf16 %v1154, %v1154
          %v1173 = vpack.c.bf16 %v1155, %v1155
          %v1174 = vpack.c.bf16 %v1156, %v1156
          %1175 = vst [vmem:[#allocation2] sm:$0xff] 0
          %vm1176 = vcmask 257024
          %1177 = vst.msk [vmem:[#allocation2 + $0x8] sm:$0xf] %vm1176, 0
          %1178 = vst [vmem:[#allocation2 + $0xc] sm:$0xff] 0
          %1179 = vst.msk [vmem:[#allocation2 + $0x14] sm:$0xf] %vm1176, 0
          %1180 = vst [vmem:[#allocation2 + $0x18] sm:$0xff] 0
          %1181 = vst.msk [vmem:[#allocation2 + $0x20] sm:$0xf] %vm1176, 0
          %1182 = vst [vmem:[#allocation2 + $0x24] sm:$0xff] 0
          %1183 = vst.msk [vmem:[#allocation2 + $0x2c] sm:$0xf] %vm1176, 0
          %1184 = vst [vmem:[#allocation2 + $0xd8] sm:$0xff] 0
          %1185 = vst.msk [vmem:[#allocation2 + $0xe0] sm:$0xf] %vm1176, 0
          %1186 = vst [vmem:[#allocation2 + $0xe4] sm:$0xff] 0
          %1187 = vst.msk [vmem:[#allocation2 + $0xec] sm:$0xf] %vm1176, 0
          %1188 = vst [vmem:[#allocation2 + $0xf0] sm:$0xff] 0
          %1189 = vst.msk [vmem:[#allocation2 + $0xf8] sm:$0xf] %vm1176, 0
          %1190 = vst [vmem:[#allocation2 + $0xfc] sm:$0xff] 0
          %1191 = vst.msk [vmem:[#allocation2 + $0x104] sm:$0xf] %vm1176, 0
          %vm1210 = vcmask 1040384
          %vm1211 = vcmask 1044484
          %vm1212 = vmor %vm1210, %vm1211
          %v1213 = vrot.slane %v1157, 7
          %v1214 = vrot.slane %v1213, 4
          %v1215 = vrot.slane %v1158, 7
          %v1216 = vsel %vm1212, %v1214, %v1215
          %v1217 = vrot.slane %v1215, 4
          %v1218 = vrot.slane %v1159, 7
          %v1219 = vsel %vm1212, %v1217, %v1218
          %v1220 = vrot.slane %v1218, 4
          %v1221 = vrot.slane %v1160, 7
          %v1222 = vsel %vm1212, %v1220, %v1221
          %v1223 = vrot.slane %v1221, 4
          %v1224 = vrot.slane %v1161, 7
          %v1225 = vsel %vm1212, %v1223, %v1224
          %v1226 = vrot.slane %v1224, 4
          %v1227 = vrot.slane %v1162, 7
          %v1228 = vsel %vm1212, %v1226, %v1227
          %v1229 = vrot.slane %v1227, 4
          %v1230 = vrot.slane %v1163, 7
          %v1231 = vsel %vm1212, %v1229, %v1230
          %v1232 = vrot.slane %v1230, 4
          %v1233 = vrot.slane %v1164, 7
          %v1234 = vsel %vm1212, %v1232, %v1233
          %v1235 = vrot.slane %v1233, 4
          %v1236 = vrot.slane %v1165, 7
          %v1237 = vsel %vm1212, %v1235, %v1236
          %v1238 = vrot.slane %v1236, 4
          %v1239 = vrot.slane %v1166, 7
          %v1240 = vsel %vm1212, %v1238, %v1239
          %v1241 = vrot.slane %v1239, 4
          %v1242 = vrot.slane %v1167, 7
          %v1243 = vsel %vm1212, %v1241, %v1242
          %v1244 = vrot.slane %v1242, 4
          %v1245 = vrot.slane %v1168, 7
          %v1246 = vsel %vm1212, %v1244, %v1245
          %v1247 = vrot.slane %v1245, 4
          %v1248 = vrot.slane %v1169, 7
          %v1249 = vsel %vm1212, %v1247, %v1248
          %v1250 = vrot.slane %v1248, 4
          %v1251 = vrot.slane %v1170, 7
          %v1252 = vsel %vm1212, %v1250, %v1251
          %v1253 = vrot.slane %v1251, 4
          %v1254 = vrot.slane %v1171, 7
          %v1255 = vsel %vm1212, %v1253, %v1254
          %v1256 = vrot.slane %v1254, 4
          %v1257 = vrot.slane %v1172, 7
          %v1258 = vsel %vm1212, %v1256, %v1257
          %v1259 = vrot.slane %v1257, 4
          %v1260 = vrot.slane %v1173, 7
          %v1261 = vsel %vm1212, %v1259, %v1260
          %v1262 = vrot.slane %v1260, 4
          %v1263 = vrot.slane %v1174, 7
          %v1264 = vsel %vm1212, %v1262, %v1263
          %v1265 = vrot.slane %v1263, 4
          %vm1285 = vcmask 257025
          %1286 = vst.msk [vmem:[#allocation2 + $0x24] sm:$0xe] %vm1285, %v1213
          %1287 = vst.msk [vmem:[#allocation2 + $0x30] sm:$0xf] %vm1176, %v1216
          %1288 = vst.msk [vmem:[#allocation2 + $0x3c] sm:$0xf] %vm1176, %v1219
          %1289 = vst.msk [vmem:[#allocation2 + $0x48] sm:$0xf] %vm1176, %v1222
          %1290 = vst.msk [vmem:[#allocation2 + $0x54] sm:$0xf] %vm1176, %v1225
          %1291 = vst.msk [vmem:[#allocation2 + $0x60] sm:$0xf] %vm1176, %v1228
          %1292 = vst.msk [vmem:[#allocation2 + $0x6c] sm:$0xf] %vm1176, %v1231
          %1293 = vst.msk [vmem:[#allocation2 + $0x78] sm:$0xf] %vm1176, %v1234
          %1294 = vst.msk [vmem:[#allocation2 + $0x84] sm:$0xf] %vm1176, %v1237
          %1295 = vst.msk [vmem:[#allocation2 + $0x90] sm:$0xf] %vm1176, %v1240
          %1296 = vst.msk [vmem:[#allocation2 + $0x9c] sm:$0xf] %vm1176, %v1243
          %1297 = vst.msk [vmem:[#allocation2 + $0xa8] sm:$0xf] %vm1176, %v1246
          %1298 = vst.msk [vmem:[#allocation2 + $0xb4] sm:$0xf] %vm1176, %v1249
          %1299 = vst.msk [vmem:[#allocation2 + $0xc0] sm:$0xf] %vm1176, %v1252
          %1300 = vst.msk [vmem:[#allocation2 + $0xcc] sm:$0xf] %vm1176, %v1255
          %1301 = vst.msk [vmem:[#allocation2 + $0xd8] sm:$0xf] %vm1176, %v1258
          %1302 = vst.msk [vmem:[#allocation2 + $0xe4] sm:$0xf] %vm1176, %v1261
          %1303 = vst.msk [vmem:[#allocation2 + $0xf0] sm:$0xf] %vm1176, %v1264
          %vm1304 = vcmask 253952
          %1305 = vst.msk [vmem:[#allocation2 + $0xfc] sm:$0x1] %vm1304, %v1265
          %vm1306 = vsmask.f32 256
          %vm1307 = vsmask.f32 4368
          %vm1308 = vmor %vm1306, %vm1307
          %v1310 = vshrl.u32 %v1157, 16
          %v1312 = vrot.slane %v1310, 7
          %v1313 = vshll.u32 %v1157, 16
          %v1315 = vor.u32 %v1312, %v1313
          %v1316 = vrot.slane %v1312, 4
          %v1318 = vshrl.u32 %v1158, 16
          %v1320 = vrot.slane %v1318, 7
          %v1321 = vshll.u32 %v1158, 16
          %v1323 = vor.u32 %v1320, %v1321
          %v1324 = vsel %vm1308, %v1316, %v1323
          %v1325 = vrot.slane %v1320, 4
          %v1327 = vshrl.u32 %v1159, 16
          %v1329 = vrot.slane %v1327, 7
          %v1330 = vshll.u32 %v1159, 16
          %v1332 = vor.u32 %v1329, %v1330
          %v1333 = vsel %vm1308, %v1325, %v1332
          %v1334 = vrot.slane %v1329, 4
          %v1336 = vshrl.u32 %v1160, 16
          %v1338 = vrot.slane %v1336, 7
          %v1339 = vshll.u32 %v1160, 16
          %v1341 = vor.u32 %v1338, %v1339
          %v1342 = vsel %vm1308, %v1334, %v1341
          %v1343 = vrot.slane %v1338, 4
          %v1345 = vshrl.u32 %v1161, 16
          %v1347 = vrot.slane %v1345, 7
          %v1348 = vshll.u32 %v1161, 16
          %v1350 = vor.u32 %v1347, %v1348
          %v1351 = vsel %vm1308, %v1343, %v1350
          %v1352 = vrot.slane %v1347, 4
          %v1354 = vshrl.u32 %v1162, 16
          %v1356 = vrot.slane %v1354, 7
          %v1357 = vshll.u32 %v1162, 16
          %v1359 = vor.u32 %v1356, %v1357
          %v1360 = vsel %vm1308, %v1352, %v1359
          %v1361 = vrot.slane %v1356, 4
          %v1363 = vshrl.u32 %v1163, 16
          %v1365 = vrot.slane %v1363, 7
          %v1366 = vshll.u32 %v1163, 16
          %v1368 = vor.u32 %v1365, %v1366
          %v1369 = vsel %vm1308, %v1361, %v1368
          %v1370 = vrot.slane %v1365, 4
          %v1372 = vshrl.u32 %v1164, 16
          %v1374 = vrot.slane %v1372, 7
          %v1375 = vshll.u32 %v1164, 16
          %v1377 = vor.u32 %v1374, %v1375
          %v1378 = vsel %vm1308, %v1370, %v1377
          %v1379 = vrot.slane %v1374, 4
          %v1381 = vshrl.u32 %v1165, 16
          %v1383 = vrot.slane %v1381, 7
          %v1384 = vshll.u32 %v1165, 16
          %v1386 = vor.u32 %v1383, %v1384
          %v1387 = vsel %vm1308, %v1379, %v1386
          %v1388 = vrot.slane %v1383, 4
          %v1390 = vshrl.u32 %v1166, 16
          %v1392 = vrot.slane %v1390, 7
          %v1393 = vshll.u32 %v1166, 16
          %v1395 = vor.u32 %v1392, %v1393
          %v1396 = vsel %vm1308, %v1388, %v1395
          %v1397 = vrot.slane %v1392, 4
          %v1399 = vshrl.u32 %v1167, 16
          %v1401 = vrot.slane %v1399, 7
          %v1402 = vshll.u32 %v1167, 16
          %v1404 = vor.u32 %v1401, %v1402
          %v1405 = vsel %vm1308, %v1397, %v1404
          %v1406 = vrot.slane %v1401, 4
          %v1408 = vshrl.u32 %v1168, 16
          %v1410 = vrot.slane %v1408, 7
          %v1411 = vshll.u32 %v1168, 16
          %v1413 = vor.u32 %v1410, %v1411
          %v1414 = vsel %vm1308, %v1406, %v1413
          %v1415 = vrot.slane %v1410, 4
          %v1417 = vshrl.u32 %v1169, 16
          %v1419 = vrot.slane %v1417, 7
          %v1420 = vshll.u32 %v1169, 16
          %v1422 = vor.u32 %v1419, %v1420
          %v1423 = vsel %vm1308, %v1415, %v1422
          %v1424 = vrot.slane %v1419, 4
          %v1426 = vshrl.u32 %v1170, 16
          %v1428 = vrot.slane %v1426, 7
          %v1429 = vshll.u32 %v1170, 16
          %v1431 = vor.u32 %v1428, %v1429
          %v1432 = vsel %vm1308, %v1424, %v1431
          %v1433 = vrot.slane %v1428, 4
          %v1435 = vshrl.u32 %v1171, 16
          %v1437 = vrot.slane %v1435, 7
          %v1438 = vshll.u32 %v1171, 16
          %v1440 = vor.u32 %v1437, %v1438
          %v1441 = vsel %vm1308, %v1433, %v1440
          %v1442 = vrot.slane %v1437, 4
          %v1444 = vshrl.u32 %v1172, 16
          %v1446 = vrot.slane %v1444, 7
          %v1447 = vshll.u32 %v1172, 16
          %v1449 = vor.u32 %v1446, %v1447
          %v1450 = vsel %vm1308, %v1442, %v1449
          %v1451 = vrot.slane %v1446, 4
          %v1453 = vshrl.u32 %v1173, 16
          %v1455 = vrot.slane %v1453, 7
          %v1456 = vshll.u32 %v1173, 16
          %v1458 = vor.u32 %v1455, %v1456
          %v1459 = vsel %vm1308, %v1451, %v1458
          %v1460 = vrot.slane %v1455, 4
          %v1462 = vshrl.u32 %v1174, 16
          %v1464 = vrot.slane %v1462, 7
          %v1465 = vshll.u32 %v1174, 16
          %v1467 = vor.u32 %v1464, %v1465
          %v1468 = vsel %vm1308, %v1460, %v1467
          %v1469 = vrot.slane %v1464, 4
          %1470 = vrot.lane.b32.xlu0 %v1315, 32
          %v1471 = vpop.permute.xlu0 %1470
          %1472 = vrot.lane.b32.xlu0 %v1324, 32
          %v1473 = vpop.permute.xlu0 %1472
          %1474 = vrot.lane.b32.xlu0 %v1333, 32
          %v1475 = vpop.permute.xlu0 %1474
          %1476 = vrot.lane.b32.xlu0 %v1342, 32
          %v1477 = vpop.permute.xlu0 %1476
          %1478 = vrot.lane.b32.xlu0 %v1351, 32
          %v1479 = vpop.permute.xlu0 %1478
          %1480 = vrot.lane.b32.xlu0 %v1360, 32
          %v1481 = vpop.permute.xlu0 %1480
          %1482 = vrot.lane.b32.xlu0 %v1369, 32
          %v1483 = vpop.permute.xlu0 %1482
          %1484 = vrot.lane.b32.xlu0 %v1378, 32
          %v1485 = vpop.permute.xlu0 %1484
          %1486 = vrot.lane.b32.xlu0 %v1387, 32
          %v1487 = vpop.permute.xlu0 %1486
          %1488 = vrot.lane.b32.xlu0 %v1396, 32
          %v1489 = vpop.permute.xlu0 %1488
          %1490 = vrot.lane.b32.xlu0 %v1405, 32
          %v1491 = vpop.permute.xlu0 %1490
          %1492 = vrot.lane.b32.xlu0 %v1414, 32
          %v1493 = vpop.permute.xlu0 %1492
          %1494 = vrot.lane.b32.xlu0 %v1423, 32
          %v1495 = vpop.permute.xlu0 %1494
          %1496 = vrot.lane.b32.xlu0 %v1432, 32
          %v1497 = vpop.permute.xlu0 %1496
          %1498 = vrot.lane.b32.xlu0 %v1441, 32
          %v1499 = vpop.permute.xlu0 %1498
          %1500 = vrot.lane.b32.xlu0 %v1450, 32
          %v1501 = vpop.permute.xlu0 %1500
          %1502 = vrot.lane.b32.xlu0 %v1459, 32
          %v1503 = vpop.permute.xlu0 %1502
          %1504 = vrot.lane.b32.xlu0 %v1468, 32
          %v1505 = vpop.permute.xlu0 %1504
          %1506 = vrot.lane.b32.xlu0 %v1469, 32
          %v1507 = vpop.permute.xlu0 %1506
          %vm1527 = vcmask 519424
          %vm1528 = vsmask.f32 7938
          %vm1529 = vmand %vm1527, %vm1528
          %v1530 = vld [vmem:[#allocation2 + $0x24] sm:$0xf]
          %v1531 = vsel %vm1529, %v1471, %v1530
          %1532 = vst [vmem:[#allocation2 + $0x24] sm:$0xf] %v1531
          %vm1533 = vcmask 519424
          %1534 = vst.msk [vmem:[#allocation2 + $0x30] sm:$0xf] %vm1533, %v1473
          %1535 = vst.msk [vmem:[#allocation2 + $0x3c] sm:$0xf] %vm1533, %v1475
          %1536 = vst.msk [vmem:[#allocation2 + $0x48] sm:$0xf] %vm1533, %v1477
          %1537 = vst.msk [vmem:[#allocation2 + $0x54] sm:$0xf] %vm1533, %v1479
          %1538 = vst.msk [vmem:[#allocation2 + $0x60] sm:$0xf] %vm1533, %v1481
          %1539 = vst.msk [vmem:[#allocation2 + $0x6c] sm:$0xf] %vm1533, %v1483
          %1540 = vst.msk [vmem:[#allocation2 + $0x78] sm:$0xf] %vm1533, %v1485
          %1541 = vst.msk [vmem:[#allocation2 + $0x84] sm:$0xf] %vm1533, %v1487
          %1542 = vst.msk [vmem:[#allocation2 + $0x90] sm:$0xf] %vm1533, %v1489
          %1543 = vst.msk [vmem:[#allocation2 + $0x9c] sm:$0xf] %vm1533, %v1491
          %1544 = vst.msk [vmem:[#allocation2 + $0xa8] sm:$0xf] %vm1533, %v1493
          %1545 = vst.msk [vmem:[#allocation2 + $0xb4] sm:$0xf] %vm1533, %v1495
          %1546 = vst.msk [vmem:[#allocation2 + $0xc0] sm:$0xf] %vm1533, %v1497
          %1547 = vst.msk [vmem:[#allocation2 + $0xcc] sm:$0xf] %vm1533, %v1499
          %1548 = vst.msk [vmem:[#allocation2 + $0xd8] sm:$0xf] %vm1533, %v1501
          %1549 = vst.msk [vmem:[#allocation2 + $0xe4] sm:$0xf] %vm1533, %v1503
          %1550 = vst.msk [vmem:[#allocation2 + $0xf0] sm:$0xf] %vm1533, %v1505
          %vm1551 = vcmask 516352
          %vm1552 = vmand %vm1551, %vm1306
          %v1553 = vld [vmem:[#allocation2 + $0xfc] sm:$0x1]
          %v1554 = vsel %vm1552, %v1507, %v1553
          %1555 = vst [vmem:[#allocation2 + $0xfc] sm:$0x1] %v1554
          %1556 = vrot.lane.b32.xlu0 %v1157, 64
          %v1557 = vpop.permute.xlu0 %1556
          %1558 = vrot.lane.b32.xlu0 %v1158, 64
          %v1559 = vpop.permute.xlu0 %1558
          %1560 = vrot.lane.b32.xlu0 %v1159, 64
          %v1561 = vpop.permute.xlu0 %1560
          %1562 = vrot.lane.b32.xlu0 %v1160, 64
          %v1563 = vpop.permute.xlu0 %1562
          %1564 = vrot.lane.b32.xlu0 %v1161, 64
          %v1565 = vpop.permute.xlu0 %1564
          %1566 = vrot.lane.b32.xlu0 %v1162, 64
          %v1567 = vpop.permute.xlu0 %1566
          %1568 = vrot.lane.b32.xlu0 %v1163, 64
          %v1569 = vpop.permute.xlu0 %1568
          %1570 = vrot.lane.b32.xlu0 %v1164, 64
          %v1571 = vpop.permute.xlu0 %1570
          %1572 = vrot.lane.b32.xlu0 %v1165, 64
          %v1573 = vpop.permute.xlu0 %1572
          %1574 = vrot.lane.b32.xlu0 %v1166, 64
          %v1575 = vpop.permute.xlu0 %1574
          %1576 = vrot.lane.b32.xlu0 %v1167, 64
          %v1577 = vpop.permute.xlu0 %1576
          %1578 = vrot.lane.b32.xlu0 %v1168, 64
          %v1579 = vpop.permute.xlu0 %1578
          %1580 = vrot.lane.b32.xlu0 %v1169, 64
          %v1581 = vpop.permute.xlu0 %1580
          %1582 = vrot.lane.b32.xlu0 %v1170, 64
          %v1583 = vpop.permute.xlu0 %1582
          %1584 = vrot.lane.b32.xlu0 %v1171, 64
          %v1585 = vpop.permute.xlu0 %1584
          %1586 = vrot.lane.b32.xlu0 %v1172, 64
          %v1587 = vpop.permute.xlu0 %1586
          %1588 = vrot.lane.b32.xlu0 %v1173, 64
          %v1589 = vpop.permute.xlu0 %1588
          %1590 = vrot.lane.b32.xlu0 %v1174, 64
          %v1591 = vpop.permute.xlu0 %1590
          %vm1610 = vcmask 781824
          %1611 = vst.msk [vmem:[#allocation2 + $0x24] sm:$0xf] %vm1610, %v1557
          %1612 = vst.msk [vmem:[#allocation2 + $0x30] sm:$0xf] %vm1610, %v1559
          %1613 = vst.msk [vmem:[#allocation2 + $0x3c] sm:$0xf] %vm1610, %v1561
          %1614 = vst.msk [vmem:[#allocation2 + $0x48] sm:$0xf] %vm1610, %v1563
          %1615 = vst.msk [vmem:[#allocation2 + $0x54] sm:$0xf] %vm1610, %v1565
          %1616 = vst.msk [vmem:[#allocation2 + $0x60] sm:$0xf] %vm1610, %v1567
          %1617 = vst.msk [vmem:[#allocation2 + $0x6c] sm:$0xf] %vm1610, %v1569
          %1618 = vst.msk [vmem:[#allocation2 + $0x78] sm:$0xf] %vm1610, %v1571
          %1619 = vst.msk [vmem:[#allocation2 + $0x84] sm:$0xf] %vm1610, %v1573
          %1620 = vst.msk [vmem:[#allocation2 + $0x90] sm:$0xf] %vm1610, %v1575
          %1621 = vst.msk [vmem:[#allocation2 + $0x9c] sm:$0xf] %vm1610, %v1577
          %1622 = vst.msk [vmem:[#allocation2 + $0xa8] sm:$0xf] %vm1610, %v1579
          %1623 = vst.msk [vmem:[#allocation2 + $0xb4] sm:$0xf] %vm1610, %v1581
          %1624 = vst.msk [vmem:[#allocation2 + $0xc0] sm:$0xf] %vm1610, %v1583
          %1625 = vst.msk [vmem:[#allocation2 + $0xcc] sm:$0xf] %vm1610, %v1585
          %1626 = vst.msk [vmem:[#allocation2 + $0xd8] sm:$0xf] %vm1610, %v1587
          %1627 = vst.msk [vmem:[#allocation2 + $0xe4] sm:$0xf] %vm1610, %v1589
          %1628 = vst.msk [vmem:[#allocation2 + $0xf0] sm:$0xf] %vm1610, %v1591
          %1629 = vrot.lane.b32.xlu0 %v1315, 96
          %v1630 = vpop.permute.xlu0 %1629
          %1631 = vrot.lane.b32.xlu0 %v1324, 96
          %v1632 = vpop.permute.xlu0 %1631
          %1633 = vrot.lane.b32.xlu0 %v1333, 96
          %v1634 = vpop.permute.xlu0 %1633
          %1635 = vrot.lane.b32.xlu0 %v1342, 96
          %v1636 = vpop.permute.xlu0 %1635
          %1637 = vrot.lane.b32.xlu0 %v1351, 96
          %v1638 = vpop.permute.xlu0 %1637
          %1639 = vrot.lane.b32.xlu0 %v1360, 96
          %v1640 = vpop.permute.xlu0 %1639
          %1641 = vrot.lane.b32.xlu0 %v1369, 96
          %v1642 = vpop.permute.xlu0 %1641
          %1643 = vrot.lane.b32.xlu0 %v1378, 96
          %v1644 = vpop.permute.xlu0 %1643
          %1645 = vrot.lane.b32.xlu0 %v1387, 96
          %v1646 = vpop.permute.xlu0 %1645
          %1647 = vrot.lane.b32.xlu0 %v1396, 96
          %v1648 = vpop.permute.xlu0 %1647
          %1649 = vrot.lane.b32.xlu0 %v1405, 96
          %v1650 = vpop.permute.xlu0 %1649
          %1651 = vrot.lane.b32.xlu0 %v1414, 96
          %v1652 = vpop.permute.xlu0 %1651
          %1653 = vrot.lane.b32.xlu0 %v1423, 96
          %v1654 = vpop.permute.xlu0 %1653
          %1655 = vrot.lane.b32.xlu0 %v1432, 96
          %v1656 = vpop.permute.xlu0 %1655
          %1657 = vrot.lane.b32.xlu0 %v1441, 96
          %v1658 = vpop.permute.xlu0 %1657
          %1659 = vrot.lane.b32.xlu0 %v1450, 96
          %v1660 = vpop.permute.xlu0 %1659
          %1661 = vrot.lane.b32.xlu0 %v1459, 96
          %v1662 = vpop.permute.xlu0 %1661
          %1663 = vrot.lane.b32.xlu0 %v1468, 96
          %v1664 = vpop.permute.xlu0 %1663
          %1665 = vrot.lane.b32.xlu0 %v1469, 96
          %v1666 = vpop.permute.xlu0 %1665
          %vm1686 = vcmask 1044224
          %vm1687 = vmand %vm1686, %vm1528
          %v1688 = vld [vmem:[#allocation2 + $0x18] sm:$0xf]
          %v1689 = vsel %vm1687, %v1630, %v1688
          %1690 = vst [vmem:[#allocation2 + $0x18] sm:$0xf] %v1689
          %vm1691 = vcmask 1044224
          %1692 = vst.msk [vmem:[#allocation2 + $0x24] sm:$0xf] %vm1691, %v1632
          %1693 = vst.msk [vmem:[#allocation2 + $0x30] sm:$0xf] %vm1691, %v1634
          %1694 = vst.msk [vmem:[#allocation2 + $0x3c] sm:$0xf] %vm1691, %v1636
          %1695 = vst.msk [vmem:[#allocation2 + $0x48] sm:$0xf] %vm1691, %v1638
          %1696 = vst.msk [vmem:[#allocation2 + $0x54] sm:$0xf] %vm1691, %v1640
          %1697 = vst.msk [vmem:[#allocation2 + $0x60] sm:$0xf] %vm1691, %v1642
          %1698 = vst.msk [vmem:[#allocation2 + $0x6c] sm:$0xf] %vm1691, %v1644
          %1699 = vst.msk [vmem:[#allocation2 + $0x78] sm:$0xf] %vm1691, %v1646
          %1700 = vst.msk [vmem:[#allocation2 + $0x84] sm:$0xf] %vm1691, %v1648
          %1701 = vst.msk [vmem:[#allocation2 + $0x90] sm:$0xf] %vm1691, %v1650
          %1702 = vst.msk [vmem:[#allocation2 + $0x9c] sm:$0xf] %vm1691, %v1652
          %1703 = vst.msk [vmem:[#allocation2 + $0xa8] sm:$0xf] %vm1691, %v1654
          %1704 = vst.msk [vmem:[#allocation2 + $0xb4] sm:$0xf] %vm1691, %v1656
          %1705 = vst.msk [vmem:[#allocation2 + $0xc0] sm:$0xf] %vm1691, %v1658
          %1706 = vst.msk [vmem:[#allocation2 + $0xcc] sm:$0xf] %vm1691, %v1660
          %1707 = vst.msk [vmem:[#allocation2 + $0xd8] sm:$0xf] %vm1691, %v1662
          %1708 = vst.msk [vmem:[#allocation2 + $0xe4] sm:$0xf] %vm1691, %v1664
          %vm1709 = vcmask 1041152
          %vm1710 = vmand %vm1709, %vm1306
          %v1711 = vld [vmem:[#allocation2 + $0xf0] sm:$0x1]
          %v1712 = vsel %vm1710, %v1666, %v1711
          %1713 = vst [vmem:[#allocation2 + $0xf0] sm:$0x1] %v1712
          %1714 = vst.msk [vmem:[#allocation2 + $0x1c] sm:$0xf] %vm1176, %v1157
          %1715 = vst.msk [vmem:[#allocation2 + $0x28] sm:$0xf] %vm1176, %v1158
          %1716 = vst.msk [vmem:[#allocation2 + $0x34] sm:$0xf] %vm1176, %v1159
          %1717 = vst.msk [vmem:[#allocation2 + $0x40] sm:$0xf] %vm1176, %v1160
          %1718 = vst.msk [vmem:[#allocation2 + $0x4c] sm:$0xf] %vm1176, %v1161
          %1719 = vst.msk [vmem:[#allocation2 + $0x58] sm:$0xf] %vm1176, %v1162
          %1720 = vst.msk [vmem:[#allocation2 + $0x64] sm:$0xf] %vm1176, %v1163
          %1721 = vst.msk [vmem:[#allocation2 + $0x70] sm:$0xf] %vm1176, %v1164
          %1722 = vst.msk [vmem:[#allocation2 + $0x7c] sm:$0xf] %vm1176, %v1165
          %1723 = vst.msk [vmem:[#allocation2 + $0x88] sm:$0xf] %vm1176, %v1166
          %1724 = vst.msk [vmem:[#allocation2 + $0x94] sm:$0xf] %vm1176, %v1167
          %1725 = vst.msk [vmem:[#allocation2 + $0xa0] sm:$0xf] %vm1176, %v1168
          %1726 = vst.msk [vmem:[#allocation2 + $0xac] sm:$0xf] %vm1176, %v1169
          %1727 = vst.msk [vmem:[#allocation2 + $0xb8] sm:$0xf] %vm1176, %v1170
          %1728 = vst.msk [vmem:[#allocation2 + $0xc4] sm:$0xf] %vm1176, %v1171
          %1729 = vst.msk [vmem:[#allocation2 + $0xd0] sm:$0xf] %vm1176, %v1172
          %1730 = vst.msk [vmem:[#allocation2 + $0xdc] sm:$0xf] %vm1176, %v1173
          %1731 = vst.msk [vmem:[#allocation2 + $0xe8] sm:$0xf] %vm1176, %v1174
          %vm1732 = vsmask.f32 3328
          %vm1733 = vsmask.f32 7440
          %vm1734 = vmor %vm1732, %vm1733
          %v1735 = vrot.slane %v1313, 5
          %v1736 = vrot.slane %v1310, 4
          %v1737 = vor.u32 %v1736, %v1735
          %v1738 = vrot.slane %v1737, 4
          %v1739 = vrot.slane %v1321, 5
          %v1740 = vsel %vm1734, %v1738, %v1739
          %v1741 = vrot.slane %v1318, 4
          %v1742 = vor.u32 %v1741, %v1739
          %v1743 = vrot.slane %v1742, 4
          %v1744 = vrot.slane %v1330, 5
          %v1745 = vsel %vm1734, %v1743, %v1744
          %v1746 = vrot.slane %v1327, 4
          %v1747 = vor.u32 %v1746, %v1744
          %v1748 = vrot.slane %v1747, 4
          %v1749 = vrot.slane %v1339, 5
          %v1750 = vsel %vm1734, %v1748, %v1749
          %v1751 = vrot.slane %v1336, 4
          %v1752 = vor.u32 %v1751, %v1749
          %v1753 = vrot.slane %v1752, 4
          %v1754 = vrot.slane %v1348, 5
          %v1755 = vsel %vm1734, %v1753, %v1754
          %v1756 = vrot.slane %v1345, 4
          %v1757 = vor.u32 %v1756, %v1754
          %v1758 = vrot.slane %v1757, 4
          %v1759 = vrot.slane %v1357, 5
          %v1760 = vsel %vm1734, %v1758, %v1759
          %v1761 = vrot.slane %v1354, 4
          %v1762 = vor.u32 %v1761, %v1759
          %v1763 = vrot.slane %v1762, 4
          %v1764 = vrot.slane %v1366, 5
          %v1765 = vsel %vm1734, %v1763, %v1764
          %v1766 = vrot.slane %v1363, 4
          %v1767 = vor.u32 %v1766, %v1764
          %v1768 = vrot.slane %v1767, 4
          %v1769 = vrot.slane %v1375, 5
          %v1770 = vsel %vm1734, %v1768, %v1769
          %v1771 = vrot.slane %v1372, 4
          %v1772 = vor.u32 %v1771, %v1769
          %v1773 = vrot.slane %v1772, 4
          %v1774 = vrot.slane %v1384, 5
          %v1775 = vsel %vm1734, %v1773, %v1774
          %v1776 = vrot.slane %v1381, 4
          %v1777 = vor.u32 %v1776, %v1774
          %v1778 = vrot.slane %v1777, 4
          %v1779 = vrot.slane %v1393, 5
          %v1780 = vsel %vm1734, %v1778, %v1779
          %v1781 = vrot.slane %v1390, 4
          %v1782 = vor.u32 %v1781, %v1779
          %v1783 = vrot.slane %v1782, 4
          %v1784 = vrot.slane %v1402, 5
          %v1785 = vsel %vm1734, %v1783, %v1784
          %v1786 = vrot.slane %v1399, 4
          %v1787 = vor.u32 %v1786, %v1784
          %v1788 = vrot.slane %v1787, 4
          %v1789 = vrot.slane %v1411, 5
          %v1790 = vsel %vm1734, %v1788, %v1789
          %v1791 = vrot.slane %v1408, 4
          %v1792 = vor.u32 %v1791, %v1789
          %v1793 = vrot.slane %v1792, 4
          %v1794 = vrot.slane %v1420, 5
          %v1795 = vsel %vm1734, %v1793, %v1794
          %v1796 = vrot.slane %v1417, 4
          %v1797 = vor.u32 %v1796, %v1794
          %v1798 = vrot.slane %v1797, 4
          %v1799 = vrot.slane %v1429, 5
          %v1800 = vsel %vm1734, %v1798, %v1799
          %v1801 = vrot.slane %v1426, 4
          %v1802 = vor.u32 %v1801, %v1799
          %v1803 = vrot.slane %v1802, 4
          %v1804 = vrot.slane %v1438, 5
          %v1805 = vsel %vm1734, %v1803, %v1804
          %v1806 = vrot.slane %v1435, 4
          %v1807 = vor.u32 %v1806, %v1804
          %v1808 = vrot.slane %v1807, 4
          %v1809 = vrot.slane %v1447, 5
          %v1810 = vsel %vm1734, %v1808, %v1809
          %v1811 = vrot.slane %v1444, 4
          %v1812 = vor.u32 %v1811, %v1809
          %v1813 = vrot.slane %v1812, 4
          %v1814 = vrot.slane %v1456, 5
          %v1815 = vsel %vm1734, %v1813, %v1814
          %v1816 = vrot.slane %v1453, 4
          %v1817 = vor.u32 %v1816, %v1814
          %v1818 = vrot.slane %v1817, 4
          %v1819 = vrot.slane %v1465, 5
          %v1820 = vsel %vm1734, %v1818, %v1819
          %v1821 = vrot.slane %v1462, 4
          %v1822 = vor.u32 %v1821, %v1819
          %v1823 = vrot.slane %v1822, 4
          %1824 = vrot.lane.b32.xlu0 %v1735, 32
          %v1825 = vpop.permute.xlu0 %1824
          %1826 = vrot.lane.b32.xlu0 %v1740, 32
          %v1827 = vpop.permute.xlu0 %1826
          %1828 = vrot.lane.b32.xlu0 %v1745, 32
          %v1829 = vpop.permute.xlu0 %1828
          %1830 = vrot.lane.b32.xlu0 %v1750, 32
          %v1831 = vpop.permute.xlu0 %1830
          %1832 = vrot.lane.b32.xlu0 %v1755, 32
          %v1833 = vpop.permute.xlu0 %1832
          %1834 = vrot.lane.b32.xlu0 %v1760, 32
          %v1835 = vpop.permute.xlu0 %1834
          %1836 = vrot.lane.b32.xlu0 %v1765, 32
          %v1837 = vpop.permute.xlu0 %1836
          %1838 = vrot.lane.b32.xlu0 %v1770, 32
          %v1839 = vpop.permute.xlu0 %1838
          %1840 = vrot.lane.b32.xlu0 %v1775, 32
          %v1841 = vpop.permute.xlu0 %1840
          %1842 = vrot.lane.b32.xlu0 %v1780, 32
          %v1843 = vpop.permute.xlu0 %1842
          %1844 = vrot.lane.b32.xlu0 %v1785, 32
          %v1845 = vpop.permute.xlu0 %1844
          %1846 = vrot.lane.b32.xlu0 %v1790, 32
          %v1847 = vpop.permute.xlu0 %1846
          %1848 = vrot.lane.b32.xlu0 %v1795, 32
          %v1849 = vpop.permute.xlu0 %1848
          %1850 = vrot.lane.b32.xlu0 %v1800, 32
          %v1851 = vpop.permute.xlu0 %1850
          %1852 = vrot.lane.b32.xlu0 %v1805, 32
          %v1853 = vpop.permute.xlu0 %1852
          %1854 = vrot.lane.b32.xlu0 %v1810, 32
          %v1855 = vpop.permute.xlu0 %1854
          %1856 = vrot.lane.b32.xlu0 %v1815, 32
          %v1857 = vpop.permute.xlu0 %1856
          %1858 = vrot.lane.b32.xlu0 %v1820, 32
          %v1859 = vpop.permute.xlu0 %1858
          %1860 = vrot.lane.b32.xlu0 %v1823, 32
          %v1861 = vpop.permute.xlu0 %1860
          %vm1881 = vcmask 519427
          %vm1882 = vsmask.f32 7950
          %vm1883 = vmand %vm1881, %vm1882
          %v1884 = vld [vmem:[#allocation2 + $0x10] sm:$0x8]
          %v1885 = vsel %vm1883, %v1825, %v1884
          %1886 = vst [vmem:[#allocation2 + $0x10] sm:$0x8] %v1885
          %1887 = vst.msk [vmem:[#allocation2 + $0x1c] sm:$0xf] %vm1533, %v1827
          %1888 = vst.msk [vmem:[#allocation2 + $0x28] sm:$0xf] %vm1533, %v1829
          %1889 = vst.msk [vmem:[#allocation2 + $0x34] sm:$0xf] %vm1533, %v1831
          %1890 = vst.msk [vmem:[#allocation2 + $0x40] sm:$0xf] %vm1533, %v1833
          %1891 = vst.msk [vmem:[#allocation2 + $0x4c] sm:$0xf] %vm1533, %v1835
          %1892 = vst.msk [vmem:[#allocation2 + $0x58] sm:$0xf] %vm1533, %v1837
          %1893 = vst.msk [vmem:[#allocation2 + $0x64] sm:$0xf] %vm1533, %v1839
          %1894 = vst.msk [vmem:[#allocation2 + $0x70] sm:$0xf] %vm1533, %v1841
          %1895 = vst.msk [vmem:[#allocation2 + $0x7c] sm:$0xf] %vm1533, %v1843
          %1896 = vst.msk [vmem:[#allocation2 + $0x88] sm:$0xf] %vm1533, %v1845
          %1897 = vst.msk [vmem:[#allocation2 + $0x94] sm:$0xf] %vm1533, %v1847
          %1898 = vst.msk [vmem:[#allocation2 + $0xa0] sm:$0xf] %vm1533, %v1849
          %1899 = vst.msk [vmem:[#allocation2 + $0xac] sm:$0xf] %vm1533, %v1851
          %1900 = vst.msk [vmem:[#allocation2 + $0xb8] sm:$0xf] %vm1533, %v1853
          %1901 = vst.msk [vmem:[#allocation2 + $0xc4] sm:$0xf] %vm1533, %v1855
          %1902 = vst.msk [vmem:[#allocation2 + $0xd0] sm:$0xf] %vm1533, %v1857
          %1903 = vst.msk [vmem:[#allocation2 + $0xdc] sm:$0xf] %vm1533, %v1859
          %vm1904 = vmand %vm1527, %vm1732
          %v1905 = vld [vmem:[#allocation2 + $0xe8] sm:$0xf]
          %v1906 = vsel %vm1904, %v1861, %v1905
          %1907 = vst [vmem:[#allocation2 + $0xe8] sm:$0xf] %v1906
          %1908 = vst.msk [vmem:[#allocation2 + $0x10] sm:$0xf] %vm1610, %v1557
          %1909 = vst.msk [vmem:[#allocation2 + $0x1c] sm:$0xf] %vm1610, %v1559
          %1910 = vst.msk [vmem:[#allocation2 + $0x28] sm:$0xf] %vm1610, %v1561
          %1911 = vst.msk [vmem:[#allocation2 + $0x34] sm:$0xf] %vm1610, %v1563
          %1912 = vst.msk [vmem:[#allocation2 + $0x40] sm:$0xf] %vm1610, %v1565
          %1913 = vst.msk [vmem:[#allocation2 + $0x4c] sm:$0xf] %vm1610, %v1567
          %1914 = vst.msk [vmem:[#allocation2 + $0x58] sm:$0xf] %vm1610, %v1569
          %1915 = vst.msk [vmem:[#allocation2 + $0x64] sm:$0xf] %vm1610, %v1571
          %1916 = vst.msk [vmem:[#allocation2 + $0x70] sm:$0xf] %vm1610, %v1573
          %1917 = vst.msk [vmem:[#allocation2 + $0x7c] sm:$0xf] %vm1610, %v1575
          %1918 = vst.msk [vmem:[#allocation2 + $0x88] sm:$0xf] %vm1610, %v1577
          %1919 = vst.msk [vmem:[#allocation2 + $0x94] sm:$0xf] %vm1610, %v1579
          %1920 = vst.msk [vmem:[#allocation2 + $0xa0] sm:$0xf] %vm1610, %v1581
          %1921 = vst.msk [vmem:[#allocation2 + $0xac] sm:$0xf] %vm1610, %v1583
          %1922 = vst.msk [vmem:[#allocation2 + $0xb8] sm:$0xf] %vm1610, %v1585
          %1923 = vst.msk [vmem:[#allocation2 + $0xc4] sm:$0xf] %vm1610, %v1587
          %1924 = vst.msk [vmem:[#allocation2 + $0xd0] sm:$0xf] %vm1610, %v1589
          %1925 = vst.msk [vmem:[#allocation2 + $0xdc] sm:$0xf] %vm1610, %v1591
          %1926 = vrot.lane.b32.xlu0 %v1735, 96
          %v1927 = vpop.permute.xlu0 %1926
          %1928 = vrot.lane.b32.xlu0 %v1740, 96
          %v1929 = vpop.permute.xlu0 %1928
          %1930 = vrot.lane.b32.xlu0 %v1745, 96
          %v1931 = vpop.permute.xlu0 %1930
          %1932 = vrot.lane.b32.xlu0 %v1750, 96
          %v1933 = vpop.permute.xlu0 %1932
          %1934 = vrot.lane.b32.xlu0 %v1755, 96
          %v1935 = vpop.permute.xlu0 %1934
          %1936 = vrot.lane.b32.xlu0 %v1760, 96
          %v1937 = vpop.permute.xlu0 %1936
          %1938 = vrot.lane.b32.xlu0 %v1765, 96
          %v1939 = vpop.permute.xlu0 %1938
          %1940 = vrot.lane.b32.xlu0 %v1770, 96
          %v1941 = vpop.permute.xlu0 %1940
          %1942 = vrot.lane.b32.xlu0 %v1775, 96
          %v1943 = vpop.permute.xlu0 %1942
          %1944 = vrot.lane.b32.xlu0 %v1780, 96
          %v1945 = vpop.permute.xlu0 %1944
          %1946 = vrot.lane.b32.xlu0 %v1785, 96
          %v1947 = vpop.permute.xlu0 %1946
          %1948 = vrot.lane.b32.xlu0 %v1790, 96
          %v1949 = vpop.permute.xlu0 %1948
          %1950 = vrot.lane.b32.xlu0 %v1795, 96
          %v1951 = vpop.permute.xlu0 %1950
          %1952 = vrot.lane.b32.xlu0 %v1800, 96
          %v1953 = vpop.permute.xlu0 %1952
          %1954 = vrot.lane.b32.xlu0 %v1805, 96
          %v1955 = vpop.permute.xlu0 %1954
          %1956 = vrot.lane.b32.xlu0 %v1810, 96
          %v1957 = vpop.permute.xlu0 %1956
          %1958 = vrot.lane.b32.xlu0 %v1815, 96
          %v1959 = vpop.permute.xlu0 %1958
          %1960 = vrot.lane.b32.xlu0 %v1820, 96
          %v1961 = vpop.permute.xlu0 %1960
          %1962 = vrot.lane.b32.xlu0 %v1823, 96
          %v1963 = vpop.permute.xlu0 %1962
          %vm1983 = vcmask 1044227
          %vm1984 = vmand %vm1983, %vm1882
          %v1985 = vld [vmem:[#allocation2 + $0x4] sm:$0x8]
          %v1986 = vsel %vm1984, %v1927, %v1985
          %1987 = vst [vmem:[#allocation2 + $0x4] sm:$0x8] %v1986
          %1988 = vst.msk [vmem:[#allocation2 + $0x10] sm:$0xf] %vm1691, %v1929
          %1989 = vst.msk [vmem:[#allocation2 + $0x1c] sm:$0xf] %vm1691, %v1931
          %1990 = vst.msk [vmem:[#allocation2 + $0x28] sm:$0xf] %vm1691, %v1933
          %1991 = vst.msk [vmem:[#allocation2 + $0x34] sm:$0xf] %vm1691, %v1935
          %1992 = vst.msk [vmem:[#allocation2 + $0x40] sm:$0xf] %vm1691, %v1937
          %1993 = vst.msk [vmem:[#allocation2 + $0x4c] sm:$0xf] %vm1691, %v1939
          %1994 = vst.msk [vmem:[#allocation2 + $0x58] sm:$0xf] %vm1691, %v1941
          %1995 = vst.msk [vmem:[#allocation2 + $0x64] sm:$0xf] %vm1691, %v1943
          %1996 = vst.msk [vmem:[#allocation2 + $0x70] sm:$0xf] %vm1691, %v1945
          %1997 = vst.msk [vmem:[#allocation2 + $0x7c] sm:$0xf] %vm1691, %v1947
          %1998 = vst.msk [vmem:[#allocation2 + $0x88] sm:$0xf] %vm1691, %v1949
          %1999 = vst.msk [vmem:[#allocation2 + $0x94] sm:$0xf] %vm1691, %v1951
          %2000 = vst.msk [vmem:[#allocation2 + $0xa0] sm:$0xf] %vm1691, %v1953
          %2001 = vst.msk [vmem:[#allocation2 + $0xac] sm:$0xf] %vm1691, %v1955
          %2002 = vst.msk [vmem:[#allocation2 + $0xb8] sm:$0xf] %vm1691, %v1957
          %2003 = vst.msk [vmem:[#allocation2 + $0xc4] sm:$0xf] %vm1691, %v1959
          %2004 = vst.msk [vmem:[#allocation2 + $0xd0] sm:$0xf] %vm1691, %v1961
          %vm2005 = vmand %vm1686, %vm1732
          %v2006 = vld [vmem:[#allocation2 + $0xdc] sm:$0xf]
          %v2007 = vsel %vm2005, %v1963, %v2006
          %2008 = vst [vmem:[#allocation2 + $0xdc] sm:$0xf] %v2007
          %vm2009 = vcmask 1042432
          %vm2010 = vcmask 1046532
          %vm2011 = vmor %vm2009, %vm2010
          %v2012 = vrot.slane %v1157, 5
          %v2013 = vrot.slane %v2012, 4
          %v2014 = vrot.slane %v1158, 5
          %v2015 = vsel %vm2011, %v2013, %v2014
          %v2016 = vrot.slane %v2014, 4
          %v2017 = vrot.slane %v1159, 5
          %v2018 = vsel %vm2011, %v2016, %v2017
          %v2019 = vrot.slane %v2017, 4
          %v2020 = vrot.slane %v1160, 5
          %v2021 = vsel %vm2011, %v2019, %v2020
          %v2022 = vrot.slane %v2020, 4
          %v2023 = vrot.slane %v1161, 5
          %v2024 = vsel %vm2011, %v2022, %v2023
          %v2025 = vrot.slane %v2023, 4
          %v2026 = vrot.slane %v1162, 5
          %v2027 = vsel %vm2011, %v2025, %v2026
          %v2028 = vrot.slane %v2026, 4
          %v2029 = vrot.slane %v1163, 5
          %v2030 = vsel %vm2011, %v2028, %v2029
          %v2031 = vrot.slane %v2029, 4
          %v2032 = vrot.slane %v1164, 5
          %v2033 = vsel %vm2011, %v2031, %v2032
          %v2034 = vrot.slane %v2032, 4
          %v2035 = vrot.slane %v1165, 5
          %v2036 = vsel %vm2011, %v2034, %v2035
          %v2037 = vrot.slane %v2035, 4
          %v2038 = vrot.slane %v1166, 5
          %v2039 = vsel %vm2011, %v2037, %v2038
          %v2040 = vrot.slane %v2038, 4
          %v2041 = vrot.slane %v1167, 5
          %v2042 = vsel %vm2011, %v2040, %v2041
          %v2043 = vrot.slane %v2041, 4
          %v2044 = vrot.slane %v1168, 5
          %v2045 = vsel %vm2011, %v2043, %v2044
          %v2046 = vrot.slane %v2044, 4
          %v2047 = vrot.slane %v1169, 5
          %v2048 = vsel %vm2011, %v2046, %v2047
          %v2049 = vrot.slane %v2047, 4
          %v2050 = vrot.slane %v1170, 5
          %v2051 = vsel %vm2011, %v2049, %v2050
          %v2052 = vrot.slane %v2050, 4
          %v2053 = vrot.slane %v1171, 5
          %v2054 = vsel %vm2011, %v2052, %v2053
          %v2055 = vrot.slane %v2053, 4
          %v2056 = vrot.slane %v1172, 5
          %v2057 = vsel %vm2011, %v2055, %v2056
          %v2058 = vrot.slane %v2056, 4
          %v2059 = vrot.slane %v1173, 5
          %v2060 = vsel %vm2011, %v2058, %v2059
          %v2061 = vrot.slane %v2059, 4
          %v2062 = vrot.slane %v1174, 5
          %v2063 = vsel %vm2011, %v2061, %v2062
          %v2064 = vrot.slane %v2062, 4
          %vm2084 = vcmask 257027
          %2085 = vst.msk [vmem:[#allocation2 + $0x8] sm:$0x8] %vm2084, %v2012
          %2086 = vst.msk [vmem:[#allocation2 + $0x14] sm:$0xf] %vm1176, %v2015
          %2087 = vst.msk [vmem:[#allocation2 + $0x20] sm:$0xf] %vm1176, %v2018
          %2088 = vst.msk [vmem:[#allocation2 + $0x2c] sm:$0xf] %vm1176, %v2021
          %2089 = vst.msk [vmem:[#allocation2 + $0x38] sm:$0xf] %vm1176, %v2024
          %2090 = vst.msk [vmem:[#allocation2 + $0x44] sm:$0xf] %vm1176, %v2027
          %2091 = vst.msk [vmem:[#allocation2 + $0x50] sm:$0xf] %vm1176, %v2030
          %2092 = vst.msk [vmem:[#allocation2 + $0x5c] sm:$0xf] %vm1176, %v2033
          %2093 = vst.msk [vmem:[#allocation2 + $0x68] sm:$0xf] %vm1176, %v2036
          %2094 = vst.msk [vmem:[#allocation2 + $0x74] sm:$0xf] %vm1176, %v2039
          %2095 = vst.msk [vmem:[#allocation2 + $0x80] sm:$0xf] %vm1176, %v2042
          %2096 = vst.msk [vmem:[#allocation2 + $0x8c] sm:$0xf] %vm1176, %v2045
          %2097 = vst.msk [vmem:[#allocation2 + $0x98] sm:$0xf] %vm1176, %v2048
          %2098 = vst.msk [vmem:[#allocation2 + $0xa4] sm:$0xf] %vm1176, %v2051
          %2099 = vst.msk [vmem:[#allocation2 + $0xb0] sm:$0xf] %vm1176, %v2054
          %2100 = vst.msk [vmem:[#allocation2 + $0xbc] sm:$0xf] %vm1176, %v2057
          %2101 = vst.msk [vmem:[#allocation2 + $0xc8] sm:$0xf] %vm1176, %v2060
          %2102 = vst.msk [vmem:[#allocation2 + $0xd4] sm:$0xf] %vm1176, %v2063
          %vm2103 = vcmask 256000
          %2104 = vst.msk [vmem:[#allocation2 + $0xe0] sm:$0x7] %vm2103, %v2064
          %v2105 = vld [vmem:[#allocation2 + $0x18] sm:$0xff]
          %v2106 = vld [vmem:[#allocation2 + $0x20] sm:$0xf]
          %v2107 = vld [vmem:[#allocation2 + $0x24] sm:$0xff]
          %v2108 = vld [vmem:[#allocation2 + $0x2c] sm:$0xf]
          %v2109 = vld [vmem:[#allocation2 + $0x30] sm:$0xff]
          %v2110 = vld [vmem:[#allocation2 + $0x38] sm:$0xf]
          %v2111 = vld [vmem:[#allocation2 + $0x3c] sm:$0xff]
          %v2112 = vld [vmem:[#allocation2 + $0x44] sm:$0xf]
          %v2113 = vld [vmem:[#allocation2 + $0x48] sm:$0xff]
          %v2114 = vld [vmem:[#allocation2 + $0x50] sm:$0xf]
          %v2115 = vld [vmem:[#allocation2 + $0x54] sm:$0xff]
          %v2116 = vld [vmem:[#allocation2 + $0x5c] sm:$0xf]
          %v2117 = vld [vmem:[#allocation2 + $0x60] sm:$0xff]
          %v2118 = vld [vmem:[#allocation2 + $0x68] sm:$0xf]
          %v2119 = vld [vmem:[#allocation2 + $0x6c] sm:$0xff]
          %v2120 = vld [vmem:[#allocation2 + $0x74] sm:$0xf]
          %v2121 = vld [vmem:[#allocation2 + $0x78] sm:$0xff]
          %v2122 = vld [vmem:[#allocation2 + $0x80] sm:$0xf]
          %v2123 = vld [vmem:[#allocation2 + $0x84] sm:$0xff]
          %v2124 = vld [vmem:[#allocation2 + $0x8c] sm:$0xf]
          %v2125 = vld [vmem:[#allocation2 + $0x90] sm:$0xff]
          %v2126 = vld [vmem:[#allocation2 + $0x98] sm:$0xf]
          %v2127 = vld [vmem:[#allocation2 + $0x9c] sm:$0xff]
          %v2128 = vld [vmem:[#allocation2 + $0xa4] sm:$0xf]
          %v2129 = vld [vmem:[#allocation2 + $0xa8] sm:$0xff]
          %v2130 = vld [vmem:[#allocation2 + $0xb0] sm:$0xf]
          %v2131 = vld [vmem:[#allocation2 + $0xb4] sm:$0xff]
          %v2132 = vld [vmem:[#allocation2 + $0xbc] sm:$0xf]
          %v2133 = vld [vmem:[#allocation2 + $0xc0] sm:$0xff]
          %v2134 = vld [vmem:[#allocation2 + $0xc8] sm:$0xf]
          %v2135 = vld [vmem:[#allocation2 + $0xcc] sm:$0xff]
          %v2136 = vld [vmem:[#allocation2 + $0xd4] sm:$0xf]
          %v2137 = vld [vmem:[#allocation2 + $0xd8] sm:$0xff]
          %v2138 = vld [vmem:[#allocation2 + $0xe0] sm:$0xf]
          %v2139 = vld [vmem:[#allocation2 + $0xe4] sm:$0xff]
          %v2140 = vld [vmem:[#allocation2 + $0xec] sm:$0xf]
          %v2141 = vld [vmem:[#allocation7 + $0x10] sm:$0xf]
          %v2142 = vld [vmem:[#allocation7 + $0x14] sm:$0xf]
          %v2143 = vld [vmem:[#allocation7 + $0x18] sm:$0xf]
          %v2144 = vld [vmem:[#allocation7 + $0x1c] sm:$0xf]
          %v2145 = vld [vmem:[#allocation7 + $0x20] sm:$0xf]
          %v2146 = vld [vmem:[#allocation7 + $0x24] sm:$0xf]
          %v2147 = vld [vmem:[#allocation7 + $0x28] sm:$0xf]
          %v2148 = vld [vmem:[#allocation7 + $0x2c] sm:$0xf]
          %v2149 = vld [vmem:[#allocation7 + $0x30] sm:$0xf]
          %v2150 = vld [vmem:[#allocation7 + $0x34] sm:$0xf]
          %v2151 = vld [vmem:[#allocation7 + $0x38] sm:$0xf]
          %v2152 = vld [vmem:[#allocation7 + $0x3c] sm:$0xf]
          %v2153 = vld [vmem:[#allocation7 + $0x40] sm:$0xf]
          %v2154 = vld [vmem:[#allocation7 + $0x44] sm:$0xf]
          %v2155 = vld [vmem:[#allocation7 + $0x48] sm:$0xf]
          %v2156 = vld [vmem:[#allocation7 + $0x4c] sm:$0xf]
          %v2157 = vld [vmem:[#allocation7 + $0x50] sm:$0xf]
          %v2158 = vld [vmem:[#allocation7 + $0x54] sm:$0xf]
          %v2159 = vld [vmem:[#allocation7 + $0x58] sm:$0xf]
          %v2160 = vld [vmem:[#allocation7 + $0x5c] sm:$0xf]
          %v2161 = vld [vmem:[#allocation7 + $0x60] sm:$0xf]
          %v2162 = vld [vmem:[#allocation7 + $0x64] sm:$0xf]
          %v2163 = vld [vmem:[#allocation7 + $0x68] sm:$0xf]
          %v2164 = vld [vmem:[#allocation7 + $0x6c] sm:$0xf]
          %v2165 = vld [vmem:[#allocation7 + $0x70] sm:$0xf]
          %v2166 = vld [vmem:[#allocation7 + $0x74] sm:$0xf]
          %v2167 = vld [vmem:[#allocation7 + $0x78] sm:$0xf]
          %v2168 = vld [vmem:[#allocation7 + $0x7c] sm:$0xf]
          %v2169 = vld [vmem:[#allocation7 + $0x80] sm:$0xf]
          %v2170 = vld [vmem:[#allocation7 + $0x84] sm:$0xf]
          %v2171 = vld [vmem:[#allocation7 + $0x88] sm:$0xf]
          %v2172 = vld [vmem:[#allocation7 + $0x8c] sm:$0xf]
          %v2173 = vld [vmem:[#allocation7 + $0x90] sm:$0xf]
          %v2174 = vld [vmem:[#allocation7 + $0x94] sm:$0xf]
          %v2175 = vld [vmem:[#allocation7 + $0x98] sm:$0xf]
          %v2176 = vld [vmem:[#allocation7 + $0x9c] sm:$0xf]
          %v2177 = vld [vmem:[#allocation10 + $0x1] ss:$0 sm:$0xff]
          %v2214 = vunpack.c.l.b16 %v2105
          %v2215 = vunpack.c.h.b16 %v2105
          %v2216 = vunpack.c.l.b16 %v2106
          %v2217 = vunpack.c.l.b16 %v2107
          %v2218 = vunpack.c.h.b16 %v2107
          %v2219 = vunpack.c.l.b16 %v2108
          %v2220 = vunpack.c.l.b16 %v2109
          %v2221 = vunpack.c.h.b16 %v2109
          %v2222 = vunpack.c.l.b16 %v2110
          %v2223 = vunpack.c.l.b16 %v2111
          %v2224 = vunpack.c.h.b16 %v2111
          %v2225 = vunpack.c.l.b16 %v2112
          %v2226 = vunpack.c.l.b16 %v2113
          %v2227 = vunpack.c.h.b16 %v2113
          %v2228 = vunpack.c.l.b16 %v2114
          %v2229 = vunpack.c.l.b16 %v2115
          %v2230 = vunpack.c.h.b16 %v2115
          %v2231 = vunpack.c.l.b16 %v2116
          %v2232 = vunpack.c.l.b16 %v2117
          %v2233 = vunpack.c.h.b16 %v2117
          %v2234 = vunpack.c.l.b16 %v2118
          %v2235 = vunpack.c.l.b16 %v2119
          %v2236 = vunpack.c.h.b16 %v2119
          %v2237 = vunpack.c.l.b16 %v2120
          %v2238 = vunpack.c.l.b16 %v2121
          %v2239 = vunpack.c.h.b16 %v2121
          %v2240 = vunpack.c.l.b16 %v2122
          %v2241 = vunpack.c.l.b16 %v2123
          %v2242 = vunpack.c.h.b16 %v2123
          %v2243 = vunpack.c.l.b16 %v2124
          %v2244 = vunpack.c.l.b16 %v2125
          %v2245 = vunpack.c.h.b16 %v2125
          %v2246 = vunpack.c.l.b16 %v2126
          %v2247 = vunpack.c.l.b16 %v2127
          %v2248 = vunpack.c.h.b16 %v2127
          %v2249 = vunpack.c.l.b16 %v2128
          %v2250 = vunpack.c.l.b16 %v2129
          %v2251 = vunpack.c.h.b16 %v2129
          %v2252 = vunpack.c.l.b16 %v2130
          %v2253 = vunpack.c.l.b16 %v2131
          %v2254 = vunpack.c.h.b16 %v2131
          %v2255 = vunpack.c.l.b16 %v2132
          %v2256 = vunpack.c.l.b16 %v2133
          %v2257 = vunpack.c.h.b16 %v2133
          %v2258 = vunpack.c.l.b16 %v2134
          %v2259 = vunpack.c.l.b16 %v2135
          %v2260 = vunpack.c.h.b16 %v2135
          %v2261 = vunpack.c.l.b16 %v2136
          %v2262 = vunpack.c.l.b16 %v2137
          %v2263 = vunpack.c.h.b16 %v2137
          %v2264 = vunpack.c.l.b16 %v2138
          %v2265 = vunpack.c.l.b16 %v2139
          %v2266 = vunpack.c.h.b16 %v2139
          %v2267 = vunpack.c.l.b16 %v2140
          %v2268 = vpack.c.b16 %v2217, %v2214
          %v2269 = vpack.c.b16 %v2218, %v2215
          %v2270 = vpack.c.b16 %v2219, %v2216
          %v2271 = vpack.c.b16 %v2223, %v2220
          %v2272 = vpack.c.b16 %v2224, %v2221
          %v2273 = vpack.c.b16 %v2225, %v2222
          %v2274 = vpack.c.b16 %v2229, %v2226
          %v2275 = vpack.c.b16 %v2230, %v2227
          %v2276 = vpack.c.b16 %v2231, %v2228
          %v2277 = vpack.c.b16 %v2235, %v2232
          %v2278 = vpack.c.b16 %v2236, %v2233
          %v2279 = vpack.c.b16 %v2237, %v2234
          %v2280 = vpack.c.b16 %v2241, %v2238
          %v2281 = vpack.c.b16 %v2242, %v2239
          %v2282 = vpack.c.b16 %v2243, %v2240
          %v2283 = vpack.c.b16 %v2247, %v2244
          %v2284 = vpack.c.b16 %v2248, %v2245
          %v2285 = vpack.c.b16 %v2249, %v2246
          %v2286 = vpack.c.b16 %v2253, %v2250
          %v2287 = vpack.c.b16 %v2254, %v2251
          %v2288 = vpack.c.b16 %v2255, %v2252
          %v2289 = vpack.c.b16 %v2259, %v2256
          %v2290 = vpack.c.b16 %v2260, %v2257
          %v2291 = vpack.c.b16 %v2261, %v2258
          %v2292 = vpack.c.b16 %v2265, %v2262
          %v2293 = vpack.c.b16 %v2266, %v2263
          %v2294 = vpack.c.b16 %v2267, %v2264
          %v2349 = vunpack.c.l.b16 %v2141
          %v2350 = vunpack.c.l.b16 %v2142
          %v2351 = vunpack.c.l.b16 %v2143
          %v2352 = vunpack.c.l.b16 %v2144
          %v2353 = vunpack.c.l.b16 %v2145
          %v2354 = vunpack.c.l.b16 %v2146
          %v2355 = vunpack.c.l.b16 %v2147
          %v2356 = vunpack.c.l.b16 %v2148
          %v2357 = vunpack.c.l.b16 %v2149
          %v2358 = vunpack.c.l.b16 %v2150
          %v2359 = vunpack.c.l.b16 %v2151
          %v2360 = vunpack.c.l.b16 %v2152
          %v2361 = vunpack.c.l.b16 %v2153
          %v2362 = vunpack.c.l.b16 %v2154
          %v2363 = vunpack.c.l.b16 %v2155
          %v2364 = vunpack.c.l.b16 %v2156
          %v2365 = vunpack.c.l.b16 %v2157
          %v2366 = vunpack.c.l.b16 %v2158
          %v2367 = vunpack.c.l.b16 %v2159
          %v2368 = vunpack.c.l.b16 %v2160
          %v2369 = vunpack.c.l.b16 %v2161
          %v2370 = vunpack.c.l.b16 %v2162
          %v2371 = vunpack.c.l.b16 %v2163
          %v2372 = vunpack.c.l.b16 %v2164
          %v2373 = vunpack.c.l.b16 %v2165
          %v2374 = vunpack.c.l.b16 %v2166
          %v2375 = vunpack.c.l.b16 %v2167
          %v2376 = vunpack.c.l.b16 %v2168
          %v2377 = vunpack.c.l.b16 %v2169
          %v2378 = vunpack.c.l.b16 %v2170
          %v2379 = vunpack.c.l.b16 %v2171
          %v2380 = vunpack.c.l.b16 %v2172
          %v2381 = vunpack.c.l.b16 %v2173
          %v2382 = vunpack.c.l.b16 %v2174
          %v2383 = vunpack.c.l.b16 %v2175
          %v2384 = vunpack.c.l.b16 %v2176
          %v2385 = vpack.c.b16 %v2350, %v2349
          %v2386 = vpack.c.b16 %v2352, %v2351
          %v2387 = vpack.c.b16 %v2354, %v2353
          %v2388 = vpack.c.b16 %v2356, %v2355
          %v2389 = vpack.c.b16 %v2358, %v2357
          %v2390 = vpack.c.b16 %v2360, %v2359
          %v2391 = vpack.c.b16 %v2362, %v2361
          %v2392 = vpack.c.b16 %v2364, %v2363
          %v2393 = vpack.c.b16 %v2366, %v2365
          %v2394 = vpack.c.b16 %v2368, %v2367
          %v2395 = vpack.c.b16 %v2370, %v2369
          %v2396 = vpack.c.b16 %v2372, %v2371
          %v2397 = vpack.c.b16 %v2374, %v2373
          %v2398 = vpack.c.b16 %v2376, %v2375
          %v2399 = vpack.c.b16 %v2378, %v2377
          %v2400 = vpack.c.b16 %v2380, %v2379
          %v2401 = vpack.c.b16 %v2382, %v2381
          %v2402 = vpack.c.b16 %v2384, %v2383
          %v2422 = vsel %vm1003, %v2270, 0
          %v2425 = vsel %vm1003, %v2273, 0
          %v2428 = vsel %vm1003, %v2276, 0
          %v2431 = vsel %vm1003, %v2279, 0
          %v2434 = vsel %vm1003, %v2282, 0
          %v2437 = vsel %vm1003, %v2285, 0
          %v2440 = vsel %vm1003, %v2288, 0
          %v2443 = vsel %vm1003, %v2291, 0
          %v2446 = vsel %vm1003, %v2294, 0
          %2448 = vmatpush.bf16.msra.mxu0 %v2392
          %2449 = vmatpush.bf16.msra.mxu0 %v2391
          %2450 = vmatpush.bf16.msra.mxu0 %v2390
          %2451 = vmatpush.bf16.msra.mxu0 %v2389
          %2452 = vmatpush.bf16.msra.mxu0 %v2388
          %2453 = vmatpush.bf16.msra.mxu0 %v2387
          %2454 = vmatpush.bf16.msra.mxu0 %v2386
          %2455 = vmatpush.bf16.msra.mxu0 %v2385
          %2456 = vmatmul.bf16.gmra.mxu0 %v2268
          %v2457 = vpop.f32.mrf.mxu0
          %v2458 = vadd.f32 %v2177, %v2457
          %v2459 = vpop.f32.mrf.mxu0
          %v2460 = vadd.f32 %v2177, %v2459
          %2461 = vmatmul.bf16.gmra.mxu0 %v2271
          %v2462 = vpop.f32.mrf.mxu0
          %v2463 = vadd.f32 %v2177, %v2462
          %v2464 = vpop.f32.mrf.mxu0
          %v2465 = vadd.f32 %v2177, %v2464
          %2466 = vmatmul.bf16.gmra.mxu0 %v2274
          %v2467 = vpop.f32.mrf.mxu0
          %v2468 = vadd.f32 %v2177, %v2467
          %v2469 = vpop.f32.mrf.mxu0
          %v2470 = vadd.f32 %v2177, %v2469
          %2471 = vmatmul.bf16.gmra.mxu0 %v2277
          %v2472 = vpop.f32.mrf.mxu0
          %v2473 = vadd.f32 %v2177, %v2472
          %v2474 = vpop.f32.mrf.mxu0
          %v2475 = vadd.f32 %v2177, %v2474
          %2476 = vmatmul.bf16.gmra.mxu0 %v2280
          %v2477 = vpop.f32.mrf.mxu0
          %v2478 = vadd.f32 %v2177, %v2477
          %v2479 = vpop.f32.mrf.mxu0
          %v2480 = vadd.f32 %v2177, %v2479
          %2481 = vmatmul.bf16.gmra.mxu0 %v2283
          %v2482 = vpop.f32.mrf.mxu0
          %v2483 = vadd.f32 %v2177, %v2482
          %v2484 = vpop.f32.mrf.mxu0
          %v2485 = vadd.f32 %v2177, %v2484
          %2486 = vmatmul.bf16.gmra.mxu0 %v2286
          %v2487 = vpop.f32.mrf.mxu0
          %v2488 = vadd.f32 %v2177, %v2487
          %v2489 = vpop.f32.mrf.mxu0
          %v2490 = vadd.f32 %v2177, %v2489
          %2491 = vmatmul.bf16.gmra.mxu0 %v2289
          %v2492 = vpop.f32.mrf.mxu0
          %v2493 = vadd.f32 %v2177, %v2492
          %v2494 = vpop.f32.mrf.mxu0
          %v2495 = vadd.f32 %v2177, %v2494
          %2496 = vmatmul.bf16.gmra.mxu0 %v2292
          %v2497 = vpop.f32.mrf.mxu0
          %v2498 = vadd.f32 %v2177, %v2497
          %v2499 = vpop.f32.mrf.mxu0
          %v2500 = vadd.f32 %v2177, %v2499
          %2501 = vdwg.mxu0
          %2502 = vmatpush.bf16.msra.mxu0 %v2400
          %2503 = vmatpush.bf16.msra.mxu0 %v2399
          %2504 = vmatpush.bf16.msra.mxu0 %v2398
          %2505 = vmatpush.bf16.msra.mxu0 %v2397
          %2506 = vmatpush.bf16.msra.mxu0 %v2396
          %2507 = vmatpush.bf16.msra.mxu0 %v2395
          %2508 = vmatpush.bf16.msra.mxu0 %v2394
          %2509 = vmatpush.bf16.msra.mxu0 %v2393
          %2510 = vmatmul.bf16.gmra.mxu0 %v2269
          %v2511 = vpop.f32.mrf.mxu0
          %v2512 = vadd.f32 %v2458, %v2511
          %v2513 = vpop.f32.mrf.mxu0
          %v2514 = vadd.f32 %v2460, %v2513
          %2515 = vmatmul.bf16.gmra.mxu0 %v2272
          %v2516 = vpop.f32.mrf.mxu0
          %v2517 = vadd.f32 %v2463, %v2516
          %v2518 = vpop.f32.mrf.mxu0
          %v2519 = vadd.f32 %v2465, %v2518
          %2520 = vmatmul.bf16.gmra.mxu0 %v2275
          %v2521 = vpop.f32.mrf.mxu0
          %v2522 = vadd.f32 %v2468, %v2521
          %v2523 = vpop.f32.mrf.mxu0
          %v2524 = vadd.f32 %v2470, %v2523
          %2525 = vmatmul.bf16.gmra.mxu0 %v2278
          %v2526 = vpop.f32.mrf.mxu0
          %v2527 = vadd.f32 %v2473, %v2526
          %v2528 = vpop.f32.mrf.mxu0
          %v2529 = vadd.f32 %v2475, %v2528
          %2530 = vmatmul.bf16.gmra.mxu0 %v2281
          %v2531 = vpop.f32.mrf.mxu0
          %v2532 = vadd.f32 %v2478, %v2531
          %v2533 = vpop.f32.mrf.mxu0
          %v2534 = vadd.f32 %v2480, %v2533
          %2535 = vmatmul.bf16.gmra.mxu0 %v2284
          %v2536 = vpop.f32.mrf.mxu0
          %v2537 = vadd.f32 %v2483, %v2536
          %v2538 = vpop.f32.mrf.mxu0
          %v2539 = vadd.f32 %v2485, %v2538
          %2540 = vmatmul.bf16.gmra.mxu0 %v2287
          %v2541 = vpop.f32.mrf.mxu0
          %v2542 = vadd.f32 %v2488, %v2541
          %v2543 = vpop.f32.mrf.mxu0
          %v2544 = vadd.f32 %v2490, %v2543
          %2545 = vmatmul.bf16.gmra.mxu0 %v2290
          %v2546 = vpop.f32.mrf.mxu0
          %v2547 = vadd.f32 %v2493, %v2546
          %v2548 = vpop.f32.mrf.mxu0
          %v2549 = vadd.f32 %v2495, %v2548
          %2550 = vmatmul.bf16.gmra.mxu0 %v2293
          %v2551 = vpop.f32.mrf.mxu0
          %v2552 = vadd.f32 %v2498, %v2551
          %v2553 = vpop.f32.mrf.mxu0
          %v2554 = vadd.f32 %v2500, %v2553
          %2555 = vdwg.mxu0
          %2556 = vmatpush.bf16.msra.mxu0 0
          %2557 = vmatpush.bf16.msra.mxu0 0
          %2558 = vmatpush.bf16.msra.mxu0 0
          %2559 = vmatpush.bf16.msra.mxu0 0
          %2560 = vmatpush.bf16.msra.mxu0 0
          %2561 = vmatpush.bf16.msra.mxu0 0
          %2562 = vmatpush.bf16.msra.mxu0 %v2402
          %2563 = vmatpush.bf16.msra.mxu0 %v2401
          %2564 = vmatmul.bf16.gmra.mxu0 %v2422
          %v2565 = vpop.f32.mrf.mxu0
          %v2566 = vadd.f32 %v2512, %v2565
          %v2567 = vpop.f32.mrf.mxu0
          %v2568 = vadd.f32 %v2514, %v2567
          %2569 = vmatmul.bf16.gmra.mxu0 %v2425
          %v2570 = vpop.f32.mrf.mxu0
          %v2571 = vadd.f32 %v2517, %v2570
          %v2572 = vpop.f32.mrf.mxu0
          %v2573 = vadd.f32 %v2519, %v2572
          %2574 = vmatmul.bf16.gmra.mxu0 %v2428
          %v2575 = vpop.f32.mrf.mxu0
          %v2576 = vadd.f32 %v2522, %v2575
          %v2577 = vpop.f32.mrf.mxu0
          %v2578 = vadd.f32 %v2524, %v2577
          %2579 = vmatmul.bf16.gmra.mxu0 %v2431
          %v2580 = vpop.f32.mrf.mxu0
          %v2581 = vadd.f32 %v2527, %v2580
          %v2582 = vpop.f32.mrf.mxu0
          %v2583 = vadd.f32 %v2529, %v2582
          %2584 = vmatmul.bf16.gmra.mxu0 %v2434
          %v2585 = vpop.f32.mrf.mxu0
          %v2586 = vadd.f32 %v2532, %v2585
          %v2587 = vpop.f32.mrf.mxu0
          %v2588 = vadd.f32 %v2534, %v2587
          %2589 = vmatmul.bf16.gmra.mxu0 %v2437
          %v2590 = vpop.f32.mrf.mxu0
          %v2591 = vadd.f32 %v2537, %v2590
          %v2592 = vpop.f32.mrf.mxu0
          %v2593 = vadd.f32 %v2539, %v2592
          %2594 = vmatmul.bf16.gmra.mxu0 %v2440
          %v2595 = vpop.f32.mrf.mxu0
          %v2596 = vadd.f32 %v2542, %v2595
          %v2597 = vpop.f32.mrf.mxu0
          %v2598 = vadd.f32 %v2544, %v2597
          %2599 = vmatmul.bf16.gmra.mxu0 %v2443
          %v2600 = vpop.f32.mrf.mxu0
          %v2601 = vadd.f32 %v2547, %v2600
          %v2602 = vpop.f32.mrf.mxu0
          %v2603 = vadd.f32 %v2549, %v2602
          %2604 = vmatmul.bf16.gmra.mxu0 %v2446
          %v2605 = vpop.f32.mrf.mxu0
          %v2606 = vadd.f32 %v2552, %v2605
          %v2607 = vpop.f32.mrf.mxu0
          %v2608 = vadd.f32 %v2554, %v2607
          %2609 = vdwg.mxu0
          %v2610 = vmax.f32 %v2566, 0.0
          %v2611 = vmax.f32 %v2568, 0.0
          %v2612 = vmax.f32 %v2571, 0.0
          %v2613 = vmax.f32 %v2573, 0.0
          %v2614 = vmax.f32 %v2576, 0.0
          %v2615 = vmax.f32 %v2578, 0.0
          %v2616 = vmax.f32 %v2581, 0.0
          %v2617 = vmax.f32 %v2583, 0.0
          %v2618 = vmax.f32 %v2586, 0.0
          %v2619 = vmax.f32 %v2588, 0.0
          %v2620 = vmax.f32 %v2591, 0.0
          %v2621 = vmax.f32 %v2593, 0.0
          %v2622 = vmax.f32 %v2596, 0.0
          %v2623 = vmax.f32 %v2598, 0.0
          %v2624 = vmax.f32 %v2601, 0.0
          %v2625 = vmax.f32 %v2603, 0.0
          %v2626 = vmax.f32 %v2606, 0.0
          %v2627 = vmax.f32 %v2608, 0.0
          %v2628 = vsel %vm1121, %v2610, 0.0
          %v2629 = vsel %vm1122, %v2611, 0.0
          %v2630 = vsel %vm1123, %v2612, 0.0
          %v2631 = vsel %vm1124, %v2613, 0.0
          %v2632 = vsel %vm1125, %v2614, 0.0
          %v2633 = vsel %vm1126, %v2615, 0.0
          %v2634 = vsel %vm1127, %v2616, 0.0
          %v2635 = vsel %vm1128, %v2617, 0.0
          %v2636 = vsel %vm1129, %v2618, 0.0
          %v2637 = vsel %vm1130, %v2619, 0.0
          %v2638 = vsel %vm1131, %v2620, 0.0
          %v2639 = vsel %vm1132, %v2621, 0.0
          %v2640 = vsel %vm1133, %v2622, 0.0
          %v2641 = vsel %vm1134, %v2623, 0.0
          %v2642 = vsel %vm1135, %v2624, 0.0
          %v2643 = vsel %vm1136, %v2625, 0.0
          %v2644 = vsel %vm1137, %v2626, 0.0
          %v2645 = vsel %vm1138, %v2627, 0.0
          %v2646 = vpack.c.bf16 %v2628, %v2628
          %v2647 = vpack.c.bf16 %v2629, %v2629
          %v2648 = vpack.c.bf16 %v2630, %v2630
          %v2649 = vpack.c.bf16 %v2631, %v2631
          %v2650 = vpack.c.bf16 %v2632, %v2632
          %v2651 = vpack.c.bf16 %v2633, %v2633
          %v2652 = vpack.c.bf16 %v2634, %v2634
          %v2653 = vpack.c.bf16 %v2635, %v2635
          %v2654 = vpack.c.bf16 %v2636, %v2636
          %v2655 = vpack.c.bf16 %v2637, %v2637
          %v2656 = vpack.c.bf16 %v2638, %v2638
          %v2657 = vpack.c.bf16 %v2639, %v2639
          %v2658 = vpack.c.bf16 %v2640, %v2640
          %v2659 = vpack.c.bf16 %v2641, %v2641
          %v2660 = vpack.c.bf16 %v2642, %v2642
          %v2661 = vpack.c.bf16 %v2643, %v2643
          %v2662 = vpack.c.bf16 %v2644, %v2644
          %v2663 = vpack.c.bf16 %v2645, %v2645
          %2664 = vst [vmem:[#allocation3] sm:$0xff] 0
          %2665 = vst [vmem:[#allocation3 + $0x8] sm:$0xff] 0
          %vm2666 = vcmask 519168
          %2667 = vst.msk [vmem:[#allocation3 + $0x10] sm:$0xf] %vm2666, 0
          %2668 = vst [vmem:[#allocation3 + $0x14] sm:$0xff] 0
          %2669 = vst [vmem:[#allocation3 + $0x1c] sm:$0xff] 0
          %2670 = vst.msk [vmem:[#allocation3 + $0x24] sm:$0xf] %vm2666, 0
          %2671 = vst [vmem:[#allocation3 + $0x28] sm:$0xff] 0
          %2672 = vst [vmem:[#allocation3 + $0x30] sm:$0xff] 0
          %2673 = vst.msk [vmem:[#allocation3 + $0x38] sm:$0xf] %vm2666, 0
          %2674 = vst [vmem:[#allocation3 + $0x3c] sm:$0xff] 0
          %2675 = vst [vmem:[#allocation3 + $0x44] sm:$0xff] 0
          %2676 = vst.msk [vmem:[#allocation3 + $0x4c] sm:$0xf] %vm2666, 0
          %2677 = vst [vmem:[#allocation3 + $0x168] sm:$0xff] 0
          %2678 = vst [vmem:[#allocation3 + $0x170] sm:$0xff] 0
          %2679 = vst.msk [vmem:[#allocation3 + $0x178] sm:$0xf] %vm2666, 0
          %2680 = vst [vmem:[#allocation3 + $0x17c] sm:$0xff] 0
          %2681 = vst [vmem:[#allocation3 + $0x184] sm:$0xff] 0
          %2682 = vst.msk [vmem:[#allocation3 + $0x18c] sm:$0xf] %vm2666, 0
          %2683 = vst [vmem:[#allocation3 + $0x190] sm:$0xff] 0
          %2684 = vst [vmem:[#allocation3 + $0x198] sm:$0xff] 0
          %2685 = vst.msk [vmem:[#allocation3 + $0x1a0] sm:$0xf] %vm2666, 0
          %2686 = vst [vmem:[#allocation3 + $0x1a4] sm:$0xff] 0
          %2687 = vst [vmem:[#allocation3 + $0x1ac] sm:$0xff] 0
          %2688 = vst.msk [vmem:[#allocation3 + $0x1b4] sm:$0xf] %vm2666, 0
          %v2707 = vrot.slane %v2646, 7
          %v2708 = vrot.slane %v2707, 4
          %v2709 = vrot.slane %v2647, 7
          %v2710 = vsel %vm1212, %v2708, %v2709
          %v2711 = vrot.slane %v2709, 4
          %v2712 = vrot.slane %v2648, 7
          %v2713 = vsel %vm1212, %v2711, %v2712
          %v2714 = vrot.slane %v2712, 4
          %v2715 = vrot.slane %v2649, 7
          %v2716 = vsel %vm1212, %v2714, %v2715
          %v2717 = vrot.slane %v2715, 4
          %v2718 = vrot.slane %v2650, 7
          %v2719 = vsel %vm1212, %v2717, %v2718
          %v2720 = vrot.slane %v2718, 4
          %v2721 = vrot.slane %v2651, 7
          %v2722 = vsel %vm1212, %v2720, %v2721
          %v2723 = vrot.slane %v2721, 4
          %v2724 = vrot.slane %v2652, 7
          %v2725 = vsel %vm1212, %v2723, %v2724
          %v2726 = vrot.slane %v2724, 4
          %v2727 = vrot.slane %v2653, 7
          %v2728 = vsel %vm1212, %v2726, %v2727
          %v2729 = vrot.slane %v2727, 4
          %v2730 = vrot.slane %v2654, 7
          %v2731 = vsel %vm1212, %v2729, %v2730
          %v2732 = vrot.slane %v2730, 4
          %v2733 = vrot.slane %v2655, 7
          %v2734 = vsel %vm1212, %v2732, %v2733
          %v2735 = vrot.slane %v2733, 4
          %v2736 = vrot.slane %v2656, 7
          %v2737 = vsel %vm1212, %v2735, %v2736
          %v2738 = vrot.slane %v2736, 4
          %v2739 = vrot.slane %v2657, 7
          %v2740 = vsel %vm1212, %v2738, %v2739
          %v2741 = vrot.slane %v2739, 4
          %v2742 = vrot.slane %v2658, 7
          %v2743 = vsel %vm1212, %v2741, %v2742
          %v2744 = vrot.slane %v2742, 4
          %v2745 = vrot.slane %v2659, 7
          %v2746 = vsel %vm1212, %v2744, %v2745
          %v2747 = vrot.slane %v2745, 4
          %v2748 = vrot.slane %v2660, 7
          %v2749 = vsel %vm1212, %v2747, %v2748
          %v2750 = vrot.slane %v2748, 4
          %v2751 = vrot.slane %v2661, 7
          %v2752 = vsel %vm1212, %v2750, %v2751
          %v2753 = vrot.slane %v2751, 4
          %v2754 = vrot.slane %v2662, 7
          %v2755 = vsel %vm1212, %v2753, %v2754
          %v2756 = vrot.slane %v2754, 4
          %v2757 = vrot.slane %v2663, 7
          %v2758 = vsel %vm1212, %v2756, %v2757
          %v2759 = vrot.slane %v2757, 4
          %vm2779 = vcmask 519169
          %2780 = vst.msk [vmem:[#allocation3 + $0x3c] sm:$0xe] %vm2779, %v2707
          %2781 = vst.msk [vmem:[#allocation3 + $0x50] sm:$0xf] %vm2666, %v2710
          %2782 = vst.msk [vmem:[#allocation3 + $0x64] sm:$0xf] %vm2666, %v2713
          %2783 = vst.msk [vmem:[#allocation3 + $0x78] sm:$0xf] %vm2666, %v2716
          %2784 = vst.msk [vmem:[#allocation3 + $0x8c] sm:$0xf] %vm2666, %v2719
          %2785 = vst.msk [vmem:[#allocation3 + $0xa0] sm:$0xf] %vm2666, %v2722
          %2786 = vst.msk [vmem:[#allocation3 + $0xb4] sm:$0xf] %vm2666, %v2725
          %2787 = vst.msk [vmem:[#allocation3 + $0xc8] sm:$0xf] %vm2666, %v2728
          %2788 = vst.msk [vmem:[#allocation3 + $0xdc] sm:$0xf] %vm2666, %v2731
          %2789 = vst.msk [vmem:[#allocation3 + $0xf0] sm:$0xf] %vm2666, %v2734
          %2790 = vst.msk [vmem:[#allocation3 + $0x104] sm:$0xf] %vm2666, %v2737
          %2791 = vst.msk [vmem:[#allocation3 + $0x118] sm:$0xf] %vm2666, %v2740
          %2792 = vst.msk [vmem:[#allocation3 + $0x12c] sm:$0xf] %vm2666, %v2743
          %2793 = vst.msk [vmem:[#allocation3 + $0x140] sm:$0xf] %vm2666, %v2746
          %2794 = vst.msk [vmem:[#allocation3 + $0x154] sm:$0xf] %vm2666, %v2749
          %2795 = vst.msk [vmem:[#allocation3 + $0x168] sm:$0xf] %vm2666, %v2752
          %2796 = vst.msk [vmem:[#allocation3 + $0x17c] sm:$0xf] %vm2666, %v2755
          %2797 = vst.msk [vmem:[#allocation3 + $0x190] sm:$0xf] %vm2666, %v2758
          %vm2798 = vcmask 516096
          %2799 = vst.msk [vmem:[#allocation3 + $0x1a4] sm:$0x1] %vm2798, %v2759
          %v2801 = vshrl.u32 %v2646, 16
          %v2803 = vrot.slane %v2801, 7
          %v2804 = vshll.u32 %v2646, 16
          %v2806 = vor.u32 %v2803, %v2804
          %v2807 = vrot.slane %v2803, 4
          %v2809 = vshrl.u32 %v2647, 16
          %v2811 = vrot.slane %v2809, 7
          %v2812 = vshll.u32 %v2647, 16
          %v2814 = vor.u32 %v2811, %v2812
          %v2815 = vsel %vm1308, %v2807, %v2814
          %v2816 = vrot.slane %v2811, 4
          %v2818 = vshrl.u32 %v2648, 16
          %v2820 = vrot.slane %v2818, 7
          %v2821 = vshll.u32 %v2648, 16
          %v2823 = vor.u32 %v2820, %v2821
          %v2824 = vsel %vm1308, %v2816, %v2823
          %v2825 = vrot.slane %v2820, 4
          %v2827 = vshrl.u32 %v2649, 16
          %v2829 = vrot.slane %v2827, 7
          %v2830 = vshll.u32 %v2649, 16
          %v2832 = vor.u32 %v2829, %v2830
          %v2833 = vsel %vm1308, %v2825, %v2832
          %v2834 = vrot.slane %v2829, 4
          %v2836 = vshrl.u32 %v2650, 16
          %v2838 = vrot.slane %v2836, 7
          %v2839 = vshll.u32 %v2650, 16
          %v2841 = vor.u32 %v2838, %v2839
          %v2842 = vsel %vm1308, %v2834, %v2841
          %v2843 = vrot.slane %v2838, 4
          %v2845 = vshrl.u32 %v2651, 16
          %v2847 = vrot.slane %v2845, 7
          %v2848 = vshll.u32 %v2651, 16
          %v2850 = vor.u32 %v2847, %v2848
          %v2851 = vsel %vm1308, %v2843, %v2850
          %v2852 = vrot.slane %v2847, 4
          %v2854 = vshrl.u32 %v2652, 16
          %v2856 = vrot.slane %v2854, 7
          %v2857 = vshll.u32 %v2652, 16
          %v2859 = vor.u32 %v2856, %v2857
          %v2860 = vsel %vm1308, %v2852, %v2859
          %v2861 = vrot.slane %v2856, 4
          %v2863 = vshrl.u32 %v2653, 16
          %v2865 = vrot.slane %v2863, 7
          %v2866 = vshll.u32 %v2653, 16
          %v2868 = vor.u32 %v2865, %v2866
          %v2869 = vsel %vm1308, %v2861, %v2868
          %v2870 = vrot.slane %v2865, 4
          %v2872 = vshrl.u32 %v2654, 16
          %v2874 = vrot.slane %v2872, 7
          %v2875 = vshll.u32 %v2654, 16
          %v2877 = vor.u32 %v2874, %v2875
          %v2878 = vsel %vm1308, %v2870, %v2877
          %v2879 = vrot.slane %v2874, 4
          %v2881 = vshrl.u32 %v2655, 16
          %v2883 = vrot.slane %v2881, 7
          %v2884 = vshll.u32 %v2655, 16
          %v2886 = vor.u32 %v2883, %v2884
          %v2887 = vsel %vm1308, %v2879, %v2886
          %v2888 = vrot.slane %v2883, 4
          %v2890 = vshrl.u32 %v2656, 16
          %v2892 = vrot.slane %v2890, 7
          %v2893 = vshll.u32 %v2656, 16
          %v2895 = vor.u32 %v2892, %v2893
          %v2896 = vsel %vm1308, %v2888, %v2895
          %v2897 = vrot.slane %v2892, 4
          %v2899 = vshrl.u32 %v2657, 16
          %v2901 = vrot.slane %v2899, 7
          %v2902 = vshll.u32 %v2657, 16
          %v2904 = vor.u32 %v2901, %v2902
          %v2905 = vsel %vm1308, %v2897, %v2904
          %v2906 = vrot.slane %v2901, 4
          %v2908 = vshrl.u32 %v2658, 16
          %v2910 = vrot.slane %v2908, 7
          %v2911 = vshll.u32 %v2658, 16
          %v2913 = vor.u32 %v2910, %v2911
          %v2914 = vsel %vm1308, %v2906, %v2913
          %v2915 = vrot.slane %v2910, 4
          %v2917 = vshrl.u32 %v2659, 16
          %v2919 = vrot.slane %v2917, 7
          %v2920 = vshll.u32 %v2659, 16
          %v2922 = vor.u32 %v2919, %v2920
          %v2923 = vsel %vm1308, %v2915, %v2922
          %v2924 = vrot.slane %v2919, 4
          %v2926 = vshrl.u32 %v2660, 16
          %v2928 = vrot.slane %v2926, 7
          %v2929 = vshll.u32 %v2660, 16
          %v2931 = vor.u32 %v2928, %v2929
          %v2932 = vsel %vm1308, %v2924, %v2931
          %v2933 = vrot.slane %v2928, 4
          %v2935 = vshrl.u32 %v2661, 16
          %v2937 = vrot.slane %v2935, 7
          %v2938 = vshll.u32 %v2661, 16
          %v2940 = vor.u32 %v2937, %v2938
          %v2941 = vsel %vm1308, %v2933, %v2940
          %v2942 = vrot.slane %v2937, 4
          %v2944 = vshrl.u32 %v2662, 16
          %v2946 = vrot.slane %v2944, 7
          %v2947 = vshll.u32 %v2662, 16
          %v2949 = vor.u32 %v2946, %v2947
          %v2950 = vsel %vm1308, %v2942, %v2949
          %v2951 = vrot.slane %v2946, 4
          %v2953 = vshrl.u32 %v2663, 16
          %v2955 = vrot.slane %v2953, 7
          %v2956 = vshll.u32 %v2663, 16
          %v2958 = vor.u32 %v2955, %v2956
          %v2959 = vsel %vm1308, %v2951, %v2958
          %v2960 = vrot.slane %v2955, 4
          %2961 = vrot.lane.b32.xlu0 %v2806, 64
          %v2962 = vpop.permute.xlu0 %2961
          %2963 = vrot.lane.b32.xlu0 %v2815, 64
          %v2964 = vpop.permute.xlu0 %2963
          %2965 = vrot.lane.b32.xlu0 %v2824, 64
          %v2966 = vpop.permute.xlu0 %2965
          %2967 = vrot.lane.b32.xlu0 %v2833, 64
          %v2968 = vpop.permute.xlu0 %2967
          %2969 = vrot.lane.b32.xlu0 %v2842, 64
          %v2970 = vpop.permute.xlu0 %2969
          %2971 = vrot.lane.b32.xlu0 %v2851, 64
          %v2972 = vpop.permute.xlu0 %2971
          %2973 = vrot.lane.b32.xlu0 %v2860, 64
          %v2974 = vpop.permute.xlu0 %2973
          %2975 = vrot.lane.b32.xlu0 %v2869, 64
          %v2976 = vpop.permute.xlu0 %2975
          %2977 = vrot.lane.b32.xlu0 %v2878, 64
          %v2978 = vpop.permute.xlu0 %2977
          %2979 = vrot.lane.b32.xlu0 %v2887, 64
          %v2980 = vpop.permute.xlu0 %2979
          %2981 = vrot.lane.b32.xlu0 %v2896, 64
          %v2982 = vpop.permute.xlu0 %2981
          %2983 = vrot.lane.b32.xlu0 %v2905, 64
          %v2984 = vpop.permute.xlu0 %2983
          %2985 = vrot.lane.b32.xlu0 %v2914, 64
          %v2986 = vpop.permute.xlu0 %2985
          %2987 = vrot.lane.b32.xlu0 %v2923, 64
          %v2988 = vpop.permute.xlu0 %2987
          %2989 = vrot.lane.b32.xlu0 %v2932, 64
          %v2990 = vpop.permute.xlu0 %2989
          %2991 = vrot.lane.b32.xlu0 %v2941, 64
          %v2992 = vpop.permute.xlu0 %2991
          %2993 = vrot.lane.b32.xlu0 %v2950, 64
          %v2994 = vpop.permute.xlu0 %2993
          %2995 = vrot.lane.b32.xlu0 %v2959, 64
          %v2996 = vpop.permute.xlu0 %2995
          %2997 = vrot.lane.b32.xlu0 %v2960, 64
          %v2998 = vpop.permute.xlu0 %2997
          %vm3018 = vcmask 1043968
          %vm3019 = vmand %vm3018, %vm1528
          %v3020 = vld [vmem:[#allocation3 + $0x3c] sm:$0xf]
          %v3021 = vsel %vm3019, %v2962, %v3020
          %3022 = vst [vmem:[#allocation3 + $0x3c] sm:$0xf] %v3021
          %vm3023 = vcmask 1043968
          %3024 = vst.msk [vmem:[#allocation3 + $0x50] sm:$0xf] %vm3023, %v2964
          %3025 = vst.msk [vmem:[#allocation3 + $0x64] sm:$0xf] %vm3023, %v2966
          %3026 = vst.msk [vmem:[#allocation3 + $0x78] sm:$0xf] %vm3023, %v2968
          %3027 = vst.msk [vmem:[#allocation3 + $0x8c] sm:$0xf] %vm3023, %v2970
          %3028 = vst.msk [vmem:[#allocation3 + $0xa0] sm:$0xf] %vm3023, %v2972
          %3029 = vst.msk [vmem:[#allocation3 + $0xb4] sm:$0xf] %vm3023, %v2974
          %3030 = vst.msk [vmem:[#allocation3 + $0xc8] sm:$0xf] %vm3023, %v2976
          %3031 = vst.msk [vmem:[#allocation3 + $0xdc] sm:$0xf] %vm3023, %v2978
          %3032 = vst.msk [vmem:[#allocation3 + $0xf0] sm:$0xf] %vm3023, %v2980
          %3033 = vst.msk [vmem:[#allocation3 + $0x104] sm:$0xf] %vm3023, %v2982
          %3034 = vst.msk [vmem:[#allocation3 + $0x118] sm:$0xf] %vm3023, %v2984
          %3035 = vst.msk [vmem:[#allocation3 + $0x12c] sm:$0xf] %vm3023, %v2986
          %3036 = vst.msk [vmem:[#allocation3 + $0x140] sm:$0xf] %vm3023, %v2988
          %3037 = vst.msk [vmem:[#allocation3 + $0x154] sm:$0xf] %vm3023, %v2990
          %3038 = vst.msk [vmem:[#allocation3 + $0x168] sm:$0xf] %vm3023, %v2992
          %3039 = vst.msk [vmem:[#allocation3 + $0x17c] sm:$0xf] %vm3023, %v2994
          %3040 = vst.msk [vmem:[#allocation3 + $0x190] sm:$0xf] %vm3023, %v2996
          %vm3041 = vcmask 1040896
          %vm3042 = vmand %vm3041, %vm1306
          %v3043 = vld [vmem:[#allocation3 + $0x1a4] sm:$0x1]
          %v3044 = vsel %vm3042, %v2998, %v3043
          %3045 = vst [vmem:[#allocation3 + $0x1a4] sm:$0x1] %v3044
          %3046 = vst.msk [vmem:[#allocation3 + $0x40] sm:$0xf] %vm2666, %v2646
          %3047 = vst.msk [vmem:[#allocation3 + $0x54] sm:$0xf] %vm2666, %v2647
          %3048 = vst.msk [vmem:[#allocation3 + $0x68] sm:$0xf] %vm2666, %v2648
          %3049 = vst.msk [vmem:[#allocation3 + $0x7c] sm:$0xf] %vm2666, %v2649
          %3050 = vst.msk [vmem:[#allocation3 + $0x90] sm:$0xf] %vm2666, %v2650
          %3051 = vst.msk [vmem:[#allocation3 + $0xa4] sm:$0xf] %vm2666, %v2651
          %3052 = vst.msk [vmem:[#allocation3 + $0xb8] sm:$0xf] %vm2666, %v2652
          %3053 = vst.msk [vmem:[#allocation3 + $0xcc] sm:$0xf] %vm2666, %v2653
          %3054 = vst.msk [vmem:[#allocation3 + $0xe0] sm:$0xf] %vm2666, %v2654
          %3055 = vst.msk [vmem:[#allocation3 + $0xf4] sm:$0xf] %vm2666, %v2655
          %3056 = vst.msk [vmem:[#allocation3 + $0x108] sm:$0xf] %vm2666, %v2656
          %3057 = vst.msk [vmem:[#allocation3 + $0x11c] sm:$0xf] %vm2666, %v2657
          %3058 = vst.msk [vmem:[#allocation3 + $0x130] sm:$0xf] %vm2666, %v2658
          %3059 = vst.msk [vmem:[#allocation3 + $0x144] sm:$0xf] %vm2666, %v2659
          %3060 = vst.msk [vmem:[#allocation3 + $0x158] sm:$0xf] %vm2666, %v2660
          %3061 = vst.msk [vmem:[#allocation3 + $0x16c] sm:$0xf] %vm2666, %v2661
          %3062 = vst.msk [vmem:[#allocation3 + $0x180] sm:$0xf] %vm2666, %v2662
          %3063 = vst.msk [vmem:[#allocation3 + $0x194] sm:$0xf] %vm2666, %v2663
          %v3064 = vld [vmem:[#allocation3 + $0x2c] sm:$0xf]
          %v3065 = vsel %vm3019, %v2962, %v3064
          %3066 = vst [vmem:[#allocation3 + $0x2c] sm:$0xf] %v3065
          %3067 = vst.msk [vmem:[#allocation3 + $0x40] sm:$0xf] %vm3023, %v2964
          %3068 = vst.msk [vmem:[#allocation3 + $0x54] sm:$0xf] %vm3023, %v2966
          %3069 = vst.msk [vmem:[#allocation3 + $0x68] sm:$0xf] %vm3023, %v2968
          %3070 = vst.msk [vmem:[#allocation3 + $0x7c] sm:$0xf] %vm3023, %v2970
          %3071 = vst.msk [vmem:[#allocation3 + $0x90] sm:$0xf] %vm3023, %v2972
          %3072 = vst.msk [vmem:[#allocation3 + $0xa4] sm:$0xf] %vm3023, %v2974
          %3073 = vst.msk [vmem:[#allocation3 + $0xb8] sm:$0xf] %vm3023, %v2976
          %3074 = vst.msk [vmem:[#allocation3 + $0xcc] sm:$0xf] %vm3023, %v2978
          %3075 = vst.msk [vmem:[#allocation3 + $0xe0] sm:$0xf] %vm3023, %v2980
          %3076 = vst.msk [vmem:[#allocation3 + $0xf4] sm:$0xf] %vm3023, %v2982
          %3077 = vst.msk [vmem:[#allocation3 + $0x108] sm:$0xf] %vm3023, %v2984
          %3078 = vst.msk [vmem:[#allocation3 + $0x11c] sm:$0xf] %vm3023, %v2986
          %3079 = vst.msk [vmem:[#allocation3 + $0x130] sm:$0xf] %vm3023, %v2988
          %3080 = vst.msk [vmem:[#allocation3 + $0x144] sm:$0xf] %vm3023, %v2990
          %3081 = vst.msk [vmem:[#allocation3 + $0x158] sm:$0xf] %vm3023, %v2992
          %3082 = vst.msk [vmem:[#allocation3 + $0x16c] sm:$0xf] %vm3023, %v2994
          %3083 = vst.msk [vmem:[#allocation3 + $0x180] sm:$0xf] %vm3023, %v2996
          %v3084 = vld [vmem:[#allocation3 + $0x194] sm:$0x1]
          %v3085 = vsel %vm3042, %v2998, %v3084
          %3086 = vst [vmem:[#allocation3 + $0x194] sm:$0x1] %v3085
          %3087 = vst.msk [vmem:[#allocation3 + $0x30] sm:$0xf] %vm2666, %v2646
          %3088 = vst.msk [vmem:[#allocation3 + $0x44] sm:$0xf] %vm2666, %v2647
          %3089 = vst.msk [vmem:[#allocation3 + $0x58] sm:$0xf] %vm2666, %v2648
          %3090 = vst.msk [vmem:[#allocation3 + $0x6c] sm:$0xf] %vm2666, %v2649
          %3091 = vst.msk [vmem:[#allocation3 + $0x80] sm:$0xf] %vm2666, %v2650
          %3092 = vst.msk [vmem:[#allocation3 + $0x94] sm:$0xf] %vm2666, %v2651
          %3093 = vst.msk [vmem:[#allocation3 + $0xa8] sm:$0xf] %vm2666, %v2652
          %3094 = vst.msk [vmem:[#allocation3 + $0xbc] sm:$0xf] %vm2666, %v2653
          %3095 = vst.msk [vmem:[#allocation3 + $0xd0] sm:$0xf] %vm2666, %v2654
          %3096 = vst.msk [vmem:[#allocation3 + $0xe4] sm:$0xf] %vm2666, %v2655
          %3097 = vst.msk [vmem:[#allocation3 + $0xf8] sm:$0xf] %vm2666, %v2656
          %3098 = vst.msk [vmem:[#allocation3 + $0x10c] sm:$0xf] %vm2666, %v2657
          %3099 = vst.msk [vmem:[#allocation3 + $0x120] sm:$0xf] %vm2666, %v2658
          %3100 = vst.msk [vmem:[#allocation3 + $0x134] sm:$0xf] %vm2666, %v2659
          %3101 = vst.msk [vmem:[#allocation3 + $0x148] sm:$0xf] %vm2666, %v2660
          %3102 = vst.msk [vmem:[#allocation3 + $0x15c] sm:$0xf] %vm2666, %v2661
          %3103 = vst.msk [vmem:[#allocation3 + $0x170] sm:$0xf] %vm2666, %v2662
          %3104 = vst.msk [vmem:[#allocation3 + $0x184] sm:$0xf] %vm2666, %v2663
          %v3105 = vrot.slane %v2804, 5
          %v3106 = vrot.slane %v2801, 4
          %v3107 = vor.u32 %v3106, %v3105
          %v3108 = vrot.slane %v3107, 4
          %v3109 = vrot.slane %v2812, 5
          %v3110 = vsel %vm1734, %v3108, %v3109
          %v3111 = vrot.slane %v2809, 4
          %v3112 = vor.u32 %v3111, %v3109
          %v3113 = vrot.slane %v3112, 4
          %v3114 = vrot.slane %v2821, 5
          %v3115 = vsel %vm1734, %v3113, %v3114
          %v3116 = vrot.slane %v2818, 4
          %v3117 = vor.u32 %v3116, %v3114
          %v3118 = vrot.slane %v3117, 4
          %v3119 = vrot.slane %v2830, 5
          %v3120 = vsel %vm1734, %v3118, %v3119
          %v3121 = vrot.slane %v2827, 4
          %v3122 = vor.u32 %v3121, %v3119
          %v3123 = vrot.slane %v3122, 4
          %v3124 = vrot.slane %v2839, 5
          %v3125 = vsel %vm1734, %v3123, %v3124
          %v3126 = vrot.slane %v2836, 4
          %v3127 = vor.u32 %v3126, %v3124
          %v3128 = vrot.slane %v3127, 4
          %v3129 = vrot.slane %v2848, 5
          %v3130 = vsel %vm1734, %v3128, %v3129
          %v3131 = vrot.slane %v2845, 4
          %v3132 = vor.u32 %v3131, %v3129
          %v3133 = vrot.slane %v3132, 4
          %v3134 = vrot.slane %v2857, 5
          %v3135 = vsel %vm1734, %v3133, %v3134
          %v3136 = vrot.slane %v2854, 4
          %v3137 = vor.u32 %v3136, %v3134
          %v3138 = vrot.slane %v3137, 4
          %v3139 = vrot.slane %v2866, 5
          %v3140 = vsel %vm1734, %v3138, %v3139
          %v3141 = vrot.slane %v2863, 4
          %v3142 = vor.u32 %v3141, %v3139
          %v3143 = vrot.slane %v3142, 4
          %v3144 = vrot.slane %v2875, 5
          %v3145 = vsel %vm1734, %v3143, %v3144
          %v3146 = vrot.slane %v2872, 4
          %v3147 = vor.u32 %v3146, %v3144
          %v3148 = vrot.slane %v3147, 4
          %v3149 = vrot.slane %v2884, 5
          %v3150 = vsel %vm1734, %v3148, %v3149
          %v3151 = vrot.slane %v2881, 4
          %v3152 = vor.u32 %v3151, %v3149
          %v3153 = vrot.slane %v3152, 4
          %v3154 = vrot.slane %v2893, 5
          %v3155 = vsel %vm1734, %v3153, %v3154
          %v3156 = vrot.slane %v2890, 4
          %v3157 = vor.u32 %v3156, %v3154
          %v3158 = vrot.slane %v3157, 4
          %v3159 = vrot.slane %v2902, 5
          %v3160 = vsel %vm1734, %v3158, %v3159
          %v3161 = vrot.slane %v2899, 4
          %v3162 = vor.u32 %v3161, %v3159
          %v3163 = vrot.slane %v3162, 4
          %v3164 = vrot.slane %v2911, 5
          %v3165 = vsel %vm1734, %v3163, %v3164
          %v3166 = vrot.slane %v2908, 4
          %v3167 = vor.u32 %v3166, %v3164
          %v3168 = vrot.slane %v3167, 4
          %v3169 = vrot.slane %v2920, 5
          %v3170 = vsel %vm1734, %v3168, %v3169
          %v3171 = vrot.slane %v2917, 4
          %v3172 = vor.u32 %v3171, %v3169
          %v3173 = vrot.slane %v3172, 4
          %v3174 = vrot.slane %v2929, 5
          %v3175 = vsel %vm1734, %v3173, %v3174
          %v3176 = vrot.slane %v2926, 4
          %v3177 = vor.u32 %v3176, %v3174
          %v3178 = vrot.slane %v3177, 4
          %v3179 = vrot.slane %v2938, 5
          %v3180 = vsel %vm1734, %v3178, %v3179
          %v3181 = vrot.slane %v2935, 4
          %v3182 = vor.u32 %v3181, %v3179
          %v3183 = vrot.slane %v3182, 4
          %v3184 = vrot.slane %v2947, 5
          %v3185 = vsel %vm1734, %v3183, %v3184
          %v3186 = vrot.slane %v2944, 4
          %v3187 = vor.u32 %v3186, %v3184
          %v3188 = vrot.slane %v3187, 4
          %v3189 = vrot.slane %v2956, 5
          %v3190 = vsel %vm1734, %v3188, %v3189
          %v3191 = vrot.slane %v2953, 4
          %v3192 = vor.u32 %v3191, %v3189
          %v3193 = vrot.slane %v3192, 4
          %3194 = vrot.lane.b32.xlu0 %v3105, 64
          %v3195 = vpop.permute.xlu0 %3194
          %3196 = vrot.lane.b32.xlu0 %v3110, 64
          %v3197 = vpop.permute.xlu0 %3196
          %3198 = vrot.lane.b32.xlu0 %v3115, 64
          %v3199 = vpop.permute.xlu0 %3198
          %3200 = vrot.lane.b32.xlu0 %v3120, 64
          %v3201 = vpop.permute.xlu0 %3200
          %3202 = vrot.lane.b32.xlu0 %v3125, 64
          %v3203 = vpop.permute.xlu0 %3202
          %3204 = vrot.lane.b32.xlu0 %v3130, 64
          %v3205 = vpop.permute.xlu0 %3204
          %3206 = vrot.lane.b32.xlu0 %v3135, 64
          %v3207 = vpop.permute.xlu0 %3206
          %3208 = vrot.lane.b32.xlu0 %v3140, 64
          %v3209 = vpop.permute.xlu0 %3208
          %3210 = vrot.lane.b32.xlu0 %v3145, 64
          %v3211 = vpop.permute.xlu0 %3210
          %3212 = vrot.lane.b32.xlu0 %v3150, 64
          %v3213 = vpop.permute.xlu0 %3212
          %3214 = vrot.lane.b32.xlu0 %v3155, 64
          %v3215 = vpop.permute.xlu0 %3214
          %3216 = vrot.lane.b32.xlu0 %v3160, 64
          %v3217 = vpop.permute.xlu0 %3216
          %3218 = vrot.lane.b32.xlu0 %v3165, 64
          %v3219 = vpop.permute.xlu0 %3218
          %3220 = vrot.lane.b32.xlu0 %v3170, 64
          %v3221 = vpop.permute.xlu0 %3220
          %3222 = vrot.lane.b32.xlu0 %v3175, 64
          %v3223 = vpop.permute.xlu0 %3222
          %3224 = vrot.lane.b32.xlu0 %v3180, 64
          %v3225 = vpop.permute.xlu0 %3224
          %3226 = vrot.lane.b32.xlu0 %v3185, 64
          %v3227 = vpop.permute.xlu0 %3226
          %3228 = vrot.lane.b32.xlu0 %v3190, 64
          %v3229 = vpop.permute.xlu0 %3228
          %3230 = vrot.lane.b32.xlu0 %v3193, 64
          %v3231 = vpop.permute.xlu0 %3230
          %vm3251 = vcmask 1043971
          %vm3252 = vmand %vm3251, %vm1882
          %v3253 = vld [vmem:[#allocation3 + $0x1c] sm:$0x8]
          %v3254 = vsel %vm3252, %v3195, %v3253
          %3255 = vst [vmem:[#allocation3 + $0x1c] sm:$0x8] %v3254
          %3256 = vst.msk [vmem:[#allocation3 + $0x30] sm:$0xf] %vm3023, %v3197
          %3257 = vst.msk [vmem:[#allocation3 + $0x44] sm:$0xf] %vm3023, %v3199
          %3258 = vst.msk [vmem:[#allocation3 + $0x58] sm:$0xf] %vm3023, %v3201
          %3259 = vst.msk [vmem:[#allocation3 + $0x6c] sm:$0xf] %vm3023, %v3203
          %3260 = vst.msk [vmem:[#allocation3 + $0x80] sm:$0xf] %vm3023, %v3205
          %3261 = vst.msk [vmem:[#allocation3 + $0x94] sm:$0xf] %vm3023, %v3207
          %3262 = vst.msk [vmem:[#allocation3 + $0xa8] sm:$0xf] %vm3023, %v3209
          %3263 = vst.msk [vmem:[#allocation3 + $0xbc] sm:$0xf] %vm3023, %v3211
          %3264 = vst.msk [vmem:[#allocation3 + $0xd0] sm:$0xf] %vm3023, %v3213
          %3265 = vst.msk [vmem:[#allocation3 + $0xe4] sm:$0xf] %vm3023, %v3215
          %3266 = vst.msk [vmem:[#allocation3 + $0xf8] sm:$0xf] %vm3023, %v3217
          %3267 = vst.msk [vmem:[#allocation3 + $0x10c] sm:$0xf] %vm3023, %v3219
          %3268 = vst.msk [vmem:[#allocation3 + $0x120] sm:$0xf] %vm3023, %v3221
          %3269 = vst.msk [vmem:[#allocation3 + $0x134] sm:$0xf] %vm3023, %v3223
          %3270 = vst.msk [vmem:[#allocation3 + $0x148] sm:$0xf] %vm3023, %v3225
          %3271 = vst.msk [vmem:[#allocation3 + $0x15c] sm:$0xf] %vm3023, %v3227
          %3272 = vst.msk [vmem:[#allocation3 + $0x170] sm:$0xf] %vm3023, %v3229
          %vm3273 = vmand %vm3018, %vm1732
          %v3274 = vld [vmem:[#allocation3 + $0x184] sm:$0xf]
          %v3275 = vsel %vm3273, %v3231, %v3274
          %3276 = vst [vmem:[#allocation3 + $0x184] sm:$0xf] %v3275
          %3277 = vst.msk [vmem:[#allocation3 + $0x20] sm:$0xf] %vm2666, %v2646
          %3278 = vst.msk [vmem:[#allocation3 + $0x34] sm:$0xf] %vm2666, %v2647
          %3279 = vst.msk [vmem:[#allocation3 + $0x48] sm:$0xf] %vm2666, %v2648
          %3280 = vst.msk [vmem:[#allocation3 + $0x5c] sm:$0xf] %vm2666, %v2649
          %3281 = vst.msk [vmem:[#allocation3 + $0x70] sm:$0xf] %vm2666, %v2650
          %3282 = vst.msk [vmem:[#allocation3 + $0x84] sm:$0xf] %vm2666, %v2651
          %3283 = vst.msk [vmem:[#allocation3 + $0x98] sm:$0xf] %vm2666, %v2652
          %3284 = vst.msk [vmem:[#allocation3 + $0xac] sm:$0xf] %vm2666, %v2653
          %3285 = vst.msk [vmem:[#allocation3 + $0xc0] sm:$0xf] %vm2666, %v2654
          %3286 = vst.msk [vmem:[#allocation3 + $0xd4] sm:$0xf] %vm2666, %v2655
          %3287 = vst.msk [vmem:[#allocation3 + $0xe8] sm:$0xf] %vm2666, %v2656
          %3288 = vst.msk [vmem:[#allocation3 + $0xfc] sm:$0xf] %vm2666, %v2657
          %3289 = vst.msk [vmem:[#allocation3 + $0x110] sm:$0xf] %vm2666, %v2658
          %3290 = vst.msk [vmem:[#allocation3 + $0x124] sm:$0xf] %vm2666, %v2659
          %3291 = vst.msk [vmem:[#allocation3 + $0x138] sm:$0xf] %vm2666, %v2660
          %3292 = vst.msk [vmem:[#allocation3 + $0x14c] sm:$0xf] %vm2666, %v2661
          %3293 = vst.msk [vmem:[#allocation3 + $0x160] sm:$0xf] %vm2666, %v2662
          %3294 = vst.msk [vmem:[#allocation3 + $0x174] sm:$0xf] %vm2666, %v2663
          %v3295 = vld [vmem:[#allocation3 + $0xc] sm:$0x8]
          %v3296 = vsel %vm3252, %v3195, %v3295
          %3297 = vst [vmem:[#allocation3 + $0xc] sm:$0x8] %v3296
          %3298 = vst.msk [vmem:[#allocation3 + $0x20] sm:$0xf] %vm3023, %v3197
          %3299 = vst.msk [vmem:[#allocation3 + $0x34] sm:$0xf] %vm3023, %v3199
          %3300 = vst.msk [vmem:[#allocation3 + $0x48] sm:$0xf] %vm3023, %v3201
          %3301 = vst.msk [vmem:[#allocation3 + $0x5c] sm:$0xf] %vm3023, %v3203
          %3302 = vst.msk [vmem:[#allocation3 + $0x70] sm:$0xf] %vm3023, %v3205
          %3303 = vst.msk [vmem:[#allocation3 + $0x84] sm:$0xf] %vm3023, %v3207
          %3304 = vst.msk [vmem:[#allocation3 + $0x98] sm:$0xf] %vm3023, %v3209
          %3305 = vst.msk [vmem:[#allocation3 + $0xac] sm:$0xf] %vm3023, %v3211
          %3306 = vst.msk [vmem:[#allocation3 + $0xc0] sm:$0xf] %vm3023, %v3213
          %3307 = vst.msk [vmem:[#allocation3 + $0xd4] sm:$0xf] %vm3023, %v3215
          %3308 = vst.msk [vmem:[#allocation3 + $0xe8] sm:$0xf] %vm3023, %v3217
          %3309 = vst.msk [vmem:[#allocation3 + $0xfc] sm:$0xf] %vm3023, %v3219
          %3310 = vst.msk [vmem:[#allocation3 + $0x110] sm:$0xf] %vm3023, %v3221
          %3311 = vst.msk [vmem:[#allocation3 + $0x124] sm:$0xf] %vm3023, %v3223
          %3312 = vst.msk [vmem:[#allocation3 + $0x138] sm:$0xf] %vm3023, %v3225
          %3313 = vst.msk [vmem:[#allocation3 + $0x14c] sm:$0xf] %vm3023, %v3227
          %3314 = vst.msk [vmem:[#allocation3 + $0x160] sm:$0xf] %vm3023, %v3229
          %v3315 = vld [vmem:[#allocation3 + $0x174] sm:$0xf]
          %v3316 = vsel %vm3273, %v3231, %v3315
          %3317 = vst [vmem:[#allocation3 + $0x174] sm:$0xf] %v3316
          %v3318 = vrot.slane %v2646, 5
          %v3319 = vrot.slane %v3318, 4
          %v3320 = vrot.slane %v2647, 5
          %v3321 = vsel %vm2011, %v3319, %v3320
          %v3322 = vrot.slane %v3320, 4
          %v3323 = vrot.slane %v2648, 5
          %v3324 = vsel %vm2011, %v3322, %v3323
          %v3325 = vrot.slane %v3323, 4
          %v3326 = vrot.slane %v2649, 5
          %v3327 = vsel %vm2011, %v3325, %v3326
          %v3328 = vrot.slane %v3326, 4
          %v3329 = vrot.slane %v2650, 5
          %v3330 = vsel %vm2011, %v3328, %v3329
          %v3331 = vrot.slane %v3329, 4
          %v3332 = vrot.slane %v2651, 5
          %v3333 = vsel %vm2011, %v3331, %v3332
          %v3334 = vrot.slane %v3332, 4
          %v3335 = vrot.slane %v2652, 5
          %v3336 = vsel %vm2011, %v3334, %v3335
          %v3337 = vrot.slane %v3335, 4
          %v3338 = vrot.slane %v2653, 5
          %v3339 = vsel %vm2011, %v3337, %v3338
          %v3340 = vrot.slane %v3338, 4
          %v3341 = vrot.slane %v2654, 5
          %v3342 = vsel %vm2011, %v3340, %v3341
          %v3343 = vrot.slane %v3341, 4
          %v3344 = vrot.slane %v2655, 5
          %v3345 = vsel %vm2011, %v3343, %v3344
          %v3346 = vrot.slane %v3344, 4
          %v3347 = vrot.slane %v2656, 5
          %v3348 = vsel %vm2011, %v3346, %v3347
          %v3349 = vrot.slane %v3347, 4
          %v3350 = vrot.slane %v2657, 5
          %v3351 = vsel %vm2011, %v3349, %v3350
          %v3352 = vrot.slane %v3350, 4
          %v3353 = vrot.slane %v2658, 5
          %v3354 = vsel %vm2011, %v3352, %v3353
          %v3355 = vrot.slane %v3353, 4
          %v3356 = vrot.slane %v2659, 5
          %v3357 = vsel %vm2011, %v3355, %v3356
          %v3358 = vrot.slane %v3356, 4
          %v3359 = vrot.slane %v2660, 5
          %v3360 = vsel %vm2011, %v3358, %v3359
          %v3361 = vrot.slane %v3359, 4
          %v3362 = vrot.slane %v2661, 5
          %v3363 = vsel %vm2011, %v3361, %v3362
          %v3364 = vrot.slane %v3362, 4
          %v3365 = vrot.slane %v2662, 5
          %v3366 = vsel %vm2011, %v3364, %v3365
          %v3367 = vrot.slane %v3365, 4
          %v3368 = vrot.slane %v2663, 5
          %v3369 = vsel %vm2011, %v3367, %v3368
          %v3370 = vrot.slane %v3368, 4
          %vm3390 = vcmask 519171
          %3391 = vst.msk [vmem:[#allocation3 + $0x10] sm:$0x8] %vm3390, %v3318
          %3392 = vst.msk [vmem:[#allocation3 + $0x24] sm:$0xf] %vm2666, %v3321
          %3393 = vst.msk [vmem:[#allocation3 + $0x38] sm:$0xf] %vm2666, %v3324
          %3394 = vst.msk [vmem:[#allocation3 + $0x4c] sm:$0xf] %vm2666, %v3327
          %3395 = vst.msk [vmem:[#allocation3 + $0x60] sm:$0xf] %vm2666, %v3330
          %3396 = vst.msk [vmem:[#allocation3 + $0x74] sm:$0xf] %vm2666, %v3333
          %3397 = vst.msk [vmem:[#allocation3 + $0x88] sm:$0xf] %vm2666, %v3336
          %3398 = vst.msk [vmem:[#allocation3 + $0x9c] sm:$0xf] %vm2666, %v3339
          %3399 = vst.msk [vmem:[#allocation3 + $0xb0] sm:$0xf] %vm2666, %v3342
          %3400 = vst.msk [vmem:[#allocation3 + $0xc4] sm:$0xf] %vm2666, %v3345
          %3401 = vst.msk [vmem:[#allocation3 + $0xd8] sm:$0xf] %vm2666, %v3348
          %3402 = vst.msk [vmem:[#allocation3 + $0xec] sm:$0xf] %vm2666, %v3351
          %3403 = vst.msk [vmem:[#allocation3 + $0x100] sm:$0xf] %vm2666, %v3354
          %3404 = vst.msk [vmem:[#allocation3 + $0x114] sm:$0xf] %vm2666, %v3357
          %3405 = vst.msk [vmem:[#allocation3 + $0x128] sm:$0xf] %vm2666, %v3360
          %3406 = vst.msk [vmem:[#allocation3 + $0x13c] sm:$0xf] %vm2666, %v3363
          %3407 = vst.msk [vmem:[#allocation3 + $0x150] sm:$0xf] %vm2666, %v3366
          %3408 = vst.msk [vmem:[#allocation3 + $0x164] sm:$0xf] %vm2666, %v3369
          %vm3409 = vcmask 518144
          %3410 = vst.msk [vmem:[#allocation3 + $0x178] sm:$0x7] %vm3409, %v3370
          %v3411 = vld [vmem:[#allocation3 + $0x28] sm:$0xff]
          %v3412 = vld [vmem:[#allocation3 + $0x30] sm:$0xff]
          %v3413 = vld [vmem:[#allocation3 + $0x38] sm:$0xf]
          %v3414 = vld [vmem:[#allocation3 + $0x3c] sm:$0xff]
          %v3415 = vld [vmem:[#allocation3 + $0x44] sm:$0xff]
          %v3416 = vld [vmem:[#allocation3 + $0x4c] sm:$0xf]
          %v3417 = vld [vmem:[#allocation3 + $0x50] sm:$0xff]
          %v3418 = vld [vmem:[#allocation3 + $0x58] sm:$0xff]
          %v3419 = vld [vmem:[#allocation3 + $0x60] sm:$0xf]
          %v3420 = vld [vmem:[#allocation3 + $0x64] sm:$0xff]
          %v3421 = vld [vmem:[#allocation3 + $0x6c] sm:$0xff]
          %v3422 = vld [vmem:[#allocation3 + $0x74] sm:$0xf]
          %v3423 = vld [vmem:[#allocation3 + $0x78] sm:$0xff]
          %v3424 = vld [vmem:[#allocation3 + $0x80] sm:$0xff]
          %v3425 = vld [vmem:[#allocation3 + $0x88] sm:$0xf]
          %v3426 = vld [vmem:[#allocation3 + $0x8c] sm:$0xff]
          %v3427 = vld [vmem:[#allocation3 + $0x94] sm:$0xff]
          %v3428 = vld [vmem:[#allocation3 + $0x9c] sm:$0xf]
          %v3429 = vld [vmem:[#allocation3 + $0xa0] sm:$0xff]
          %v3430 = vld [vmem:[#allocation3 + $0xa8] sm:$0xff]
          %v3431 = vld [vmem:[#allocation3 + $0xb0] sm:$0xf]
          %v3432 = vld [vmem:[#allocation3 + $0xb4] sm:$0xff]
          %v3433 = vld [vmem:[#allocation3 + $0xbc] sm:$0xff]
          %v3434 = vld [vmem:[#allocation3 + $0xc4] sm:$0xf]
          %v3435 = vld [vmem:[#allocation3 + $0xc8] sm:$0xff]
          %v3436 = vld [vmem:[#allocation3 + $0xd0] sm:$0xff]
          %v3437 = vld [vmem:[#allocation3 + $0xd8] sm:$0xf]
          %v3438 = vld [vmem:[#allocation3 + $0xdc] sm:$0xff]
          %v3439 = vld [vmem:[#allocation3 + $0xe4] sm:$0xff]
          %v3440 = vld [vmem:[#allocation3 + $0xec] sm:$0xf]
          %v3441 = vld [vmem:[#allocation3 + $0xf0] sm:$0xff]
          %v3442 = vld [vmem:[#allocation3 + $0xf8] sm:$0xff]
          %v3443 = vld [vmem:[#allocation3 + $0x100] sm:$0xf]
          %v3444 = vld [vmem:[#allocation3 + $0x104] sm:$0xff]
          %v3445 = vld [vmem:[#allocation3 + $0x10c] sm:$0xff]
          %v3446 = vld [vmem:[#allocation3 + $0x114] sm:$0xf]
          %v3447 = vld [vmem:[#allocation3 + $0x118] sm:$0xff]
          %v3448 = vld [vmem:[#allocation3 + $0x120] sm:$0xff]
          %v3449 = vld [vmem:[#allocation3 + $0x128] sm:$0xf]
          %v3450 = vld [vmem:[#allocation3 + $0x12c] sm:$0xff]
          %v3451 = vld [vmem:[#allocation3 + $0x134] sm:$0xff]
          %v3452 = vld [vmem:[#allocation3 + $0x13c] sm:$0xf]
          %v3453 = vld [vmem:[#allocation3 + $0x140] sm:$0xff]
          %v3454 = vld [vmem:[#allocation3 + $0x148] sm:$0xff]
          %v3455 = vld [vmem:[#allocation3 + $0x150] sm:$0xf]
          %v3456 = vld [vmem:[#allocation3 + $0x154] sm:$0xff]
          %v3457 = vld [vmem:[#allocation3 + $0x15c] sm:$0xff]
          %v3458 = vld [vmem:[#allocation3 + $0x164] sm:$0xf]
          %v3459 = vld [vmem:[#allocation3 + $0x168] sm:$0xff]
          %v3460 = vld [vmem:[#allocation3 + $0x170] sm:$0xff]
          %v3461 = vld [vmem:[#allocation3 + $0x178] sm:$0xf]
          %v3462 = vld [vmem:[#allocation3 + $0x17c] sm:$0xff]
          %v3463 = vld [vmem:[#allocation3 + $0x184] sm:$0xff]
          %v3464 = vld [vmem:[#allocation3 + $0x18c] sm:$0xf]
          %v3465 = vld [vmem:[#allocation7 + $0xa0] sm:$0xf]
          %v3466 = vld [vmem:[#allocation7 + $0xa4] sm:$0xf]
          %v3467 = vld [vmem:[#allocation7 + $0xa8] sm:$0xf]
          %v3468 = vld [vmem:[#allocation7 + $0xac] sm:$0xf]
          %v3469 = vld [vmem:[#allocation7 + $0xb0] sm:$0xf]
          %v3470 = vld [vmem:[#allocation7 + $0xb4] sm:$0xf]
          %v3471 = vld [vmem:[#allocation7 + $0xb8] sm:$0xf]
          %v3472 = vld [vmem:[#allocation7 + $0xbc] sm:$0xf]
          %v3473 = vld [vmem:[#allocation7 + $0xc0] sm:$0xf]
          %v3474 = vld [vmem:[#allocation7 + $0xc4] sm:$0xf]
          %v3475 = vld [vmem:[#allocation7 + $0xc8] sm:$0xf]
          %v3476 = vld [vmem:[#allocation7 + $0xcc] sm:$0xf]
          %v3477 = vld [vmem:[#allocation7 + $0xd0] sm:$0xf]
          %v3478 = vld [vmem:[#allocation7 + $0xd4] sm:$0xf]
          %v3479 = vld [vmem:[#allocation7 + $0xd8] sm:$0xf]
          %v3480 = vld [vmem:[#allocation7 + $0xdc] sm:$0xf]
          %v3481 = vld [vmem:[#allocation7 + $0xe0] sm:$0xf]
          %v3482 = vld [vmem:[#allocation7 + $0xe4] sm:$0xf]
          %v3483 = vld [vmem:[#allocation7 + $0xe8] sm:$0xf]
          %v3484 = vld [vmem:[#allocation7 + $0xec] sm:$0xf]
          %v3485 = vld [vmem:[#allocation7 + $0xf0] sm:$0xf]
          %v3486 = vld [vmem:[#allocation7 + $0xf4] sm:$0xf]
          %v3487 = vld [vmem:[#allocation7 + $0xf8] sm:$0xf]
          %v3488 = vld [vmem:[#allocation7 + $0xfc] sm:$0xf]
          %v3489 = vld [vmem:[#allocation7 + $0x100] sm:$0xf]
          %v3490 = vld [vmem:[#allocation7 + $0x104] sm:$0xf]
          %v3491 = vld [vmem:[#allocation7 + $0x108] sm:$0xf]
          %v3492 = vld [vmem:[#allocation7 + $0x10c] sm:$0xf]
          %v3493 = vld [vmem:[#allocation7 + $0x110] sm:$0xf]
          %v3494 = vld [vmem:[#allocation7 + $0x114] sm:$0xf]
          %v3495 = vld [vmem:[#allocation7 + $0x118] sm:$0xf]
          %v3496 = vld [vmem:[#allocation7 + $0x11c] sm:$0xf]
          %v3497 = vld [vmem:[#allocation7 + $0x120] sm:$0xf]
          %v3498 = vld [vmem:[#allocation7 + $0x124] sm:$0xf]
          %v3499 = vld [vmem:[#allocation7 + $0x128] sm:$0xf]
          %v3500 = vld [vmem:[#allocation7 + $0x12c] sm:$0xf]
          %v3501 = vld [vmem:[#allocation7 + $0x130] sm:$0xf]
          %v3502 = vld [vmem:[#allocation7 + $0x134] sm:$0xf]
          %v3503 = vld [vmem:[#allocation7 + $0x138] sm:$0xf]
          %v3504 = vld [vmem:[#allocation7 + $0x13c] sm:$0xf]
          %v3505 = vld [vmem:[#allocation7 + $0x140] sm:$0xf]
          %v3506 = vld [vmem:[#allocation7 + $0x144] sm:$0xf]
          %v3507 = vld [vmem:[#allocation7 + $0x148] sm:$0xf]
          %v3508 = vld [vmem:[#allocation7 + $0x14c] sm:$0xf]
          %v3509 = vld [vmem:[#allocation7 + $0x150] sm:$0xf]
          %v3510 = vld [vmem:[#allocation7 + $0x154] sm:$0xf]
          %v3511 = vld [vmem:[#allocation7 + $0x158] sm:$0xf]
          %v3512 = vld [vmem:[#allocation7 + $0x15c] sm:$0xf]
          %v3513 = vld [vmem:[#allocation7 + $0x160] sm:$0xf]
          %v3514 = vld [vmem:[#allocation7 + $0x164] sm:$0xf]
          %v3515 = vld [vmem:[#allocation7 + $0x168] sm:$0xf]
          %v3516 = vld [vmem:[#allocation7 + $0x16c] sm:$0xf]
          %v3517 = vld [vmem:[#allocation7 + $0x170] sm:$0xf]
          %v3518 = vld [vmem:[#allocation7 + $0x174] sm:$0xf]
          %v3519 = vld [vmem:[#allocation7 + $0x178] sm:$0xf]
          %v3520 = vld [vmem:[#allocation7 + $0x17c] sm:$0xf]
          %v3521 = vld [vmem:[#allocation7 + $0x180] sm:$0xf]
          %v3522 = vld [vmem:[#allocation7 + $0x184] sm:$0xf]
          %v3523 = vld [vmem:[#allocation7 + $0x188] sm:$0xf]
          %v3524 = vld [vmem:[#allocation7 + $0x18c] sm:$0xf]
          %v3525 = vld [vmem:[#allocation7 + $0x190] sm:$0xf]
          %v3526 = vld [vmem:[#allocation7 + $0x194] sm:$0xf]
          %v3527 = vld [vmem:[#allocation7 + $0x198] sm:$0xf]
          %v3528 = vld [vmem:[#allocation7 + $0x19c] sm:$0xf]
          %v3529 = vld [vmem:[#allocation7 + $0x1a0] sm:$0xf]
          %v3530 = vld [vmem:[#allocation7 + $0x1a4] sm:$0xf]
          %v3531 = vld [vmem:[#allocation7 + $0x1a8] sm:$0xf]
          %v3532 = vld [vmem:[#allocation7 + $0x1ac] sm:$0xf]
          %v3533 = vld [vmem:[#allocation7 + $0x1b0] sm:$0xf]
          %v3534 = vld [vmem:[#allocation7 + $0x1b4] sm:$0xf]
          %v3535 = vld [vmem:[#allocation7 + $0x1b8] sm:$0xf]
          %v3536 = vld [vmem:[#allocation7 + $0x1bc] sm:$0xf]
          %v3537 = vld [vmem:[#allocation10 + $0x2] ss:$0 sm:$0xff]
          %v3592 = vunpack.c.l.b16 %v3411
          %v3593 = vunpack.c.h.b16 %v3411
          %v3594 = vunpack.c.l.b16 %v3412
          %v3595 = vunpack.c.h.b16 %v3412
          %v3596 = vunpack.c.l.b16 %v3413
          %v3597 = vunpack.c.l.b16 %v3414
          %v3598 = vunpack.c.h.b16 %v3414
          %v3599 = vunpack.c.l.b16 %v3415
          %v3600 = vunpack.c.h.b16 %v3415
          %v3601 = vunpack.c.l.b16 %v3416
          %v3602 = vunpack.c.l.b16 %v3417
          %v3603 = vunpack.c.h.b16 %v3417
          %v3604 = vunpack.c.l.b16 %v3418
          %v3605 = vunpack.c.h.b16 %v3418
          %v3606 = vunpack.c.l.b16 %v3419
          %v3607 = vunpack.c.l.b16 %v3420
          %v3608 = vunpack.c.h.b16 %v3420
          %v3609 = vunpack.c.l.b16 %v3421
          %v3610 = vunpack.c.h.b16 %v3421
          %v3611 = vunpack.c.l.b16 %v3422
          %v3612 = vunpack.c.l.b16 %v3423
          %v3613 = vunpack.c.h.b16 %v3423
          %v3614 = vunpack.c.l.b16 %v3424
          %v3615 = vunpack.c.h.b16 %v3424
          %v3616 = vunpack.c.l.b16 %v3425
          %v3617 = vunpack.c.l.b16 %v3426
          %v3618 = vunpack.c.h.b16 %v3426
          %v3619 = vunpack.c.l.b16 %v3427
          %v3620 = vunpack.c.h.b16 %v3427
          %v3621 = vunpack.c.l.b16 %v3428
          %v3622 = vunpack.c.l.b16 %v3429
          %v3623 = vunpack.c.h.b16 %v3429
          %v3624 = vunpack.c.l.b16 %v3430
          %v3625 = vunpack.c.h.b16 %v3430
          %v3626 = vunpack.c.l.b16 %v3431
          %v3627 = vunpack.c.l.b16 %v3432
          %v3628 = vunpack.c.h.b16 %v3432
          %v3629 = vunpack.c.l.b16 %v3433
          %v3630 = vunpack.c.h.b16 %v3433
          %v3631 = vunpack.c.l.b16 %v3434
          %v3632 = vunpack.c.l.b16 %v3435
          %v3633 = vunpack.c.h.b16 %v3435
          %v3634 = vunpack.c.l.b16 %v3436
          %v3635 = vunpack.c.h.b16 %v3436
          %v3636 = vunpack.c.l.b16 %v3437
          %v3637 = vunpack.c.l.b16 %v3438
          %v3638 = vunpack.c.h.b16 %v3438
          %v3639 = vunpack.c.l.b16 %v3439
          %v3640 = vunpack.c.h.b16 %v3439
          %v3641 = vunpack.c.l.b16 %v3440
          %v3642 = vunpack.c.l.b16 %v3441
          %v3643 = vunpack.c.h.b16 %v3441
          %v3644 = vunpack.c.l.b16 %v3442
          %v3645 = vunpack.c.h.b16 %v3442
          %v3646 = vunpack.c.l.b16 %v3443
          %v3647 = vunpack.c.l.b16 %v3444
          %v3648 = vunpack.c.h.b16 %v3444
          %v3649 = vunpack.c.l.b16 %v3445
          %v3650 = vunpack.c.h.b16 %v3445
          %v3651 = vunpack.c.l.b16 %v3446
          %v3652 = vunpack.c.l.b16 %v3447
          %v3653 = vunpack.c.h.b16 %v3447
          %v3654 = vunpack.c.l.b16 %v3448
          %v3655 = vunpack.c.h.b16 %v3448
          %v3656 = vunpack.c.l.b16 %v3449
          %v3657 = vunpack.c.l.b16 %v3450
          %v3658 = vunpack.c.h.b16 %v3450
          %v3659 = vunpack.c.l.b16 %v3451
          %v3660 = vunpack.c.h.b16 %v3451
          %v3661 = vunpack.c.l.b16 %v3452
          %v3662 = vunpack.c.l.b16 %v3453
          %v3663 = vunpack.c.h.b16 %v3453
          %v3664 = vunpack.c.l.b16 %v3454
          %v3665 = vunpack.c.h.b16 %v3454
          %v3666 = vunpack.c.l.b16 %v3455
          %v3667 = vunpack.c.l.b16 %v3456
          %v3668 = vunpack.c.h.b16 %v3456
          %v3669 = vunpack.c.l.b16 %v3457
          %v3670 = vunpack.c.h.b16 %v3457
          %v3671 = vunpack.c.l.b16 %v3458
          %v3672 = vunpack.c.l.b16 %v3459
          %v3673 = vunpack.c.h.b16 %v3459
          %v3674 = vunpack.c.l.b16 %v3460
          %v3675 = vunpack.c.h.b16 %v3460
          %v3676 = vunpack.c.l.b16 %v3461
          %v3677 = vunpack.c.l.b16 %v3462
          %v3678 = vunpack.c.h.b16 %v3462
          %v3679 = vunpack.c.l.b16 %v3463
          %v3680 = vunpack.c.h.b16 %v3463
          %v3681 = vunpack.c.l.b16 %v3464
          %v3682 = vpack.c.b16 %v3597, %v3592
          %v3683 = vpack.c.b16 %v3598, %v3593
          %v3684 = vpack.c.b16 %v3599, %v3594
          %v3685 = vpack.c.b16 %v3600, %v3595
          %v3686 = vpack.c.b16 %v3601, %v3596
          %v3687 = vpack.c.b16 %v3607, %v3602
          %v3688 = vpack.c.b16 %v3608, %v3603
          %v3689 = vpack.c.b16 %v3609, %v3604
          %v3690 = vpack.c.b16 %v3610, %v3605
          %v3691 = vpack.c.b16 %v3611, %v3606
          %v3692 = vpack.c.b16 %v3617, %v3612
          %v3693 = vpack.c.b16 %v3618, %v3613
          %v3694 = vpack.c.b16 %v3619, %v3614
          %v3695 = vpack.c.b16 %v3620, %v3615
          %v3696 = vpack.c.b16 %v3621, %v3616
          %v3697 = vpack.c.b16 %v3627, %v3622
          %v3698 = vpack.c.b16 %v3628, %v3623
          %v3699 = vpack.c.b16 %v3629, %v3624
          %v3700 = vpack.c.b16 %v3630, %v3625
          %v3701 = vpack.c.b16 %v3631, %v3626
          %v3702 = vpack.c.b16 %v3637, %v3632
          %v3703 = vpack.c.b16 %v3638, %v3633
          %v3704 = vpack.c.b16 %v3639, %v3634
          %v3705 = vpack.c.b16 %v3640, %v3635
          %v3706 = vpack.c.b16 %v3641, %v3636
          %v3707 = vpack.c.b16 %v3647, %v3642
          %v3708 = vpack.c.b16 %v3648, %v3643
          %v3709 = vpack.c.b16 %v3649, %v3644
          %v3710 = vpack.c.b16 %v3650, %v3645
          %v3711 = vpack.c.b16 %v3651, %v3646
          %v3712 = vpack.c.b16 %v3657, %v3652
          %v3713 = vpack.c.b16 %v3658, %v3653
          %v3714 = vpack.c.b16 %v3659, %v3654
          %v3715 = vpack.c.b16 %v3660, %v3655
          %v3716 = vpack.c.b16 %v3661, %v3656
          %v3717 = vpack.c.b16 %v3667, %v3662
          %v3718 = vpack.c.b16 %v3668, %v3663
          %v3719 = vpack.c.b16 %v3669, %v3664
          %v3720 = vpack.c.b16 %v3670, %v3665
          %v3721 = vpack.c.b16 %v3671, %v3666
          %v3722 = vpack.c.b16 %v3677, %v3672
          %v3723 = vpack.c.b16 %v3678, %v3673
          %v3724 = vpack.c.b16 %v3679, %v3674
          %v3725 = vpack.c.b16 %v3680, %v3675
          %v3726 = vpack.c.b16 %v3681, %v3676
          %v3835 = vunpack.c.l.b16 %v3465
          %v3836 = vunpack.c.l.b16 %v3466
          %v3837 = vunpack.c.l.b16 %v3467
          %v3838 = vunpack.c.l.b16 %v3468
          %v3839 = vunpack.c.l.b16 %v3469
          %v3840 = vunpack.c.l.b16 %v3470
          %v3841 = vunpack.c.l.b16 %v3471
          %v3842 = vunpack.c.l.b16 %v3472
          %v3843 = vunpack.c.l.b16 %v3473
          %v3844 = vunpack.c.l.b16 %v3474
          %v3845 = vunpack.c.l.b16 %v3475
          %v3846 = vunpack.c.l.b16 %v3476
          %v3847 = vunpack.c.l.b16 %v3477
          %v3848 = vunpack.c.l.b16 %v3478
          %v3849 = vunpack.c.l.b16 %v3479
          %v3850 = vunpack.c.l.b16 %v3480
          %v3851 = vunpack.c.l.b16 %v3481
          %v3852 = vunpack.c.l.b16 %v3482
          %v3853 = vunpack.c.l.b16 %v3483
          %v3854 = vunpack.c.l.b16 %v3484
          %v3855 = vunpack.c.l.b16 %v3485
          %v3856 = vunpack.c.l.b16 %v3486
          %v3857 = vunpack.c.l.b16 %v3487
          %v3858 = vunpack.c.l.b16 %v3488
          %v3859 = vunpack.c.l.b16 %v3489
          %v3860 = vunpack.c.l.b16 %v3490
          %v3861 = vunpack.c.l.b16 %v3491
          %v3862 = vunpack.c.l.b16 %v3492
          %v3863 = vunpack.c.l.b16 %v3493
          %v3864 = vunpack.c.l.b16 %v3494
          %v3865 = vunpack.c.l.b16 %v3495
          %v3866 = vunpack.c.l.b16 %v3496
          %v3867 = vunpack.c.l.b16 %v3497
          %v3868 = vunpack.c.l.b16 %v3498
          %v3869 = vunpack.c.l.b16 %v3499
          %v3870 = vunpack.c.l.b16 %v3500
          %v3871 = vunpack.c.l.b16 %v3501
          %v3872 = vunpack.c.l.b16 %v3502
          %v3873 = vunpack.c.l.b16 %v3503
          %v3874 = vunpack.c.l.b16 %v3504
          %v3875 = vunpack.c.l.b16 %v3505
          %v3876 = vunpack.c.l.b16 %v3506
          %v3877 = vunpack.c.l.b16 %v3507
          %v3878 = vunpack.c.l.b16 %v3508
          %v3879 = vunpack.c.l.b16 %v3509
          %v3880 = vunpack.c.l.b16 %v3510
          %v3881 = vunpack.c.l.b16 %v3511
          %v3882 = vunpack.c.l.b16 %v3512
          %v3883 = vunpack.c.l.b16 %v3513
          %v3884 = vunpack.c.l.b16 %v3514
          %v3885 = vunpack.c.l.b16 %v3515
          %v3886 = vunpack.c.l.b16 %v3516
          %v3887 = vunpack.c.l.b16 %v3517
          %v3888 = vunpack.c.l.b16 %v3518
          %v3889 = vunpack.c.l.b16 %v3519
          %v3890 = vunpack.c.l.b16 %v3520
          %v3891 = vunpack.c.l.b16 %v3521
          %v3892 = vunpack.c.l.b16 %v3522
          %v3893 = vunpack.c.l.b16 %v3523
          %v3894 = vunpack.c.l.b16 %v3524
          %v3895 = vunpack.c.l.b16 %v3525
          %v3896 = vunpack.c.l.b16 %v3526
          %v3897 = vunpack.c.l.b16 %v3527
          %v3898 = vunpack.c.l.b16 %v3528
          %v3899 = vunpack.c.l.b16 %v3529
          %v3900 = vunpack.c.l.b16 %v3530
          %v3901 = vunpack.c.l.b16 %v3531
          %v3902 = vunpack.c.l.b16 %v3532
          %v3903 = vunpack.c.l.b16 %v3533
          %v3904 = vunpack.c.l.b16 %v3534
          %v3905 = vunpack.c.l.b16 %v3535
          %v3906 = vunpack.c.l.b16 %v3536
          %v3907 = vpack.c.b16 %v3836, %v3835
          %v3908 = vpack.c.b16 %v3838, %v3837
          %v3909 = vpack.c.b16 %v3840, %v3839
          %v3910 = vpack.c.b16 %v3842, %v3841
          %v3911 = vpack.c.b16 %v3844, %v3843
          %v3912 = vpack.c.b16 %v3846, %v3845
          %v3913 = vpack.c.b16 %v3848, %v3847
          %v3914 = vpack.c.b16 %v3850, %v3849
          %v3915 = vpack.c.b16 %v3852, %v3851
          %v3916 = vpack.c.b16 %v3854, %v3853
          %v3917 = vpack.c.b16 %v3856, %v3855
          %v3918 = vpack.c.b16 %v3858, %v3857
          %v3919 = vpack.c.b16 %v3860, %v3859
          %v3920 = vpack.c.b16 %v3862, %v3861
          %v3921 = vpack.c.b16 %v3864, %v3863
          %v3922 = vpack.c.b16 %v3866, %v3865
          %v3923 = vpack.c.b16 %v3868, %v3867
          %v3924 = vpack.c.b16 %v3870, %v3869
          %v3925 = vpack.c.b16 %v3872, %v3871
          %v3926 = vpack.c.b16 %v3874, %v3873
          %v3927 = vpack.c.b16 %v3876, %v3875
          %v3928 = vpack.c.b16 %v3878, %v3877
          %v3929 = vpack.c.b16 %v3880, %v3879
          %v3930 = vpack.c.b16 %v3882, %v3881
          %v3931 = vpack.c.b16 %v3884, %v3883
          %v3932 = vpack.c.b16 %v3886, %v3885
          %v3933 = vpack.c.b16 %v3888, %v3887
          %v3934 = vpack.c.b16 %v3890, %v3889
          %v3935 = vpack.c.b16 %v3892, %v3891
          %v3936 = vpack.c.b16 %v3894, %v3893
          %v3937 = vpack.c.b16 %v3896, %v3895
          %v3938 = vpack.c.b16 %v3898, %v3897
          %v3939 = vpack.c.b16 %v3900, %v3899
          %v3940 = vpack.c.b16 %v3902, %v3901
          %v3941 = vpack.c.b16 %v3904, %v3903
          %v3942 = vpack.c.b16 %v3906, %v3905
          %vm3979 = vcmask 523264
          %v3981 = vsel %vm3979, %v3686, 0
          %v3984 = vsel %vm3979, %v3691, 0
          %v3987 = vsel %vm3979, %v3696, 0
          %v3990 = vsel %vm3979, %v3701, 0
          %v3993 = vsel %vm3979, %v3706, 0
          %v3996 = vsel %vm3979, %v3711, 0
          %v3999 = vsel %vm3979, %v3716, 0
          %v4002 = vsel %vm3979, %v3721, 0
          %v4005 = vsel %vm3979, %v3726, 0
          %4007 = vmatpush.bf16.msra.mxu0 %v3914
          %4008 = vmatpush.bf16.msra.mxu0 %v3913
          %4009 = vmatpush.bf16.msra.mxu0 %v3912
          %4010 = vmatpush.bf16.msra.mxu0 %v3911
          %4011 = vmatpush.bf16.msra.mxu0 %v3910
          %4012 = vmatpush.bf16.msra.mxu0 %v3909
          %4013 = vmatpush.bf16.msra.mxu0 %v3908
          %4014 = vmatpush.bf16.msra.mxu0 %v3907
          %4015 = vmatmul.bf16.gmra.mxu0 %v3682
          %v4016 = vpop.f32.mrf.mxu0
          %v4017 = vadd.f32 %v3537, %v4016
          %v4018 = vpop.f32.mrf.mxu0
          %v4019 = vadd.f32 %v3537, %v4018
          %4020 = vmatmul.bf16.gmra.mxu0 %v3687
          %v4021 = vpop.f32.mrf.mxu0
          %v4022 = vadd.f32 %v3537, %v4021
          %v4023 = vpop.f32.mrf.mxu0
          %v4024 = vadd.f32 %v3537, %v4023
          %4025 = vmatmul.bf16.gmra.mxu0 %v3692
          %v4026 = vpop.f32.mrf.mxu0
          %v4027 = vadd.f32 %v3537, %v4026
          %v4028 = vpop.f32.mrf.mxu0
          %v4029 = vadd.f32 %v3537, %v4028
          %4030 = vmatmul.bf16.gmra.mxu0 %v3697
          %v4031 = vpop.f32.mrf.mxu0
          %v4032 = vadd.f32 %v3537, %v4031
          %v4033 = vpop.f32.mrf.mxu0
          %v4034 = vadd.f32 %v3537, %v4033
          %4035 = vmatmul.bf16.gmra.mxu0 %v3702
          %v4036 = vpop.f32.mrf.mxu0
          %v4037 = vadd.f32 %v3537, %v4036
          %v4038 = vpop.f32.mrf.mxu0
          %v4039 = vadd.f32 %v3537, %v4038
          %4040 = vmatmul.bf16.gmra.mxu0 %v3707
          %v4041 = vpop.f32.mrf.mxu0
          %v4042 = vadd.f32 %v3537, %v4041
          %v4043 = vpop.f32.mrf.mxu0
          %v4044 = vadd.f32 %v3537, %v4043
          %4045 = vmatmul.bf16.gmra.mxu0 %v3712
          %v4046 = vpop.f32.mrf.mxu0
          %v4047 = vadd.f32 %v3537, %v4046
          %v4048 = vpop.f32.mrf.mxu0
          %v4049 = vadd.f32 %v3537, %v4048
          %4050 = vmatmul.bf16.gmra.mxu0 %v3717
          %v4051 = vpop.f32.mrf.mxu0
          %v4052 = vadd.f32 %v3537, %v4051
          %v4053 = vpop.f32.mrf.mxu0
          %v4054 = vadd.f32 %v3537, %v4053
          %4055 = vmatmul.bf16.gmra.mxu0 %v3722
          %v4056 = vpop.f32.mrf.mxu0
          %v4057 = vadd.f32 %v3537, %v4056
          %v4058 = vpop.f32.mrf.mxu0
          %v4059 = vadd.f32 %v3537, %v4058
          %4060 = vdwg.mxu0
          %4061 = vmatpush.bf16.msra.mxu0 %v3922
          %4062 = vmatpush.bf16.msra.mxu0 %v3921
          %4063 = vmatpush.bf16.msra.mxu0 %v3920
          %4064 = vmatpush.bf16.msra.mxu0 %v3919
          %4065 = vmatpush.bf16.msra.mxu0 %v3918
          %4066 = vmatpush.bf16.msra.mxu0 %v3917
          %4067 = vmatpush.bf16.msra.mxu0 %v3916
          %4068 = vmatpush.bf16.msra.mxu0 %v3915
          %4069 = vmatmul.bf16.gmra.mxu0 %v3683
          %v4070 = vpop.f32.mrf.mxu0
          %v4071 = vadd.f32 %v4017, %v4070
          %v4072 = vpop.f32.mrf.mxu0
          %v4073 = vadd.f32 %v4019, %v4072
          %4074 = vmatmul.bf16.gmra.mxu0 %v3688
          %v4075 = vpop.f32.mrf.mxu0
          %v4076 = vadd.f32 %v4022, %v4075
          %v4077 = vpop.f32.mrf.mxu0
          %v4078 = vadd.f32 %v4024, %v4077
          %4079 = vmatmul.bf16.gmra.mxu0 %v3693
          %v4080 = vpop.f32.mrf.mxu0
          %v4081 = vadd.f32 %v4027, %v4080
          %v4082 = vpop.f32.mrf.mxu0
          %v4083 = vadd.f32 %v4029, %v4082
          %4084 = vmatmul.bf16.gmra.mxu0 %v3698
          %v4085 = vpop.f32.mrf.mxu0
          %v4086 = vadd.f32 %v4032, %v4085
          %v4087 = vpop.f32.mrf.mxu0
          %v4088 = vadd.f32 %v4034, %v4087
          %4089 = vmatmul.bf16.gmra.mxu0 %v3703
          %v4090 = vpop.f32.mrf.mxu0
          %v4091 = vadd.f32 %v4037, %v4090
          %v4092 = vpop.f32.mrf.mxu0
          %v4093 = vadd.f32 %v4039, %v4092
          %4094 = vmatmul.bf16.gmra.mxu0 %v3708
          %v4095 = vpop.f32.mrf.mxu0
          %v4096 = vadd.f32 %v4042, %v4095
          %v4097 = vpop.f32.mrf.mxu0
          %v4098 = vadd.f32 %v4044, %v4097
          %4099 = vmatmul.bf16.gmra.mxu0 %v3713
          %v4100 = vpop.f32.mrf.mxu0
          %v4101 = vadd.f32 %v4047, %v4100
          %v4102 = vpop.f32.mrf.mxu0
          %v4103 = vadd.f32 %v4049, %v4102
          %4104 = vmatmul.bf16.gmra.mxu0 %v3718
          %v4105 = vpop.f32.mrf.mxu0
          %v4106 = vadd.f32 %v4052, %v4105
          %v4107 = vpop.f32.mrf.mxu0
          %v4108 = vadd.f32 %v4054, %v4107
          %4109 = vmatmul.bf16.gmra.mxu0 %v3723
          %v4110 = vpop.f32.mrf.mxu0
          %v4111 = vadd.f32 %v4057, %v4110
          %v4112 = vpop.f32.mrf.mxu0
          %v4113 = vadd.f32 %v4059, %v4112
          %4114 = vdwg.mxu0
          %4115 = vmatpush.bf16.msra.mxu0 %v3930
          %4116 = vmatpush.bf16.msra.mxu0 %v3929
          %4117 = vmatpush.bf16.msra.mxu0 %v3928
          %4118 = vmatpush.bf16.msra.mxu0 %v3927
          %4119 = vmatpush.bf16.msra.mxu0 %v3926
          %4120 = vmatpush.bf16.msra.mxu0 %v3925
          %4121 = vmatpush.bf16.msra.mxu0 %v3924
          %4122 = vmatpush.bf16.msra.mxu0 %v3923
          %4123 = vmatmul.bf16.gmra.mxu0 %v3684
          %v4124 = vpop.f32.mrf.mxu0
          %v4125 = vadd.f32 %v4071, %v4124
          %v4126 = vpop.f32.mrf.mxu0
          %v4127 = vadd.f32 %v4073, %v4126
          %4128 = vmatmul.bf16.gmra.mxu0 %v3689
          %v4129 = vpop.f32.mrf.mxu0
          %v4130 = vadd.f32 %v4076, %v4129
          %v4131 = vpop.f32.mrf.mxu0
          %v4132 = vadd.f32 %v4078, %v4131
          %4133 = vmatmul.bf16.gmra.mxu0 %v3694
          %v4134 = vpop.f32.mrf.mxu0
          %v4135 = vadd.f32 %v4081, %v4134
          %v4136 = vpop.f32.mrf.mxu0
          %v4137 = vadd.f32 %v4083, %v4136
          %4138 = vmatmul.bf16.gmra.mxu0 %v3699
          %v4139 = vpop.f32.mrf.mxu0
          %v4140 = vadd.f32 %v4086, %v4139
          %v4141 = vpop.f32.mrf.mxu0
          %v4142 = vadd.f32 %v4088, %v4141
          %4143 = vmatmul.bf16.gmra.mxu0 %v3704
          %v4144 = vpop.f32.mrf.mxu0
          %v4145 = vadd.f32 %v4091, %v4144
          %v4146 = vpop.f32.mrf.mxu0
          %v4147 = vadd.f32 %v4093, %v4146
          %4148 = vmatmul.bf16.gmra.mxu0 %v3709
          %v4149 = vpop.f32.mrf.mxu0
          %v4150 = vadd.f32 %v4096, %v4149
          %v4151 = vpop.f32.mrf.mxu0
          %v4152 = vadd.f32 %v4098, %v4151
          %4153 = vmatmul.bf16.gmra.mxu0 %v3714
          %v4154 = vpop.f32.mrf.mxu0
          %v4155 = vadd.f32 %v4101, %v4154
          %v4156 = vpop.f32.mrf.mxu0
          %v4157 = vadd.f32 %v4103, %v4156
          %4158 = vmatmul.bf16.gmra.mxu0 %v3719
          %v4159 = vpop.f32.mrf.mxu0
          %v4160 = vadd.f32 %v4106, %v4159
          %v4161 = vpop.f32.mrf.mxu0
          %v4162 = vadd.f32 %v4108, %v4161
          %4163 = vmatmul.bf16.gmra.mxu0 %v3724
          %v4164 = vpop.f32.mrf.mxu0
          %v4165 = vadd.f32 %v4111, %v4164
          %v4166 = vpop.f32.mrf.mxu0
          %v4167 = vadd.f32 %v4113, %v4166
          %4168 = vdwg.mxu0
          %4169 = vmatpush.bf16.msra.mxu0 %v3938
          %4170 = vmatpush.bf16.msra.mxu0 %v3937
          %4171 = vmatpush.bf16.msra.mxu0 %v3936
          %4172 = vmatpush.bf16.msra.mxu0 %v3935
          %4173 = vmatpush.bf16.msra.mxu0 %v3934
          %4174 = vmatpush.bf16.msra.mxu0 %v3933
          %4175 = vmatpush.bf16.msra.mxu0 %v3932
          %4176 = vmatpush.bf16.msra.mxu0 %v3931
          %4177 = vmatmul.bf16.gmra.mxu0 %v3685
          %v4178 = vpop.f32.mrf.mxu0
          %v4179 = vadd.f32 %v4125, %v4178
          %v4180 = vpop.f32.mrf.mxu0
          %v4181 = vadd.f32 %v4127, %v4180
          %4182 = vmatmul.bf16.gmra.mxu0 %v3690
          %v4183 = vpop.f32.mrf.mxu0
          %v4184 = vadd.f32 %v4130, %v4183
          %v4185 = vpop.f32.mrf.mxu0
          %v4186 = vadd.f32 %v4132, %v4185
          %4187 = vmatmul.bf16.gmra.mxu0 %v3695
          %v4188 = vpop.f32.mrf.mxu0
          %v4189 = vadd.f32 %v4135, %v4188
          %v4190 = vpop.f32.mrf.mxu0
          %v4191 = vadd.f32 %v4137, %v4190
          %4192 = vmatmul.bf16.gmra.mxu0 %v3700
          %v4193 = vpop.f32.mrf.mxu0
          %v4194 = vadd.f32 %v4140, %v4193
          %v4195 = vpop.f32.mrf.mxu0
          %v4196 = vadd.f32 %v4142, %v4195
          %4197 = vmatmul.bf16.gmra.mxu0 %v3705
          %v4198 = vpop.f32.mrf.mxu0
          %v4199 = vadd.f32 %v4145, %v4198
          %v4200 = vpop.f32.mrf.mxu0
          %v4201 = vadd.f32 %v4147, %v4200
          %4202 = vmatmul.bf16.gmra.mxu0 %v3710
          %v4203 = vpop.f32.mrf.mxu0
          %v4204 = vadd.f32 %v4150, %v4203
          %v4205 = vpop.f32.mrf.mxu0
          %v4206 = vadd.f32 %v4152, %v4205
          %4207 = vmatmul.bf16.gmra.mxu0 %v3715
          %v4208 = vpop.f32.mrf.mxu0
          %v4209 = vadd.f32 %v4155, %v4208
          %v4210 = vpop.f32.mrf.mxu0
          %v4211 = vadd.f32 %v4157, %v4210
          %4212 = vmatmul.bf16.gmra.mxu0 %v3720
          %v4213 = vpop.f32.mrf.mxu0
          %v4214 = vadd.f32 %v4160, %v4213
          %v4215 = vpop.f32.mrf.mxu0
          %v4216 = vadd.f32 %v4162, %v4215
          %4217 = vmatmul.bf16.gmra.mxu0 %v3725
          %v4218 = vpop.f32.mrf.mxu0
          %v4219 = vadd.f32 %v4165, %v4218
          %v4220 = vpop.f32.mrf.mxu0
          %v4221 = vadd.f32 %v4167, %v4220
          %4222 = vdwg.mxu0
          %4223 = vmatpush.bf16.msra.mxu0 0
          %4224 = vmatpush.bf16.msra.mxu0 0
          %4225 = vmatpush.bf16.msra.mxu0 0
          %4226 = vmatpush.bf16.msra.mxu0 0
          %4227 = vmatpush.bf16.msra.mxu0 %v3942
          %4228 = vmatpush.bf16.msra.mxu0 %v3941
          %4229 = vmatpush.bf16.msra.mxu0 %v3940
          %4230 = vmatpush.bf16.msra.mxu0 %v3939
          %4231 = vmatmul.bf16.gmra.mxu0 %v3981
          %v4232 = vpop.f32.mrf.mxu0
          %v4233 = vadd.f32 %v4179, %v4232
          %v4234 = vpop.f32.mrf.mxu0
          %v4235 = vadd.f32 %v4181, %v4234
          %4236 = vmatmul.bf16.gmra.mxu0 %v3984
          %v4237 = vpop.f32.mrf.mxu0
          %v4238 = vadd.f32 %v4184, %v4237
          %v4239 = vpop.f32.mrf.mxu0
          %v4240 = vadd.f32 %v4186, %v4239
          %4241 = vmatmul.bf16.gmra.mxu0 %v3987
          %v4242 = vpop.f32.mrf.mxu0
          %v4243 = vadd.f32 %v4189, %v4242
          %v4244 = vpop.f32.mrf.mxu0
          %v4245 = vadd.f32 %v4191, %v4244
          %4246 = vmatmul.bf16.gmra.mxu0 %v3990
          %v4247 = vpop.f32.mrf.mxu0
          %v4248 = vadd.f32 %v4194, %v4247
          %v4249 = vpop.f32.mrf.mxu0
          %v4250 = vadd.f32 %v4196, %v4249
          %4251 = vmatmul.bf16.gmra.mxu0 %v3993
          %v4252 = vpop.f32.mrf.mxu0
          %v4253 = vadd.f32 %v4199, %v4252
          %v4254 = vpop.f32.mrf.mxu0
          %v4255 = vadd.f32 %v4201, %v4254
          %4256 = vmatmul.bf16.gmra.mxu0 %v3996
          %v4257 = vpop.f32.mrf.mxu0
          %v4258 = vadd.f32 %v4204, %v4257
          %v4259 = vpop.f32.mrf.mxu0
          %v4260 = vadd.f32 %v4206, %v4259
          %4261 = vmatmul.bf16.gmra.mxu0 %v3999
          %v4262 = vpop.f32.mrf.mxu0
          %v4263 = vadd.f32 %v4209, %v4262
          %v4264 = vpop.f32.mrf.mxu0
          %v4265 = vadd.f32 %v4211, %v4264
          %4266 = vmatmul.bf16.gmra.mxu0 %v4002
          %v4267 = vpop.f32.mrf.mxu0
          %v4268 = vadd.f32 %v4214, %v4267
          %v4269 = vpop.f32.mrf.mxu0
          %v4270 = vadd.f32 %v4216, %v4269
          %4271 = vmatmul.bf16.gmra.mxu0 %v4005
          %v4272 = vpop.f32.mrf.mxu0
          %v4273 = vadd.f32 %v4219, %v4272
          %v4274 = vpop.f32.mrf.mxu0
          %v4275 = vadd.f32 %v4221, %v4274
          %4276 = vdwg.mxu0
          %v4277 = vmax.f32 %v4233, 0.0
          %v4278 = vmax.f32 %v4235, 0.0
          %v4279 = vmax.f32 %v4238, 0.0
          %v4280 = vmax.f32 %v4240, 0.0
          %v4281 = vmax.f32 %v4243, 0.0
          %v4282 = vmax.f32 %v4245, 0.0
          %v4283 = vmax.f32 %v4248, 0.0
          %v4284 = vmax.f32 %v4250, 0.0
          %v4285 = vmax.f32 %v4253, 0.0
          %v4286 = vmax.f32 %v4255, 0.0
          %v4287 = vmax.f32 %v4258, 0.0
          %v4288 = vmax.f32 %v4260, 0.0
          %v4289 = vmax.f32 %v4263, 0.0
          %v4290 = vmax.f32 %v4265, 0.0
          %v4291 = vmax.f32 %v4268, 0.0
          %v4292 = vmax.f32 %v4270, 0.0
          %v4293 = vmax.f32 %v4273, 0.0
          %v4294 = vmax.f32 %v4275, 0.0
          %v4295 = vpack.c.bf16 %v4277, %v4277
          %v4296 = vpack.c.bf16 %v4278, %v4278
          %v4297 = vpack.c.bf16 %v4279, %v4279
          %v4298 = vpack.c.bf16 %v4280, %v4280
          %v4299 = vpack.c.bf16 %v4281, %v4281
          %v4300 = vpack.c.bf16 %v4282, %v4282
          %v4301 = vpack.c.bf16 %v4283, %v4283
          %v4302 = vpack.c.bf16 %v4284, %v4284
          %v4303 = vpack.c.bf16 %v4285, %v4285
          %v4304 = vpack.c.bf16 %v4286, %v4286
          %v4305 = vpack.c.bf16 %v4287, %v4287
          %v4306 = vpack.c.bf16 %v4288, %v4288
          %v4307 = vpack.c.bf16 %v4289, %v4289
          %v4308 = vpack.c.bf16 %v4290, %v4290
          %v4309 = vpack.c.bf16 %v4291, %v4291
          %v4310 = vpack.c.bf16 %v4292, %v4292
          %v4311 = vpack.c.bf16 %v4293, %v4293
          %v4312 = vpack.c.bf16 %v4294, %v4294
          %4313 = vst [vmem:[#allocation4] sm:$0xf] %v4295
          %4314 = vst [vmem:[#allocation4 + $0x4] sm:$0xf] %v4296
          %4315 = vst [vmem:[#allocation4 + $0x8] sm:$0xf] %v4297
          %4316 = vst [vmem:[#allocation4 + $0xc] sm:$0xf] %v4298
          %4317 = vst [vmem:[#allocation4 + $0x10] sm:$0xf] %v4299
          %4318 = vst [vmem:[#allocation4 + $0x14] sm:$0xf] %v4300
          %4319 = vst [vmem:[#allocation4 + $0x18] sm:$0xf] %v4301
          %4320 = vst [vmem:[#allocation4 + $0x1c] sm:$0xf] %v4302
          %4321 = vst [vmem:[#allocation4 + $0x20] sm:$0xf] %v4303
          %4322 = vst [vmem:[#allocation4 + $0x24] sm:$0xf] %v4304
          %4323 = vst [vmem:[#allocation4 + $0x28] sm:$0xf] %v4305
          %4324 = vst [vmem:[#allocation4 + $0x2c] sm:$0xf] %v4306
          %4325 = vst [vmem:[#allocation4 + $0x30] sm:$0xf] %v4307
          %4326 = vst [vmem:[#allocation4 + $0x34] sm:$0xf] %v4308
          %4327 = vst [vmem:[#allocation4 + $0x38] sm:$0xf] %v4309
          %4328 = vst [vmem:[#allocation4 + $0x3c] sm:$0xf] %v4310
          %4329 = vst [vmem:[#allocation4 + $0x40] sm:$0xf] %v4311
          %4330 = vst [vmem:[#allocation4 + $0x44] sm:$0xf] %v4312
          %v4331 = vld [vmem:[#allocation4 + $0x4] sm:$0xe]
          %v4332 = vld [vmem:[#allocation4 + $0x8] sm:$0x1]
          %4334 = vst [vmem:[#allocation1] sm:$0xff] %v4331
          %4336 = vst [vmem:[#allocation1 + $0x20] sm:$0xff] %v4332
          %s4337 = scalar_lea.vmem [#allocation1], 1
          %v4338 = vld [vmem:[%s4337] ss:$4 sm:$0xff]
          %s4340 = scalar_lea.vmem [#allocation1], 2
          %v4341 = vld [vmem:[%s4340] ss:$4 sm:$0xff]
          %s4343 = scalar_lea.vmem [#allocation1], 3
          %v4344 = vld [vmem:[%s4343] ss:$4 sm:$0xff]
          %s4346 = scalar_lea.vmem [#allocation1], 32
          %v4347 = vld [vmem:[%s4346] ss:$4 sm:$0xff]
          %v4349 = vunpack.i.l.s16 %v4338
          %v4350 = vunpack.i.h.s16 %v4338
          %v4351 = vunpack.i.l.s16 %v4341
          %v4352 = vunpack.i.h.s16 %v4341
          %v4353 = vunpack.i.l.s16 %v4344
          %v4354 = vunpack.i.h.s16 %v4344
          %v4355 = vunpack.i.l.s16 %v4347
          %v4356 = vpack.i.b16 %v4349, %v4349
          %v4357 = vpack.i.b16 %v4350, %v4350
          %v4358 = vpack.i.b16 %v4351, %v4351
          %v4359 = vpack.i.b16 %v4352, %v4352
          %v4360 = vpack.i.b16 %v4353, %v4353
          %v4361 = vpack.i.b16 %v4354, %v4354
          %v4362 = vpack.i.b16 %v4355, %v4355
          %vm4370 = vmand %vm1210, %vm1306
          %v4371 = vld [vmem:[#allocation5] sm:$0x1]
          %v4372 = vsel %vm4370, %v4356, %v4371
          %4373 = vst [vmem:[#allocation5] sm:$0x1] %v4372
          %v4374 = vld [vmem:[#allocation5 + $0x1] sm:$0x1]
          %v4375 = vsel %vm4370, %v4357, %v4374
          %4376 = vst [vmem:[#allocation5 + $0x1] sm:$0x1] %v4375
          %v4377 = vld [vmem:[#allocation5 + $0x2] sm:$0x1]
          %v4378 = vsel %vm4370, %v4358, %v4377
          %4379 = vst [vmem:[#allocation5 + $0x2] sm:$0x1] %v4378
          %v4380 = vld [vmem:[#allocation5 + $0x3] sm:$0x1]
          %v4381 = vsel %vm4370, %v4359, %v4380
          %4382 = vst [vmem:[#allocation5 + $0x3] sm:$0x1] %v4381
          %v4383 = vld [vmem:[#allocation5 + $0x4] sm:$0x1]
          %v4384 = vsel %vm4370, %v4360, %v4383
          %4385 = vst [vmem:[#allocation5 + $0x4] sm:$0x1] %v4384
          %v4386 = vld [vmem:[#allocation5 + $0x5] sm:$0x1]
          %v4387 = vsel %vm4370, %v4361, %v4386
          %4388 = vst [vmem:[#allocation5 + $0x5] sm:$0x1] %v4387
          %v4389 = vld [vmem:[#allocation5 + $0x6] sm:$0x1]
          %v4390 = vsel %vm4370, %v4362, %v4389
          %4391 = vst [vmem:[#allocation5 + $0x6] sm:$0x1] %v4390
          %v4392 = vld [vmem:[#allocation4 + $0x8] sm:$0xe]
          %v4393 = vld [vmem:[#allocation4 + $0xc] sm:$0x1]
          %4395 = vst [vmem:[#allocation1] sm:$0xff] %v4392
          %4397 = vst [vmem:[#allocation1 + $0x20] sm:$0xff] %v4393
          %s4398 = scalar_lea.vmem [#allocation1], 1
          %v4399 = vld [vmem:[%s4398] ss:$4 sm:$0xff]
          %s4401 = scalar_lea.vmem [#allocation1], 2
          %v4402 = vld [vmem:[%s4401] ss:$4 sm:$0xff]
          %s4404 = scalar_lea.vmem [#allocation1], 3
          %v4405 = vld [vmem:[%s4404] ss:$4 sm:$0xff]
          %s4407 = scalar_lea.vmem [#allocation1], 32
          %v4408 = vld [vmem:[%s4407] ss:$4 sm:$0xff]
          %v4410 = vunpack.i.h.s16 %v4399
          %v4411 = vunpack.i.l.s16 %v4402
          %v4412 = vunpack.i.h.s16 %v4402
          %v4413 = vunpack.i.l.s16 %v4405
          %v4414 = vunpack.i.h.s16 %v4405
          %v4415 = vunpack.i.l.s16 %v4408
          %v4416 = vunpack.i.h.s16 %v4408
          %v4417 = vpack.i.b16 %v4410, %v4410
          %v4418 = vpack.i.b16 %v4411, %v4411
          %v4419 = vpack.i.b16 %v4412, %v4412
          %v4420 = vpack.i.b16 %v4413, %v4413
          %v4421 = vpack.i.b16 %v4414, %v4414
          %v4422 = vpack.i.b16 %v4415, %v4415
          %v4423 = vpack.i.b16 %v4416, %v4416
          %s4431 = scalar_lea.vmem [#allocation5], 7
          %v4432 = vld [vmem:[%s4431] sm:$0x1]
          %v4433 = vsel %vm4370, %v4417, %v4432
          %4434 = vst [vmem:[%s4431] sm:$0x1] %v4433
          %v4435 = vld [vmem:[%s4431 + $0x1] sm:$0x1]
          %v4436 = vsel %vm4370, %v4418, %v4435
          %4437 = vst [vmem:[%s4431 + $0x1] sm:$0x1] %v4436
          %v4438 = vld [vmem:[%s4431 + $0x2] sm:$0x1]
          %v4439 = vsel %vm4370, %v4419, %v4438
          %4440 = vst [vmem:[%s4431 + $0x2] sm:$0x1] %v4439
          %v4441 = vld [vmem:[%s4431 + $0x3] sm:$0x1]
          %v4442 = vsel %vm4370, %v4420, %v4441
          %4443 = vst [vmem:[%s4431 + $0x3] sm:$0x1] %v4442
          %v4444 = vld [vmem:[%s4431 + $0x4] sm:$0x1]
          %v4445 = vsel %vm4370, %v4421, %v4444
          %4446 = vst [vmem:[%s4431 + $0x4] sm:$0x1] %v4445
          %v4447 = vld [vmem:[%s4431 + $0x5] sm:$0x1]
          %v4448 = vsel %vm4370, %v4422, %v4447
          %4449 = vst [vmem:[%s4431 + $0x5] sm:$0x1] %v4448
          %v4450 = vld [vmem:[%s4431 + $0x6] sm:$0x1]
          %v4451 = vsel %vm4370, %v4423, %v4450
          %4452 = vst [vmem:[%s4431 + $0x6] sm:$0x1] %v4451
          %v4453 = vld [vmem:[#allocation4 + $0xc] sm:$0xc]
          %v4454 = vld [vmem:[#allocation4 + $0x10] sm:$0x3]
          %4456 = vst [vmem:[#allocation1] sm:$0xff] %v4453
          %4458 = vst [vmem:[#allocation1 + $0x20] sm:$0xff] %v4454
          %s4459 = scalar_lea.vmem [#allocation1], 2
          %v4460 = vld [vmem:[%s4459] ss:$4 sm:$0xff]
          %s4462 = scalar_lea.vmem [#allocation1], 3
          %v4463 = vld [vmem:[%s4462] ss:$4 sm:$0xff]
          %s4465 = scalar_lea.vmem [#allocation1], 32
          %v4466 = vld [vmem:[%s4465] ss:$4 sm:$0xff]
          %s4468 = scalar_lea.vmem [#allocation1], 33
          %v4469 = vld [vmem:[%s4468] ss:$4 sm:$0xff]
          %v4471 = vunpack.i.l.s16 %v4460
          %v4472 = vunpack.i.h.s16 %v4460
          %v4473 = vunpack.i.l.s16 %v4463
          %v4474 = vunpack.i.h.s16 %v4463
          %v4475 = vunpack.i.l.s16 %v4466
          %v4476 = vunpack.i.h.s16 %v4466
          %v4477 = vunpack.i.l.s16 %v4469
          %v4478 = vpack.i.b16 %v4471, %v4471
          %v4479 = vpack.i.b16 %v4472, %v4472
          %v4480 = vpack.i.b16 %v4473, %v4473
          %v4481 = vpack.i.b16 %v4474, %v4474
          %v4482 = vpack.i.b16 %v4475, %v4475
          %v4483 = vpack.i.b16 %v4476, %v4476
          %v4484 = vpack.i.b16 %v4477, %v4477
          %s4492 = scalar_lea.vmem [#allocation5], 14
          %v4493 = vld [vmem:[%s4492] sm:$0x1]
          %v4494 = vsel %vm4370, %v4478, %v4493
          %4495 = vst [vmem:[%s4492] sm:$0x1] %v4494
          %v4496 = vld [vmem:[%s4492 + $0x1] sm:$0x1]
          %v4497 = vsel %vm4370, %v4479, %v4496
          %4498 = vst [vmem:[%s4492 + $0x1] sm:$0x1] %v4497
          %v4499 = vld [vmem:[%s4492 + $0x2] sm:$0x1]
          %v4500 = vsel %vm4370, %v4480, %v4499
          %4501 = vst [vmem:[%s4492 + $0x2] sm:$0x1] %v4500
          %v4502 = vld [vmem:[%s4492 + $0x3] sm:$0x1]
          %v4503 = vsel %vm4370, %v4481, %v4502
          %4504 = vst [vmem:[%s4492 + $0x3] sm:$0x1] %v4503
          %v4505 = vld [vmem:[%s4492 + $0x4] sm:$0x1]
          %v4506 = vsel %vm4370, %v4482, %v4505
          %4507 = vst [vmem:[%s4492 + $0x4] sm:$0x1] %v4506
          %v4508 = vld [vmem:[%s4492 + $0x5] sm:$0x1]
          %v4509 = vsel %vm4370, %v4483, %v4508
          %4510 = vst [vmem:[%s4492 + $0x5] sm:$0x1] %v4509
          %v4511 = vld [vmem:[%s4492 + $0x6] sm:$0x1]
          %v4512 = vsel %vm4370, %v4484, %v4511
          %4513 = vst [vmem:[%s4492 + $0x6] sm:$0x1] %v4512
          %v4514 = vld [vmem:[#allocation4 + $0x10] sm:$0xc]
          %v4515 = vld [vmem:[#allocation4 + $0x14] sm:$0x3]
          %4517 = vst [vmem:[#allocation1] sm:$0xff] %v4514
          %4519 = vst [vmem:[#allocation1 + $0x20] sm:$0xff] %v4515
          %s4520 = scalar_lea.vmem [#allocation1], 2
          %v4521 = vld [vmem:[%s4520] ss:$4 sm:$0xff]
          %s4523 = scalar_lea.vmem [#allocation1], 3
          %v4524 = vld [vmem:[%s4523] ss:$4 sm:$0xff]
          %s4526 = scalar_lea.vmem [#allocation1], 32
          %v4527 = vld [vmem:[%s4526] ss:$4 sm:$0xff]
          %s4529 = scalar_lea.vmem [#allocation1], 33
          %v4530 = vld [vmem:[%s4529] ss:$4 sm:$0xff]
          %v4532 = vunpack.i.h.s16 %v4521
          %v4533 = vunpack.i.l.s16 %v4524
          %v4534 = vunpack.i.h.s16 %v4524
          %v4535 = vunpack.i.l.s16 %v4527
          %v4536 = vunpack.i.h.s16 %v4527
          %v4537 = vunpack.i.l.s16 %v4530
          %v4538 = vunpack.i.h.s16 %v4530
          %v4539 = vpack.i.b16 %v4532, %v4532
          %v4540 = vpack.i.b16 %v4533, %v4533
          %v4541 = vpack.i.b16 %v4534, %v4534
          %v4542 = vpack.i.b16 %v4535, %v4535
          %v4543 = vpack.i.b16 %v4536, %v4536
          %v4544 = vpack.i.b16 %v4537, %v4537
          %v4545 = vpack.i.b16 %v4538, %v4538
          %s4553 = scalar_lea.vmem [#allocation5], 21
          %v4554 = vld [vmem:[%s4553] sm:$0x1]
          %v4555 = vsel %vm4370, %v4539, %v4554
          %4556 = vst [vmem:[%s4553] sm:$0x1] %v4555
          %v4557 = vld [vmem:[%s4553 + $0x1] sm:$0x1]
          %v4558 = vsel %vm4370, %v4540, %v4557
          %4559 = vst [vmem:[%s4553 + $0x1] sm:$0x1] %v4558
          %v4560 = vld [vmem:[%s4553 + $0x2] sm:$0x1]
          %v4561 = vsel %vm4370, %v4541, %v4560
          %4562 = vst [vmem:[%s4553 + $0x2] sm:$0x1] %v4561
          %v4563 = vld [vmem:[%s4553 + $0x3] sm:$0x1]
          %v4564 = vsel %vm4370, %v4542, %v4563
          %4565 = vst [vmem:[%s4553 + $0x3] sm:$0x1] %v4564
          %v4566 = vld [vmem:[%s4553 + $0x4] sm:$0x1]
          %v4567 = vsel %vm4370, %v4543, %v4566
          %4568 = vst [vmem:[%s4553 + $0x4] sm:$0x1] %v4567
          %v4569 = vld [vmem:[%s4553 + $0x5] sm:$0x1]
          %v4570 = vsel %vm4370, %v4544, %v4569
          %4571 = vst [vmem:[%s4553 + $0x5] sm:$0x1] %v4570
          %v4572 = vld [vmem:[%s4553 + $0x6] sm:$0x1]
          %v4573 = vsel %vm4370, %v4545, %v4572
          %4574 = vst [vmem:[%s4553 + $0x6] sm:$0x1] %v4573
          %v4575 = vld [vmem:[#allocation4 + $0x14] sm:$0x8]
          %v4576 = vld [vmem:[#allocation4 + $0x18] sm:$0x7]
          %4578 = vst [vmem:[#allocation1] sm:$0xff] %v4575
          %4580 = vst [vmem:[#allocation1 + $0x20] sm:$0xff] %v4576
          %s4581 = scalar_lea.vmem [#allocation1], 3
          %v4582 = vld [vmem:[%s4581] ss:$4 sm:$0xff]
          %s4584 = scalar_lea.vmem [#allocation1], 32
          %v4585 = vld [vmem:[%s4584] ss:$4 sm:$0xff]
          %s4587 = scalar_lea.vmem [#allocation1], 33
          %v4588 = vld [vmem:[%s4587] ss:$4 sm:$0xff]
          %s4590 = scalar_lea.vmem [#allocation1], 34
          %v4591 = vld [vmem:[%s4590] ss:$4 sm:$0xff]
          %v4593 = vunpack.i.l.s16 %v4582
          %v4594 = vunpack.i.h.s16 %v4582
          %v4595 = vunpack.i.l.s16 %v4585
          %v4596 = vunpack.i.h.s16 %v4585
          %v4597 = vunpack.i.l.s16 %v4588
          %v4598 = vunpack.i.h.s16 %v4588
          %v4599 = vunpack.i.l.s16 %v4591
          %v4600 = vpack.i.b16 %v4593, %v4593
          %v4601 = vpack.i.b16 %v4594, %v4594
          %v4602 = vpack.i.b16 %v4595, %v4595
          %v4603 = vpack.i.b16 %v4596, %v4596
          %v4604 = vpack.i.b16 %v4597, %v4597
          %v4605 = vpack.i.b16 %v4598, %v4598
          %v4606 = vpack.i.b16 %v4599, %v4599
          %s4614 = scalar_lea.vmem [#allocation5], 28
          %v4615 = vld [vmem:[%s4614] sm:$0x1]
          %v4616 = vsel %vm4370, %v4600, %v4615
          %4617 = vst [vmem:[%s4614] sm:$0x1] %v4616
          %v4618 = vld [vmem:[%s4614 + $0x1] sm:$0x1]
          %v4619 = vsel %vm4370, %v4601, %v4618
          %4620 = vst [vmem:[%s4614 + $0x1] sm:$0x1] %v4619
          %v4621 = vld [vmem:[%s4614 + $0x2] sm:$0x1]
          %v4622 = vsel %vm4370, %v4602, %v4621
          %4623 = vst [vmem:[%s4614 + $0x2] sm:$0x1] %v4622
          %v4624 = vld [vmem:[%s4614 + $0x3] sm:$0x1]
          %v4625 = vsel %vm4370, %v4603, %v4624
          %4626 = vst [vmem:[%s4614 + $0x3] sm:$0x1] %v4625
          %v4627 = vld [vmem:[%s4614 + $0x4] sm:$0x1]
          %v4628 = vsel %vm4370, %v4604, %v4627
          %4629 = vst [vmem:[%s4614 + $0x4] sm:$0x1] %v4628
          %v4630 = vld [vmem:[%s4614 + $0x5] sm:$0x1]
          %v4631 = vsel %vm4370, %v4605, %v4630
          %4632 = vst [vmem:[%s4614 + $0x5] sm:$0x1] %v4631
          %v4633 = vld [vmem:[%s4614 + $0x6] sm:$0x1]
          %v4634 = vsel %vm4370, %v4606, %v4633
          %4635 = vst [vmem:[%s4614 + $0x6] sm:$0x1] %v4634
          %v4636 = vld [vmem:[#allocation4 + $0x18] sm:$0x8]
          %v4637 = vld [vmem:[#allocation4 + $0x1c] sm:$0x7]
          %4639 = vst [vmem:[#allocation1] sm:$0xff] %v4636
          %4641 = vst [vmem:[#allocation1 + $0x20] sm:$0xff] %v4637
          %s4642 = scalar_lea.vmem [#allocation1], 3
          %v4643 = vld [vmem:[%s4642] ss:$4 sm:$0xff]
          %s4645 = scalar_lea.vmem [#allocation1], 32
          %v4646 = vld [vmem:[%s4645] ss:$4 sm:$0xff]
          %s4648 = scalar_lea.vmem [#allocation1], 33
          %v4649 = vld [vmem:[%s4648] ss:$4 sm:$0xff]
          %s4651 = scalar_lea.vmem [#allocation1], 34
          %v4652 = vld [vmem:[%s4651] ss:$4 sm:$0xff]
          %v4654 = vunpack.i.h.s16 %v4643
          %v4655 = vunpack.i.l.s16 %v4646
          %v4656 = vunpack.i.h.s16 %v4646
          %v4657 = vunpack.i.l.s16 %v4649
          %v4658 = vunpack.i.h.s16 %v4649
          %v4659 = vunpack.i.l.s16 %v4652
          %v4660 = vunpack.i.h.s16 %v4652
          %v4661 = vpack.i.b16 %v4654, %v4654
          %v4662 = vpack.i.b16 %v4655, %v4655
          %v4663 = vpack.i.b16 %v4656, %v4656
          %v4664 = vpack.i.b16 %v4657, %v4657
          %v4665 = vpack.i.b16 %v4658, %v4658
          %v4666 = vpack.i.b16 %v4659, %v4659
          %v4667 = vpack.i.b16 %v4660, %v4660
          %s4675 = scalar_lea.vmem [#allocation5], 35
          %v4676 = vld [vmem:[%s4675] sm:$0x1]
          %v4677 = vsel %vm4370, %v4661, %v4676
          %4678 = vst [vmem:[%s4675] sm:$0x1] %v4677
          %v4679 = vld [vmem:[%s4675 + $0x1] sm:$0x1]
          %v4680 = vsel %vm4370, %v4662, %v4679
          %4681 = vst [vmem:[%s4675 + $0x1] sm:$0x1] %v4680
          %v4682 = vld [vmem:[%s4675 + $0x2] sm:$0x1]
          %v4683 = vsel %vm4370, %v4663, %v4682
          %4684 = vst [vmem:[%s4675 + $0x2] sm:$0x1] %v4683
          %v4685 = vld [vmem:[%s4675 + $0x3] sm:$0x1]
          %v4686 = vsel %vm4370, %v4664, %v4685
          %4687 = vst [vmem:[%s4675 + $0x3] sm:$0x1] %v4686
          %v4688 = vld [vmem:[%s4675 + $0x4] sm:$0x1]
          %v4689 = vsel %vm4370, %v4665, %v4688
          %4690 = vst [vmem:[%s4675 + $0x4] sm:$0x1] %v4689
          %v4691 = vld [vmem:[%s4675 + $0x5] sm:$0x1]
          %v4692 = vsel %vm4370, %v4666, %v4691
          %4693 = vst [vmem:[%s4675 + $0x5] sm:$0x1] %v4692
          %v4694 = vld [vmem:[%s4675 + $0x6] sm:$0x1]
          %v4695 = vsel %vm4370, %v4667, %v4694
          %4696 = vst [vmem:[%s4675 + $0x6] sm:$0x1] %v4695
          %v4697 = vld [vmem:[#allocation4 + $0x28] sm:$0xe]
          %v4698 = vld [vmem:[#allocation4 + $0x2c] sm:$0x1]
          %4700 = vst [vmem:[#allocation1] sm:$0xff] %v4697
          %4702 = vst [vmem:[#allocation1 + $0x20] sm:$0xff] %v4698
          %s4703 = scalar_lea.vmem [#allocation1], 1
          %v4704 = vld [vmem:[%s4703] ss:$4 sm:$0xff]
          %s4706 = scalar_lea.vmem [#allocation1], 2
          %v4707 = vld [vmem:[%s4706] ss:$4 sm:$0xff]
          %s4709 = scalar_lea.vmem [#allocation1], 3
          %v4710 = vld [vmem:[%s4709] ss:$4 sm:$0xff]
          %s4712 = scalar_lea.vmem [#allocation1], 32
          %v4713 = vld [vmem:[%s4712] ss:$4 sm:$0xff]
          %v4715 = vunpack.i.l.s16 %v4704
          %v4716 = vunpack.i.h.s16 %v4704
          %v4717 = vunpack.i.l.s16 %v4707
          %v4718 = vunpack.i.h.s16 %v4707
          %v4719 = vunpack.i.l.s16 %v4710
          %v4720 = vunpack.i.h.s16 %v4710
          %v4721 = vunpack.i.l.s16 %v4713
          %v4722 = vpack.i.b16 %v4715, %v4715
          %v4723 = vpack.i.b16 %v4716, %v4716
          %v4724 = vpack.i.b16 %v4717, %v4717
          %v4725 = vpack.i.b16 %v4718, %v4718
          %v4726 = vpack.i.b16 %v4719, %v4719
          %v4727 = vpack.i.b16 %v4720, %v4720
          %v4728 = vpack.i.b16 %v4721, %v4721
          %vm4736 = vmand %vm1210, %vm1528
          %v4737 = vld [vmem:[#allocation5] sm:$0x1]
          %v4738 = vsel %vm4736, %v4722, %v4737
          %4739 = vst [vmem:[#allocation5] sm:$0x1] %v4738
          %v4740 = vld [vmem:[#allocation5 + $0x1] sm:$0x1]
          %v4741 = vsel %vm4736, %v4723, %v4740
          %4742 = vst [vmem:[#allocation5 + $0x1] sm:$0x1] %v4741
          %v4743 = vld [vmem:[#allocation5 + $0x2] sm:$0x1]
          %v4744 = vsel %vm4736, %v4724, %v4743
          %4745 = vst [vmem:[#allocation5 + $0x2] sm:$0x1] %v4744
          %v4746 = vld [vmem:[#allocation5 + $0x3] sm:$0x1]
          %v4747 = vsel %vm4736, %v4725, %v4746
          %4748 = vst [vmem:[#allocation5 + $0x3] sm:$0x1] %v4747
          %v4749 = vld [vmem:[#allocation5 + $0x4] sm:$0x1]
          %v4750 = vsel %vm4736, %v4726, %v4749
          %4751 = vst [vmem:[#allocation5 + $0x4] sm:$0x1] %v4750
          %v4752 = vld [vmem:[#allocation5 + $0x5] sm:$0x1]
          %v4753 = vsel %vm4736, %v4727, %v4752
          %4754 = vst [vmem:[#allocation5 + $0x5] sm:$0x1] %v4753
          %v4755 = vld [vmem:[#allocation5 + $0x6] sm:$0x1]
          %v4756 = vsel %vm4736, %v4728, %v4755
          %4757 = vst [vmem:[#allocation5 + $0x6] sm:$0x1] %v4756
          %v4758 = vld [vmem:[#allocation4 + $0x2c] sm:$0xe]
          %v4759 = vld [vmem:[#allocation4 + $0x30] sm:$0x1]
          %4761 = vst [vmem:[#allocation1] sm:$0xff] %v4758
          %4763 = vst [vmem:[#allocation1 + $0x20] sm:$0xff] %v4759
          %s4764 = scalar_lea.vmem [#allocation1], 1
          %v4765 = vld [vmem:[%s4764] ss:$4 sm:$0xff]
          %s4767 = scalar_lea.vmem [#allocation1], 2
          %v4768 = vld [vmem:[%s4767] ss:$4 sm:$0xff]
          %s4770 = scalar_lea.vmem [#allocation1], 3
          %v4771 = vld [vmem:[%s4770] ss:$4 sm:$0xff]
          %s4773 = scalar_lea.vmem [#allocation1], 32
          %v4774 = vld [vmem:[%s4773] ss:$4 sm:$0xff]
          %v4776 = vunpack.i.h.s16 %v4765
          %v4777 = vunpack.i.l.s16 %v4768
          %v4778 = vunpack.i.h.s16 %v4768
          %v4779 = vunpack.i.l.s16 %v4771
          %v4780 = vunpack.i.h.s16 %v4771
          %v4781 = vunpack.i.l.s16 %v4774
          %v4782 = vunpack.i.h.s16 %v4774
          %v4783 = vpack.i.b16 %v4776, %v4776
          %v4784 = vpack.i.b16 %v4777, %v4777
          %v4785 = vpack.i.b16 %v4778, %v4778
          %v4786 = vpack.i.b16 %v4779, %v4779
          %v4787 = vpack.i.b16 %v4780, %v4780
          %v4788 = vpack.i.b16 %v4781, %v4781
          %v4789 = vpack.i.b16 %v4782, %v4782
          %v4797 = vld [vmem:[%s4431] sm:$0x1]
          %v4798 = vsel %vm4736, %v4783, %v4797
          %4799 = vst [vmem:[%s4431] sm:$0x1] %v4798
          %v4800 = vld [vmem:[%s4431 + $0x1] sm:$0x1]
          %v4801 = vsel %vm4736, %v4784, %v4800
          %4802 = vst [vmem:[%s4431 + $0x1] sm:$0x1] %v4801
          %v4803 = vld [vmem:[%s4431 + $0x2] sm:$0x1]
          %v4804 = vsel %vm4736, %v4785, %v4803
          %4805 = vst [vmem:[%s4431 + $0x2] sm:$0x1] %v4804
          %v4806 = vld [vmem:[%s4431 + $0x3] sm:$0x1]
          %v4807 = vsel %vm4736, %v4786, %v4806
          %4808 = vst [vmem:[%s4431 + $0x3] sm:$0x1] %v4807
          %v4809 = vld [vmem:[%s4431 + $0x4] sm:$0x1]
          %v4810 = vsel %vm4736, %v4787, %v4809
          %4811 = vst [vmem:[%s4431 + $0x4] sm:$0x1] %v4810
          %v4812 = vld [vmem:[%s4431 + $0x5] sm:$0x1]
          %v4813 = vsel %vm4736, %v4788, %v4812
          %4814 = vst [vmem:[%s4431 + $0x5] sm:$0x1] %v4813
          %v4815 = vld [vmem:[%s4431 + $0x6] sm:$0x1]
          %v4816 = vsel %vm4736, %v4789, %v4815
          %4817 = vst [vmem:[%s4431 + $0x6] sm:$0x1] %v4816
          %v4818 = vld [vmem:[#allocation4 + $0x30] sm:$0xc]
          %v4819 = vld [vmem:[#allocation4 + $0x34] sm:$0x3]
          %4821 = vst [vmem:[#allocation1] sm:$0xff] %v4818
          %4823 = vst [vmem:[#allocation1 + $0x20] sm:$0xff] %v4819
          %s4824 = scalar_lea.vmem [#allocation1], 2
          %v4825 = vld [vmem:[%s4824] ss:$4 sm:$0xff]
          %s4827 = scalar_lea.vmem [#allocation1], 3
          %v4828 = vld [vmem:[%s4827] ss:$4 sm:$0xff]
          %s4830 = scalar_lea.vmem [#allocation1], 32
          %v4831 = vld [vmem:[%s4830] ss:$4 sm:$0xff]
          %s4833 = scalar_lea.vmem [#allocation1], 33
          %v4834 = vld [vmem:[%s4833] ss:$4 sm:$0xff]
          %v4836 = vunpack.i.l.s16 %v4825
          %v4837 = vunpack.i.h.s16 %v4825
          %v4838 = vunpack.i.l.s16 %v4828
          %v4839 = vunpack.i.h.s16 %v4828
          %v4840 = vunpack.i.l.s16 %v4831
          %v4841 = vunpack.i.h.s16 %v4831
          %v4842 = vunpack.i.l.s16 %v4834
          %v4843 = vpack.i.b16 %v4836, %v4836
          %v4844 = vpack.i.b16 %v4837, %v4837
          %v4845 = vpack.i.b16 %v4838, %v4838
          %v4846 = vpack.i.b16 %v4839, %v4839
          %v4847 = vpack.i.b16 %v4840, %v4840
          %v4848 = vpack.i.b16 %v4841, %v4841
          %v4849 = vpack.i.b16 %v4842, %v4842
          %v4857 = vld [vmem:[%s4492] sm:$0x1]
          %v4858 = vsel %vm4736, %v4843, %v4857
          %4859 = vst [vmem:[%s4492] sm:$0x1] %v4858
          %v4860 = vld [vmem:[%s4492 + $0x1] sm:$0x1]
          %v4861 = vsel %vm4736, %v4844, %v4860
          %4862 = vst [vmem:[%s4492 + $0x1] sm:$0x1] %v4861
          %v4863 = vld [vmem:[%s4492 + $0x2] sm:$0x1]
          %v4864 = vsel %vm4736, %v4845, %v4863
          %4865 = vst [vmem:[%s4492 + $0x2] sm:$0x1] %v4864
          %v4866 = vld [vmem:[%s4492 + $0x3] sm:$0x1]
          %v4867 = vsel %vm4736, %v4846, %v4866
          %4868 = vst [vmem:[%s4492 + $0x3] sm:$0x1] %v4867
          %v4869 = vld [vmem:[%s4492 + $0x4] sm:$0x1]
          %v4870 = vsel %vm4736, %v4847, %v4869
          %4871 = vst [vmem:[%s4492 + $0x4] sm:$0x1] %v4870
          %v4872 = vld [vmem:[%s4492 + $0x5] sm:$0x1]
          %v4873 = vsel %vm4736, %v4848, %v4872
          %4874 = vst [vmem:[%s4492 + $0x5] sm:$0x1] %v4873
          %v4875 = vld [vmem:[%s4492 + $0x6] sm:$0x1]
          %v4876 = vsel %vm4736, %v4849, %v4875
          %4877 = vst [vmem:[%s4492 + $0x6] sm:$0x1] %v4876
          %v4878 = vld [vmem:[#allocation4 + $0x34] sm:$0xc]
          %v4879 = vld [vmem:[#allocation4 + $0x38] sm:$0x3]
          %4881 = vst [vmem:[#allocation1] sm:$0xff] %v4878
          %4883 = vst [vmem:[#allocation1 + $0x20] sm:$0xff] %v4879
          %s4884 = scalar_lea.vmem [#allocation1], 2
          %v4885 = vld [vmem:[%s4884] ss:$4 sm:$0xff]
          %s4887 = scalar_lea.vmem [#allocation1], 3
          %v4888 = vld [vmem:[%s4887] ss:$4 sm:$0xff]
          %s4890 = scalar_lea.vmem [#allocation1], 32
          %v4891 = vld [vmem:[%s4890] ss:$4 sm:$0xff]
          %s4893 = scalar_lea.vmem [#allocation1], 33
          %v4894 = vld [vmem:[%s4893] ss:$4 sm:$0xff]
          %v4896 = vunpack.i.h.s16 %v4885
          %v4897 = vunpack.i.l.s16 %v4888
          %v4898 = vunpack.i.h.s16 %v4888
          %v4899 = vunpack.i.l.s16 %v4891
          %v4900 = vunpack.i.h.s16 %v4891
          %v4901 = vunpack.i.l.s16 %v4894
          %v4902 = vunpack.i.h.s16 %v4894
          %v4903 = vpack.i.b16 %v4896, %v4896
          %v4904 = vpack.i.b16 %v4897, %v4897
          %v4905 = vpack.i.b16 %v4898, %v4898
          %v4906 = vpack.i.b16 %v4899, %v4899
          %v4907 = vpack.i.b16 %v4900, %v4900
          %v4908 = vpack.i.b16 %v4901, %v4901
          %v4909 = vpack.i.b16 %v4902, %v4902
          %v4917 = vld [vmem:[%s4553] sm:$0x1]
          %v4918 = vsel %vm4736, %v4903, %v4917
          %4919 = vst [vmem:[%s4553] sm:$0x1] %v4918
          %v4920 = vld [vmem:[%s4553 + $0x1] sm:$0x1]
          %v4921 = vsel %vm4736, %v4904, %v4920
          %4922 = vst [vmem:[%s4553 + $0x1] sm:$0x1] %v4921
          %v4923 = vld [vmem:[%s4553 + $0x2] sm:$0x1]
          %v4924 = vsel %vm4736, %v4905, %v4923
          %4925 = vst [vmem:[%s4553 + $0x2] sm:$0x1] %v4924
          %v4926 = vld [vmem:[%s4553 + $0x3] sm:$0x1]
          %v4927 = vsel %vm4736, %v4906, %v4926
          %4928 = vst [vmem:[%s4553 + $0x3] sm:$0x1] %v4927
          %v4929 = vld [vmem:[%s4553 + $0x4] sm:$0x1]
          %v4930 = vsel %vm4736, %v4907, %v4929
          %4931 = vst [vmem:[%s4553 + $0x4] sm:$0x1] %v4930
          %v4932 = vld [vmem:[%s4553 + $0x5] sm:$0x1]
          %v4933 = vsel %vm4736, %v4908, %v4932
          %4934 = vst [vmem:[%s4553 + $0x5] sm:$0x1] %v4933
          %v4935 = vld [vmem:[%s4553 + $0x6] sm:$0x1]
          %v4936 = vsel %vm4736, %v4909, %v4935
          %4937 = vst [vmem:[%s4553 + $0x6] sm:$0x1] %v4936
          %v4938 = vld [vmem:[#allocation4 + $0x38] sm:$0x8]
          %v4939 = vld [vmem:[#allocation4 + $0x3c] sm:$0x7]
          %4941 = vst [vmem:[#allocation1] sm:$0xff] %v4938
          %4943 = vst [vmem:[#allocation1 + $0x20] sm:$0xff] %v4939
          %s4944 = scalar_lea.vmem [#allocation1], 3
          %v4945 = vld [vmem:[%s4944] ss:$4 sm:$0xff]
          %s4947 = scalar_lea.vmem [#allocation1], 32
          %v4948 = vld [vmem:[%s4947] ss:$4 sm:$0xff]
          %s4950 = scalar_lea.vmem [#allocation1], 33
          %v4951 = vld [vmem:[%s4950] ss:$4 sm:$0xff]
          %s4953 = scalar_lea.vmem [#allocation1], 34
          %v4954 = vld [vmem:[%s4953] ss:$4 sm:$0xff]
          %v4956 = vunpack.i.l.s16 %v4945
          %v4957 = vunpack.i.h.s16 %v4945
          %v4958 = vunpack.i.l.s16 %v4948
          %v4959 = vunpack.i.h.s16 %v4948
          %v4960 = vunpack.i.l.s16 %v4951
          %v4961 = vunpack.i.h.s16 %v4951
          %v4962 = vunpack.i.l.s16 %v4954
          %v4963 = vpack.i.b16 %v4956, %v4956
          %v4964 = vpack.i.b16 %v4957, %v4957
          %v4965 = vpack.i.b16 %v4958, %v4958
          %v4966 = vpack.i.b16 %v4959, %v4959
          %v4967 = vpack.i.b16 %v4960, %v4960
          %v4968 = vpack.i.b16 %v4961, %v4961
          %v4969 = vpack.i.b16 %v4962, %v4962
          %v4977 = vld [vmem:[%s4614] sm:$0x1]
          %v4978 = vsel %vm4736, %v4963, %v4977
          %4979 = vst [vmem:[%s4614] sm:$0x1] %v4978
          %v4980 = vld [vmem:[%s4614 + $0x1] sm:$0x1]
          %v4981 = vsel %vm4736, %v4964, %v4980
          %4982 = vst [vmem:[%s4614 + $0x1] sm:$0x1] %v4981
          %v4983 = vld [vmem:[%s4614 + $0x2] sm:$0x1]
          %v4984 = vsel %vm4736, %v4965, %v4983
          %4985 = vst [vmem:[%s4614 + $0x2] sm:$0x1] %v4984
          %v4986 = vld [vmem:[%s4614 + $0x3] sm:$0x1]
          %v4987 = vsel %vm4736, %v4966, %v4986
          %4988 = vst [vmem:[%s4614 + $0x3] sm:$0x1] %v4987
          %v4989 = vld [vmem:[%s4614 + $0x4] sm:$0x1]
          %v4990 = vsel %vm4736, %v4967, %v4989
          %4991 = vst [vmem:[%s4614 + $0x4] sm:$0x1] %v4990
          %v4992 = vld [vmem:[%s4614 + $0x5] sm:$0x1]
          %v4993 = vsel %vm4736, %v4968, %v4992
          %4994 = vst [vmem:[%s4614 + $0x5] sm:$0x1] %v4993
          %v4995 = vld [vmem:[%s4614 + $0x6] sm:$0x1]
          %v4996 = vsel %vm4736, %v4969, %v4995
          %4997 = vst [vmem:[%s4614 + $0x6] sm:$0x1] %v4996
          %v4998 = vld [vmem:[#allocation4 + $0x3c] sm:$0x8]
          %v4999 = vld [vmem:[#allocation4 + $0x40] sm:$0x7]
          %5001 = vst [vmem:[#allocation1] sm:$0xff] %v4998
          %5003 = vst [vmem:[#allocation1 + $0x20] sm:$0xff] %v4999
          %s5004 = scalar_lea.vmem [#allocation1], 3
          %v5005 = vld [vmem:[%s5004] ss:$4 sm:$0xff]
          %s5007 = scalar_lea.vmem [#allocation1], 32
          %v5008 = vld [vmem:[%s5007] ss:$4 sm:$0xff]
          %s5010 = scalar_lea.vmem [#allocation1], 33
          %v5011 = vld [vmem:[%s5010] ss:$4 sm:$0xff]
          %s5013 = scalar_lea.vmem [#allocation1], 34
          %v5014 = vld [vmem:[%s5013] ss:$4 sm:$0xff]
          %v5016 = vunpack.i.h.s16 %v5005
          %v5017 = vunpack.i.l.s16 %v5008
          %v5018 = vunpack.i.h.s16 %v5008
          %v5019 = vunpack.i.l.s16 %v5011
          %v5020 = vunpack.i.h.s16 %v5011
          %v5021 = vunpack.i.l.s16 %v5014
          %v5022 = vunpack.i.h.s16 %v5014
          %v5023 = vpack.i.b16 %v5016, %v5016
          %v5024 = vpack.i.b16 %v5017, %v5017
          %v5025 = vpack.i.b16 %v5018, %v5018
          %v5026 = vpack.i.b16 %v5019, %v5019
          %v5027 = vpack.i.b16 %v5020, %v5020
          %v5028 = vpack.i.b16 %v5021, %v5021
          %v5029 = vpack.i.b16 %v5022, %v5022
          %v5037 = vld [vmem:[%s4675] sm:$0x1]
          %v5038 = vsel %vm4736, %v5023, %v5037
          %5039 = vst [vmem:[%s4675] sm:$0x1] %v5038
          %v5040 = vld [vmem:[%s4675 + $0x1] sm:$0x1]
          %v5041 = vsel %vm4736, %v5024, %v5040
          %5042 = vst [vmem:[%s4675 + $0x1] sm:$0x1] %v5041
          %v5043 = vld [vmem:[%s4675 + $0x2] sm:$0x1]
          %v5044 = vsel %vm4736, %v5025, %v5043
          %5045 = vst [vmem:[%s4675 + $0x2] sm:$0x1] %v5044
          %v5046 = vld [vmem:[%s4675 + $0x3] sm:$0x1]
          %v5047 = vsel %vm4736, %v5026, %v5046
          %5048 = vst [vmem:[%s4675 + $0x3] sm:$0x1] %v5047
          %v5049 = vld [vmem:[%s4675 + $0x4] sm:$0x1]
          %v5050 = vsel %vm4736, %v5027, %v5049
          %5051 = vst [vmem:[%s4675 + $0x4] sm:$0x1] %v5050
          %v5052 = vld [vmem:[%s4675 + $0x5] sm:$0x1]
          %v5053 = vsel %vm4736, %v5028, %v5052
          %5054 = vst [vmem:[%s4675 + $0x5] sm:$0x1] %v5053
          %v5055 = vld [vmem:[%s4675 + $0x6] sm:$0x1]
          %v5056 = vsel %vm4736, %v5029, %v5055
          %5057 = vst [vmem:[%s4675 + $0x6] sm:$0x1] %v5056
          %5058 = vst [vmem:[#allocation6] sm:$0xf] 0.0
        $region68: #{qnetwork_forward.1} parent=43 // pred_fallthru
          _
        %s5059 = smul.u32 %s21, 7
        %s5060 = scalar_lea.vmem [#allocation5], %s5059
        %v5061 = vld [vmem:[%s5060] sm:$0x1]
        %v5062 = vld [vmem:[%s5060 + $0x1] sm:$0x1]
        %v5063 = vld [vmem:[%s5060 + $0x2] sm:$0x1]
        %v5064 = vld [vmem:[%s5060 + $0x3] sm:$0x1]
        %v5065 = vld [vmem:[%s5060 + $0x4] sm:$0x1]
        %v5066 = vld [vmem:[%s5060 + $0x5] sm:$0x1]
        %v5067 = vld [vmem:[%s5060 + $0x6] sm:$0x1]
        %v5068 = vld [vmem:[%s288] sm:$0xff]
        %v5069 = vld [vmem:[%s288 + $0x8] sm:$0xff]
        %v5070 = vld [vmem:[%s288 + $0x10] sm:$0xff]
        %v5071 = vld [vmem:[%s288 + $0x18] sm:$0xff]
        %v5072 = vld [vmem:[%s288 + $0x20] sm:$0xff]
        %v5073 = vld [vmem:[%s288 + $0x28] sm:$0xff]
        %v5074 = vld [vmem:[%s288 + $0x30] sm:$0xff]
        %v5075 = vld [vmem:[%s288 + $0x38] sm:$0xff]
        %v5076 = vld [vmem:[%s288 + $0x40] sm:$0xff]
        %v5077 = vld [vmem:[%s288 + $0x48] sm:$0xff]
        %v5078 = vld [vmem:[%s288 + $0x50] sm:$0xff]
        %v5079 = vld [vmem:[%s288 + $0x58] sm:$0xff]
        %v5080 = vld [vmem:[%s288 + $0x60] sm:$0xff]
        %v5081 = vld [vmem:[%s288 + $0x68] sm:$0xff]
        %v5082 = vld [vmem:[%s288 + $0x70] sm:$0xff]
        %v5083 = vld [vmem:[%s288 + $0x78] sm:$0xff]
        %v5084 = vld [vmem:[%s288 + $0x80] sm:$0xff]
        %v5085 = vld [vmem:[%s288 + $0x88] sm:$0xff]
        %v5086 = vld [vmem:[%s288 + $0x90] sm:$0xff]
        %v5087 = vld [vmem:[%s288 + $0x98] sm:$0xff]
        %v5088 = vld [vmem:[%s288 + $0xa0] sm:$0xff]
        %v5089 = vld [vmem:[%s288 + $0xa8] sm:$0xff]
        %v5090 = vld [vmem:[%s288 + $0xb0] sm:$0xff]
        %v5091 = vld [vmem:[%s288 + $0xb8] sm:$0xff]
        %v5092 = vld [vmem:[%s288 + $0xc0] sm:$0xff]
        %v5093 = vld [vmem:[%s288 + $0xc8] sm:$0xff]
        %v5094 = vld [vmem:[%s288 + $0xd0] sm:$0xff]
        %v5095 = vld [vmem:[%s288 + $0xd8] sm:$0xff]
        %v5096 = vld [vmem:[%s288 + $0xe0] sm:$0xff]
        %v5097 = vld [vmem:[%s288 + $0xe8] sm:$0xff]
        %v5098 = vld [vmem:[%s288 + $0xf0] sm:$0xff]
        %v5099 = vld [vmem:[%s288 + $0xf8] sm:$0xff]
        %v5100 = vld [vmem:[%s288 + $0x100] sm:$0xff]
        %v5101 = vld [vmem:[%s288 + $0x108] sm:$0xff]
        %v5102 = vld [vmem:[%s288 + $0x110] sm:$0xff]
        %v5103 = vld [vmem:[%s288 + $0x118] sm:$0xff]
        %v5104 = vld [vmem:[%s288 + $0x120] sm:$0xff]
        %v5105 = vld [vmem:[%s288 + $0x128] sm:$0xff]
        %v5106 = vld [vmem:[%s288 + $0x130] sm:$0xff]
        %v5107 = vld [vmem:[%s288 + $0x138] sm:$0xff]
        %v5108 = vld [vmem:[%s288 + $0x140] sm:$0xff]
        %v5109 = vld [vmem:[%s288 + $0x148] sm:$0xff]
        %v5110 = vld [vmem:[%s288 + $0x150] sm:$0xff]
        %v5111 = vld [vmem:[%s288 + $0x158] sm:$0xff]
        %v5112 = vld [vmem:[%s288 + $0x160] sm:$0xff]
        %v5113 = vld [vmem:[%s288 + $0x168] sm:$0xff]
        %v5114 = vld [vmem:[%s288 + $0x170] sm:$0xff]
        %v5115 = vld [vmem:[%s288 + $0x178] sm:$0xff]
        %v5116 = vld [vmem:[%s288 + $0x180] sm:$0xff]
        %v5117 = vld [vmem:[%s288 + $0x188] sm:$0xff]
        %v5118 = vld [vmem:[%s288 + $0x190] sm:$0xff]
        %v5119 = vld [vmem:[%s288 + $0x198] sm:$0xff]
        %v5120 = vld [vmem:[%s288 + $0x1a0] sm:$0xff]
        %v5121 = vld [vmem:[%s288 + $0x1a8] sm:$0xff]
        %v5122 = vld [vmem:[%s288 + $0x1b0] sm:$0xff]
        %v5123 = vld [vmem:[%s288 + $0x1b8] sm:$0xff]
        %v5124 = vld [vmem:[%s288 + $0x1c0] sm:$0xff]
        %v5125 = vld [vmem:[%s288 + $0x1c8] sm:$0xff]
        %v5126 = vld [vmem:[%s288 + $0x1d0] sm:$0xff]
        %v5127 = vld [vmem:[%s288 + $0x1d8] sm:$0xff]
        %v5128 = vld [vmem:[%s288 + $0x1e0] sm:$0xff]
        %v5129 = vld [vmem:[%s288 + $0x1e8] sm:$0xff]
        %v5130 = vld [vmem:[%s288 + $0x1f0] sm:$0xff]
        %v5131 = vld [vmem:[%s288 + $0x1f8] sm:$0xff]
        %v5132 = vld [vmem:[%s288 + $0x200] sm:$0xff]
        %v5133 = vld [vmem:[%s288 + $0x208] sm:$0xff]
        %v5134 = vld [vmem:[%s288 + $0x210] sm:$0xff]
        %v5135 = vld [vmem:[%s288 + $0x218] sm:$0xff]
        %v5136 = vld [vmem:[%s288 + $0x220] sm:$0xff]
        %v5137 = vld [vmem:[%s288 + $0x228] sm:$0xff]
        %v5138 = vld [vmem:[%s288 + $0x230] sm:$0xff]
        %v5139 = vld [vmem:[%s288 + $0x238] sm:$0xff]
        %v5140 = vld [vmem:[%s288 + $0x240] sm:$0xff]
        %v5141 = vld [vmem:[%s288 + $0x248] sm:$0xff]
        %v5142 = vld [vmem:[%s288 + $0x250] sm:$0xff]
        %v5143 = vld [vmem:[%s288 + $0x258] sm:$0xff]
        %v5144 = vld [vmem:[%s288 + $0x260] sm:$0xff]
        %v5145 = vld [vmem:[%s288 + $0x268] sm:$0xff]
        %v5146 = vld [vmem:[%s288 + $0x270] sm:$0xff]
        %v5147 = vld [vmem:[%s288 + $0x278] sm:$0xff]
        %v5148 = vld [vmem:[%s288 + $0x280] sm:$0xff]
        %v5149 = vld [vmem:[%s288 + $0x288] sm:$0xff]
        %v5150 = vld [vmem:[%s288 + $0x290] sm:$0xff]
        %v5151 = vld [vmem:[%s288 + $0x298] sm:$0xff]
        %v5152 = vld [vmem:[%s288 + $0x2a0] sm:$0xff]
        %v5153 = vld [vmem:[%s288 + $0x2a8] sm:$0xff]
        %v5154 = vld [vmem:[%s288 + $0x2b0] sm:$0xff]
        %v5155 = vld [vmem:[%s288 + $0x2b8] sm:$0xff]
        %v5156 = vld [vmem:[%s288 + $0x2c0] sm:$0xff]
        %v5157 = vld [vmem:[%s288 + $0x2c8] sm:$0xff]
        %v5158 = vld [vmem:[%s288 + $0x2d0] sm:$0xff]
        %v5159 = vld [vmem:[%s288 + $0x2d8] sm:$0xff]
        %v5160 = vld [vmem:[%s288 + $0x2e0] sm:$0xff]
        %v5161 = vld [vmem:[%s288 + $0x2e8] sm:$0xff]
        %v5162 = vld [vmem:[%s288 + $0x2f0] sm:$0xff]
        %v5163 = vld [vmem:[%s288 + $0x2f8] sm:$0xff]
        %v5164 = vld [vmem:[%s288 + $0x300] sm:$0xff]
        %v5165 = vld [vmem:[%s288 + $0x308] sm:$0xff]
        %v5166 = vld [vmem:[%s288 + $0x310] sm:$0xff]
        %v5167 = vld [vmem:[%s288 + $0x318] sm:$0xff]
        %v5168 = vld [vmem:[%s288 + $0x320] sm:$0xff]
        %v5169 = vld [vmem:[%s288 + $0x328] sm:$0xff]
        %v5170 = vld [vmem:[%s288 + $0x330] sm:$0xff]
        %v5171 = vld [vmem:[%s288 + $0x338] sm:$0xff]
        %v5172 = vld [vmem:[%s288 + $0x340] sm:$0xff]
        %v5173 = vld [vmem:[%s288 + $0x348] sm:$0xff]
        %v5174 = vld [vmem:[%s288 + $0x350] sm:$0xff]
        %v5175 = vld [vmem:[%s288 + $0x358] sm:$0xff]
        %v5176 = vld [vmem:[%s288 + $0x360] sm:$0xff]
        %v5177 = vld [vmem:[%s288 + $0x368] sm:$0xff]
        %v5178 = vld [vmem:[%s288 + $0x370] sm:$0xff]
        %v5179 = vld [vmem:[%s288 + $0x378] sm:$0xff]
        %v5196 = vunpack.c.l.b16 %v5068
        %v5197 = vunpack.c.h.b16 %v5068
        %v5198 = vunpack.c.l.b16 %v5069
        %v5199 = vunpack.c.h.b16 %v5069
        %v5200 = vunpack.c.l.b16 %v5070
        %v5201 = vunpack.c.h.b16 %v5070
        %v5202 = vunpack.c.l.b16 %v5071
        %v5203 = vunpack.c.h.b16 %v5071
        %v5204 = vunpack.c.l.b16 %v5072
        %v5205 = vunpack.c.h.b16 %v5072
        %v5206 = vunpack.c.l.b16 %v5073
        %v5207 = vunpack.c.h.b16 %v5073
        %v5208 = vunpack.c.l.b16 %v5074
        %v5209 = vunpack.c.h.b16 %v5074
        %v5210 = vunpack.c.l.b16 %v5075
        %v5211 = vunpack.c.h.b16 %v5075
        %v5212 = vunpack.c.l.b16 %v5076
        %v5213 = vunpack.c.h.b16 %v5076
        %v5214 = vunpack.c.l.b16 %v5077
        %v5215 = vunpack.c.h.b16 %v5077
        %v5216 = vunpack.c.l.b16 %v5078
        %v5217 = vunpack.c.h.b16 %v5078
        %v5218 = vunpack.c.l.b16 %v5079
        %v5219 = vunpack.c.h.b16 %v5079
        %v5220 = vunpack.c.l.b16 %v5080
        %v5221 = vunpack.c.h.b16 %v5080
        %v5222 = vunpack.c.l.b16 %v5081
        %v5223 = vunpack.c.h.b16 %v5081
        %v5224 = vunpack.c.l.b16 %v5082
        %v5225 = vunpack.c.h.b16 %v5082
        %v5226 = vunpack.c.l.b16 %v5083
        %v5227 = vunpack.c.h.b16 %v5083
        %v5228 = vpack.c.b16 %v5198, %v5196
        %v5229 = vpack.c.b16 %v5199, %v5197
        %v5230 = vpack.c.b16 %v5202, %v5200
        %v5231 = vpack.c.b16 %v5203, %v5201
        %v5232 = vpack.c.b16 %v5206, %v5204
        %v5233 = vpack.c.b16 %v5207, %v5205
        %v5234 = vpack.c.b16 %v5210, %v5208
        %v5235 = vpack.c.b16 %v5211, %v5209
        %v5236 = vpack.c.b16 %v5214, %v5212
        %v5237 = vpack.c.b16 %v5215, %v5213
        %v5238 = vpack.c.b16 %v5218, %v5216
        %v5239 = vpack.c.b16 %v5219, %v5217
        %v5240 = vpack.c.b16 %v5222, %v5220
        %v5241 = vpack.c.b16 %v5223, %v5221
        %v5242 = vpack.c.b16 %v5226, %v5224
        %v5243 = vpack.c.b16 %v5227, %v5225
        %5260 = vmatpush.bf16.msra.mxu0 %v5242
        %5261 = vmatpush.bf16.msra.mxu0 %v5240
        %5262 = vmatpush.bf16.msra.mxu0 %v5238
        %5263 = vmatpush.bf16.msra.mxu0 %v5236
        %5264 = vmatpush.bf16.msra.mxu0 %v5234
        %5265 = vmatpush.bf16.msra.mxu0 %v5232
        %5266 = vmatpush.bf16.msra.mxu0 %v5230
        %5267 = vmatpush.bf16.msra.mxu0 %v5228
        %5268 = vmatmul.bf16.gmra.mxu0 %v5061
        %v5269 = vpop.f32.mrf.mxu0
        %v5270 = vadd.f32 0.0, %v5269
        %v5271 = vpop.f32.mrf.mxu0
        %5272 = vdwg.mxu0
        %5273 = vmatpush.bf16.msra.mxu0 %v5243
        %5274 = vmatpush.bf16.msra.mxu0 %v5241
        %5275 = vmatpush.bf16.msra.mxu0 %v5239
        %5276 = vmatpush.bf16.msra.mxu0 %v5237
        %5277 = vmatpush.bf16.msra.mxu0 %v5235
        %5278 = vmatpush.bf16.msra.mxu0 %v5233
        %5279 = vmatpush.bf16.msra.mxu0 %v5231
        %5280 = vmatpush.bf16.msra.mxu0 %v5229
        %5281 = vmatmul.bf16.gmra.mxu0 %v5061
        %v5282 = vpop.f32.mrf.mxu0
        %v5283 = vadd.f32 0.0, %v5282
        %v5284 = vpop.f32.mrf.mxu0
        %5285 = vdwg.mxu0
        %v5302 = vunpack.c.l.b16 %v5084
        %v5303 = vunpack.c.h.b16 %v5084
        %v5304 = vunpack.c.l.b16 %v5085
        %v5305 = vunpack.c.h.b16 %v5085
        %v5306 = vunpack.c.l.b16 %v5086
        %v5307 = vunpack.c.h.b16 %v5086
        %v5308 = vunpack.c.l.b16 %v5087
        %v5309 = vunpack.c.h.b16 %v5087
        %v5310 = vunpack.c.l.b16 %v5088
        %v5311 = vunpack.c.h.b16 %v5088
        %v5312 = vunpack.c.l.b16 %v5089
        %v5313 = vunpack.c.h.b16 %v5089
        %v5314 = vunpack.c.l.b16 %v5090
        %v5315 = vunpack.c.h.b16 %v5090
        %v5316 = vunpack.c.l.b16 %v5091
        %v5317 = vunpack.c.h.b16 %v5091
        %v5318 = vunpack.c.l.b16 %v5092
        %v5319 = vunpack.c.h.b16 %v5092
        %v5320 = vunpack.c.l.b16 %v5093
        %v5321 = vunpack.c.h.b16 %v5093
        %v5322 = vunpack.c.l.b16 %v5094
        %v5323 = vunpack.c.h.b16 %v5094
        %v5324 = vunpack.c.l.b16 %v5095
        %v5325 = vunpack.c.h.b16 %v5095
        %v5326 = vunpack.c.l.b16 %v5096
        %v5327 = vunpack.c.h.b16 %v5096
        %v5328 = vunpack.c.l.b16 %v5097
        %v5329 = vunpack.c.h.b16 %v5097
        %v5330 = vunpack.c.l.b16 %v5098
        %v5331 = vunpack.c.h.b16 %v5098
        %v5332 = vunpack.c.l.b16 %v5099
        %v5333 = vunpack.c.h.b16 %v5099
        %v5334 = vpack.c.b16 %v5304, %v5302
        %v5335 = vpack.c.b16 %v5305, %v5303
        %v5336 = vpack.c.b16 %v5308, %v5306
        %v5337 = vpack.c.b16 %v5309, %v5307
        %v5338 = vpack.c.b16 %v5312, %v5310
        %v5339 = vpack.c.b16 %v5313, %v5311
        %v5340 = vpack.c.b16 %v5316, %v5314
        %v5341 = vpack.c.b16 %v5317, %v5315
        %v5342 = vpack.c.b16 %v5320, %v5318
        %v5343 = vpack.c.b16 %v5321, %v5319
        %v5344 = vpack.c.b16 %v5324, %v5322
        %v5345 = vpack.c.b16 %v5325, %v5323
        %v5346 = vpack.c.b16 %v5328, %v5326
        %v5347 = vpack.c.b16 %v5329, %v5327
        %v5348 = vpack.c.b16 %v5332, %v5330
        %v5349 = vpack.c.b16 %v5333, %v5331
        %5366 = vmatpush.bf16.msra.mxu0 %v5348
        %5367 = vmatpush.bf16.msra.mxu0 %v5346
        %5368 = vmatpush.bf16.msra.mxu0 %v5344
        %5369 = vmatpush.bf16.msra.mxu0 %v5342
        %5370 = vmatpush.bf16.msra.mxu0 %v5340
        %5371 = vmatpush.bf16.msra.mxu0 %v5338
        %5372 = vmatpush.bf16.msra.mxu0 %v5336
        %5373 = vmatpush.bf16.msra.mxu0 %v5334
        %5374 = vmatmul.bf16.gmra.mxu0 %v5062
        %v5375 = vpop.f32.mrf.mxu0
        %v5376 = vadd.f32 0.0, %v5375
        %v5377 = vpop.f32.mrf.mxu0
        %5378 = vdwg.mxu0
        %5379 = vmatpush.bf16.msra.mxu0 %v5349
        %5380 = vmatpush.bf16.msra.mxu0 %v5347
        %5381 = vmatpush.bf16.msra.mxu0 %v5345
        %5382 = vmatpush.bf16.msra.mxu0 %v5343
        %5383 = vmatpush.bf16.msra.mxu0 %v5341
        %5384 = vmatpush.bf16.msra.mxu0 %v5339
        %5385 = vmatpush.bf16.msra.mxu0 %v5337
        %5386 = vmatpush.bf16.msra.mxu0 %v5335
        %5387 = vmatmul.bf16.gmra.mxu0 %v5062
        %v5388 = vpop.f32.mrf.mxu0
        %v5389 = vadd.f32 0.0, %v5388
        %v5390 = vpop.f32.mrf.mxu0
        %5391 = vdwg.mxu0
        %v5408 = vunpack.c.l.b16 %v5100
        %v5409 = vunpack.c.h.b16 %v5100
        %v5410 = vunpack.c.l.b16 %v5101
        %v5411 = vunpack.c.h.b16 %v5101
        %v5412 = vunpack.c.l.b16 %v5102
        %v5413 = vunpack.c.h.b16 %v5102
        %v5414 = vunpack.c.l.b16 %v5103
        %v5415 = vunpack.c.h.b16 %v5103
        %v5416 = vunpack.c.l.b16 %v5104
        %v5417 = vunpack.c.h.b16 %v5104
        %v5418 = vunpack.c.l.b16 %v5105
        %v5419 = vunpack.c.h.b16 %v5105
        %v5420 = vunpack.c.l.b16 %v5106
        %v5421 = vunpack.c.h.b16 %v5106
        %v5422 = vunpack.c.l.b16 %v5107
        %v5423 = vunpack.c.h.b16 %v5107
        %v5424 = vunpack.c.l.b16 %v5108
        %v5425 = vunpack.c.h.b16 %v5108
        %v5426 = vunpack.c.l.b16 %v5109
        %v5427 = vunpack.c.h.b16 %v5109
        %v5428 = vunpack.c.l.b16 %v5110
        %v5429 = vunpack.c.h.b16 %v5110
        %v5430 = vunpack.c.l.b16 %v5111
        %v5431 = vunpack.c.h.b16 %v5111
        %v5432 = vunpack.c.l.b16 %v5112
        %v5433 = vunpack.c.h.b16 %v5112
        %v5434 = vunpack.c.l.b16 %v5113
        %v5435 = vunpack.c.h.b16 %v5113
        %v5436 = vunpack.c.l.b16 %v5114
        %v5437 = vunpack.c.h.b16 %v5114
        %v5438 = vunpack.c.l.b16 %v5115
        %v5439 = vunpack.c.h.b16 %v5115
        %v5440 = vpack.c.b16 %v5410, %v5408
        %v5441 = vpack.c.b16 %v5411, %v5409
        %v5442 = vpack.c.b16 %v5414, %v5412
        %v5443 = vpack.c.b16 %v5415, %v5413
        %v5444 = vpack.c.b16 %v5418, %v5416
        %v5445 = vpack.c.b16 %v5419, %v5417
        %v5446 = vpack.c.b16 %v5422, %v5420
        %v5447 = vpack.c.b16 %v5423, %v5421
        %v5448 = vpack.c.b16 %v5426, %v5424
        %v5449 = vpack.c.b16 %v5427, %v5425
        %v5450 = vpack.c.b16 %v5430, %v5428
        %v5451 = vpack.c.b16 %v5431, %v5429
        %v5452 = vpack.c.b16 %v5434, %v5432
        %v5453 = vpack.c.b16 %v5435, %v5433
        %v5454 = vpack.c.b16 %v5438, %v5436
        %v5455 = vpack.c.b16 %v5439, %v5437
        %5472 = vmatpush.bf16.msra.mxu0 %v5454
        %5473 = vmatpush.bf16.msra.mxu0 %v5452
        %5474 = vmatpush.bf16.msra.mxu0 %v5450
        %5475 = vmatpush.bf16.msra.mxu0 %v5448
        %5476 = vmatpush.bf16.msra.mxu0 %v5446
        %5477 = vmatpush.bf16.msra.mxu0 %v5444
        %5478 = vmatpush.bf16.msra.mxu0 %v5442
        %5479 = vmatpush.bf16.msra.mxu0 %v5440
        %5480 = vmatmul.bf16.gmra.mxu0 %v5063
        %v5481 = vpop.f32.mrf.mxu0
        %v5482 = vadd.f32 0.0, %v5481
        %v5483 = vpop.f32.mrf.mxu0
        %5484 = vdwg.mxu0
        %5485 = vmatpush.bf16.msra.mxu0 %v5455
        %5486 = vmatpush.bf16.msra.mxu0 %v5453
        %5487 = vmatpush.bf16.msra.mxu0 %v5451
        %5488 = vmatpush.bf16.msra.mxu0 %v5449
        %5489 = vmatpush.bf16.msra.mxu0 %v5447
        %5490 = vmatpush.bf16.msra.mxu0 %v5445
        %5491 = vmatpush.bf16.msra.mxu0 %v5443
        %5492 = vmatpush.bf16.msra.mxu0 %v5441
        %5493 = vmatmul.bf16.gmra.mxu0 %v5063
        %v5494 = vpop.f32.mrf.mxu0
        %v5495 = vadd.f32 0.0, %v5494
        %v5496 = vpop.f32.mrf.mxu0
        %5497 = vdwg.mxu0
        %v5514 = vunpack.c.l.b16 %v5116
        %v5515 = vunpack.c.h.b16 %v5116
        %v5516 = vunpack.c.l.b16 %v5117
        %v5517 = vunpack.c.h.b16 %v5117
        %v5518 = vunpack.c.l.b16 %v5118
        %v5519 = vunpack.c.h.b16 %v5118
        %v5520 = vunpack.c.l.b16 %v5119
        %v5521 = vunpack.c.h.b16 %v5119
        %v5522 = vunpack.c.l.b16 %v5120
        %v5523 = vunpack.c.h.b16 %v5120
        %v5524 = vunpack.c.l.b16 %v5121
        %v5525 = vunpack.c.h.b16 %v5121
        %v5526 = vunpack.c.l.b16 %v5122
        %v5527 = vunpack.c.h.b16 %v5122
        %v5528 = vunpack.c.l.b16 %v5123
        %v5529 = vunpack.c.h.b16 %v5123
        %v5530 = vunpack.c.l.b16 %v5124
        %v5531 = vunpack.c.h.b16 %v5124
        %v5532 = vunpack.c.l.b16 %v5125
        %v5533 = vunpack.c.h.b16 %v5125
        %v5534 = vunpack.c.l.b16 %v5126
        %v5535 = vunpack.c.h.b16 %v5126
        %v5536 = vunpack.c.l.b16 %v5127
        %v5537 = vunpack.c.h.b16 %v5127
        %v5538 = vunpack.c.l.b16 %v5128
        %v5539 = vunpack.c.h.b16 %v5128
        %v5540 = vunpack.c.l.b16 %v5129
        %v5541 = vunpack.c.h.b16 %v5129
        %v5542 = vunpack.c.l.b16 %v5130
        %v5543 = vunpack.c.h.b16 %v5130
        %v5544 = vunpack.c.l.b16 %v5131
        %v5545 = vunpack.c.h.b16 %v5131
        %v5546 = vpack.c.b16 %v5516, %v5514
        %v5547 = vpack.c.b16 %v5517, %v5515
        %v5548 = vpack.c.b16 %v5520, %v5518
        %v5549 = vpack.c.b16 %v5521, %v5519
        %v5550 = vpack.c.b16 %v5524, %v5522
        %v5551 = vpack.c.b16 %v5525, %v5523
        %v5552 = vpack.c.b16 %v5528, %v5526
        %v5553 = vpack.c.b16 %v5529, %v5527
        %v5554 = vpack.c.b16 %v5532, %v5530
        %v5555 = vpack.c.b16 %v5533, %v5531
        %v5556 = vpack.c.b16 %v5536, %v5534
        %v5557 = vpack.c.b16 %v5537, %v5535
        %v5558 = vpack.c.b16 %v5540, %v5538
        %v5559 = vpack.c.b16 %v5541, %v5539
        %v5560 = vpack.c.b16 %v5544, %v5542
        %v5561 = vpack.c.b16 %v5545, %v5543
        %5578 = vmatpush.bf16.msra.mxu0 %v5560
        %5579 = vmatpush.bf16.msra.mxu0 %v5558
        %5580 = vmatpush.bf16.msra.mxu0 %v5556
        %5581 = vmatpush.bf16.msra.mxu0 %v5554
        %5582 = vmatpush.bf16.msra.mxu0 %v5552
        %5583 = vmatpush.bf16.msra.mxu0 %v5550
        %5584 = vmatpush.bf16.msra.mxu0 %v5548
        %5585 = vmatpush.bf16.msra.mxu0 %v5546
        %5586 = vmatmul.bf16.gmra.mxu0 %v5064
        %v5587 = vpop.f32.mrf.mxu0
        %v5588 = vadd.f32 0.0, %v5587
        %v5589 = vpop.f32.mrf.mxu0
        %5590 = vdwg.mxu0
        %5591 = vmatpush.bf16.msra.mxu0 %v5561
        %5592 = vmatpush.bf16.msra.mxu0 %v5559
        %5593 = vmatpush.bf16.msra.mxu0 %v5557
        %5594 = vmatpush.bf16.msra.mxu0 %v5555
        %5595 = vmatpush.bf16.msra.mxu0 %v5553
        %5596 = vmatpush.bf16.msra.mxu0 %v5551
        %5597 = vmatpush.bf16.msra.mxu0 %v5549
        %5598 = vmatpush.bf16.msra.mxu0 %v5547
        %5599 = vmatmul.bf16.gmra.mxu0 %v5064
        %v5600 = vpop.f32.mrf.mxu0
        %v5601 = vadd.f32 0.0, %v5600
        %v5602 = vpop.f32.mrf.mxu0
        %5603 = vdwg.mxu0
        %v5620 = vunpack.c.l.b16 %v5132
        %v5621 = vunpack.c.h.b16 %v5132
        %v5622 = vunpack.c.l.b16 %v5133
        %v5623 = vunpack.c.h.b16 %v5133
        %v5624 = vunpack.c.l.b16 %v5134
        %v5625 = vunpack.c.h.b16 %v5134
        %v5626 = vunpack.c.l.b16 %v5135
        %v5627 = vunpack.c.h.b16 %v5135
        %v5628 = vunpack.c.l.b16 %v5136
        %v5629 = vunpack.c.h.b16 %v5136
        %v5630 = vunpack.c.l.b16 %v5137
        %v5631 = vunpack.c.h.b16 %v5137
        %v5632 = vunpack.c.l.b16 %v5138
        %v5633 = vunpack.c.h.b16 %v5138
        %v5634 = vunpack.c.l.b16 %v5139
        %v5635 = vunpack.c.h.b16 %v5139
        %v5636 = vunpack.c.l.b16 %v5140
        %v5637 = vunpack.c.h.b16 %v5140
        %v5638 = vunpack.c.l.b16 %v5141
        %v5639 = vunpack.c.h.b16 %v5141
        %v5640 = vunpack.c.l.b16 %v5142
        %v5641 = vunpack.c.h.b16 %v5142
        %v5642 = vunpack.c.l.b16 %v5143
        %v5643 = vunpack.c.h.b16 %v5143
        %v5644 = vunpack.c.l.b16 %v5144
        %v5645 = vunpack.c.h.b16 %v5144
        %v5646 = vunpack.c.l.b16 %v5145
        %v5647 = vunpack.c.h.b16 %v5145
        %v5648 = vunpack.c.l.b16 %v5146
        %v5649 = vunpack.c.h.b16 %v5146
        %v5650 = vunpack.c.l.b16 %v5147
        %v5651 = vunpack.c.h.b16 %v5147
        %v5652 = vpack.c.b16 %v5622, %v5620
        %v5653 = vpack.c.b16 %v5623, %v5621
        %v5654 = vpack.c.b16 %v5626, %v5624
        %v5655 = vpack.c.b16 %v5627, %v5625
        %v5656 = vpack.c.b16 %v5630, %v5628
        %v5657 = vpack.c.b16 %v5631, %v5629
        %v5658 = vpack.c.b16 %v5634, %v5632
        %v5659 = vpack.c.b16 %v5635, %v5633
        %v5660 = vpack.c.b16 %v5638, %v5636
        %v5661 = vpack.c.b16 %v5639, %v5637
        %v5662 = vpack.c.b16 %v5642, %v5640
        %v5663 = vpack.c.b16 %v5643, %v5641
        %v5664 = vpack.c.b16 %v5646, %v5644
        %v5665 = vpack.c.b16 %v5647, %v5645
        %v5666 = vpack.c.b16 %v5650, %v5648
        %v5667 = vpack.c.b16 %v5651, %v5649
        %5684 = vmatpush.bf16.msra.mxu0 %v5666
        %5685 = vmatpush.bf16.msra.mxu0 %v5664
        %5686 = vmatpush.bf16.msra.mxu0 %v5662
        %5687 = vmatpush.bf16.msra.mxu0 %v5660
        %5688 = vmatpush.bf16.msra.mxu0 %v5658
        %5689 = vmatpush.bf16.msra.mxu0 %v5656
        %5690 = vmatpush.bf16.msra.mxu0 %v5654
        %5691 = vmatpush.bf16.msra.mxu0 %v5652
        %5692 = vmatmul.bf16.gmra.mxu0 %v5065
        %v5693 = vpop.f32.mrf.mxu0
        %v5694 = vadd.f32 0.0, %v5693
        %v5695 = vpop.f32.mrf.mxu0
        %5696 = vdwg.mxu0
        %5697 = vmatpush.bf16.msra.mxu0 %v5667
        %5698 = vmatpush.bf16.msra.mxu0 %v5665
        %5699 = vmatpush.bf16.msra.mxu0 %v5663
        %5700 = vmatpush.bf16.msra.mxu0 %v5661
        %5701 = vmatpush.bf16.msra.mxu0 %v5659
        %5702 = vmatpush.bf16.msra.mxu0 %v5657
        %5703 = vmatpush.bf16.msra.mxu0 %v5655
        %5704 = vmatpush.bf16.msra.mxu0 %v5653
        %5705 = vmatmul.bf16.gmra.mxu0 %v5065
        %v5706 = vpop.f32.mrf.mxu0
        %v5707 = vadd.f32 0.0, %v5706
        %v5708 = vpop.f32.mrf.mxu0
        %5709 = vdwg.mxu0
        %v5726 = vunpack.c.l.b16 %v5148
        %v5727 = vunpack.c.h.b16 %v5148
        %v5728 = vunpack.c.l.b16 %v5149
        %v5729 = vunpack.c.h.b16 %v5149
        %v5730 = vunpack.c.l.b16 %v5150
        %v5731 = vunpack.c.h.b16 %v5150
        %v5732 = vunpack.c.l.b16 %v5151
        %v5733 = vunpack.c.h.b16 %v5151
        %v5734 = vunpack.c.l.b16 %v5152
        %v5735 = vunpack.c.h.b16 %v5152
        %v5736 = vunpack.c.l.b16 %v5153
        %v5737 = vunpack.c.h.b16 %v5153
        %v5738 = vunpack.c.l.b16 %v5154
        %v5739 = vunpack.c.h.b16 %v5154
        %v5740 = vunpack.c.l.b16 %v5155
        %v5741 = vunpack.c.h.b16 %v5155
        %v5742 = vunpack.c.l.b16 %v5156
        %v5743 = vunpack.c.h.b16 %v5156
        %v5744 = vunpack.c.l.b16 %v5157
        %v5745 = vunpack.c.h.b16 %v5157
        %v5746 = vunpack.c.l.b16 %v5158
        %v5747 = vunpack.c.h.b16 %v5158
        %v5748 = vunpack.c.l.b16 %v5159
        %v5749 = vunpack.c.h.b16 %v5159
        %v5750 = vunpack.c.l.b16 %v5160
        %v5751 = vunpack.c.h.b16 %v5160
        %v5752 = vunpack.c.l.b16 %v5161
        %v5753 = vunpack.c.h.b16 %v5161
        %v5754 = vunpack.c.l.b16 %v5162
        %v5755 = vunpack.c.h.b16 %v5162
        %v5756 = vunpack.c.l.b16 %v5163
        %v5757 = vunpack.c.h.b16 %v5163
        %v5758 = vpack.c.b16 %v5728, %v5726
        %v5759 = vpack.c.b16 %v5729, %v5727
        %v5760 = vpack.c.b16 %v5732, %v5730
        %v5761 = vpack.c.b16 %v5733, %v5731
        %v5762 = vpack.c.b16 %v5736, %v5734
        %v5763 = vpack.c.b16 %v5737, %v5735
        %v5764 = vpack.c.b16 %v5740, %v5738
        %v5765 = vpack.c.b16 %v5741, %v5739
        %v5766 = vpack.c.b16 %v5744, %v5742
        %v5767 = vpack.c.b16 %v5745, %v5743
        %v5768 = vpack.c.b16 %v5748, %v5746
        %v5769 = vpack.c.b16 %v5749, %v5747
        %v5770 = vpack.c.b16 %v5752, %v5750
        %v5771 = vpack.c.b16 %v5753, %v5751
        %v5772 = vpack.c.b16 %v5756, %v5754
        %v5773 = vpack.c.b16 %v5757, %v5755
        %5790 = vmatpush.bf16.msra.mxu0 %v5772
        %5791 = vmatpush.bf16.msra.mxu0 %v5770
        %5792 = vmatpush.bf16.msra.mxu0 %v5768
        %5793 = vmatpush.bf16.msra.mxu0 %v5766
        %5794 = vmatpush.bf16.msra.mxu0 %v5764
        %5795 = vmatpush.bf16.msra.mxu0 %v5762
        %5796 = vmatpush.bf16.msra.mxu0 %v5760
        %5797 = vmatpush.bf16.msra.mxu0 %v5758
        %5798 = vmatmul.bf16.gmra.mxu0 %v5066
        %v5799 = vpop.f32.mrf.mxu0
        %v5800 = vadd.f32 0.0, %v5799
        %v5801 = vpop.f32.mrf.mxu0
        %5802 = vdwg.mxu0
        %5803 = vmatpush.bf16.msra.mxu0 %v5773
        %5804 = vmatpush.bf16.msra.mxu0 %v5771
        %5805 = vmatpush.bf16.msra.mxu0 %v5769
        %5806 = vmatpush.bf16.msra.mxu0 %v5767
        %5807 = vmatpush.bf16.msra.mxu0 %v5765
        %5808 = vmatpush.bf16.msra.mxu0 %v5763
        %5809 = vmatpush.bf16.msra.mxu0 %v5761
        %5810 = vmatpush.bf16.msra.mxu0 %v5759
        %5811 = vmatmul.bf16.gmra.mxu0 %v5066
        %v5812 = vpop.f32.mrf.mxu0
        %v5813 = vadd.f32 0.0, %v5812
        %v5814 = vpop.f32.mrf.mxu0
        %5815 = vdwg.mxu0
        %v5832 = vunpack.c.l.b16 %v5164
        %v5833 = vunpack.c.h.b16 %v5164
        %v5834 = vunpack.c.l.b16 %v5165
        %v5835 = vunpack.c.h.b16 %v5165
        %v5836 = vunpack.c.l.b16 %v5166
        %v5837 = vunpack.c.h.b16 %v5166
        %v5838 = vunpack.c.l.b16 %v5167
        %v5839 = vunpack.c.h.b16 %v5167
        %v5840 = vunpack.c.l.b16 %v5168
        %v5841 = vunpack.c.h.b16 %v5168
        %v5842 = vunpack.c.l.b16 %v5169
        %v5843 = vunpack.c.h.b16 %v5169
        %v5844 = vunpack.c.l.b16 %v5170
        %v5845 = vunpack.c.h.b16 %v5170
        %v5846 = vunpack.c.l.b16 %v5171
        %v5847 = vunpack.c.h.b16 %v5171
        %v5848 = vunpack.c.l.b16 %v5172
        %v5849 = vunpack.c.h.b16 %v5172
        %v5850 = vunpack.c.l.b16 %v5173
        %v5851 = vunpack.c.h.b16 %v5173
        %v5852 = vunpack.c.l.b16 %v5174
        %v5853 = vunpack.c.h.b16 %v5174
        %v5854 = vunpack.c.l.b16 %v5175
        %v5855 = vunpack.c.h.b16 %v5175
        %v5856 = vunpack.c.l.b16 %v5176
        %v5857 = vunpack.c.h.b16 %v5176
        %v5858 = vunpack.c.l.b16 %v5177
        %v5859 = vunpack.c.h.b16 %v5177
        %v5860 = vunpack.c.l.b16 %v5178
        %v5861 = vunpack.c.h.b16 %v5178
        %v5862 = vunpack.c.l.b16 %v5179
        %v5863 = vunpack.c.h.b16 %v5179
        %v5864 = vpack.c.b16 %v5834, %v5832
        %v5865 = vpack.c.b16 %v5835, %v5833
        %v5866 = vpack.c.b16 %v5838, %v5836
        %v5867 = vpack.c.b16 %v5839, %v5837
        %v5868 = vpack.c.b16 %v5842, %v5840
        %v5869 = vpack.c.b16 %v5843, %v5841
        %v5870 = vpack.c.b16 %v5846, %v5844
        %v5871 = vpack.c.b16 %v5847, %v5845
        %v5872 = vpack.c.b16 %v5850, %v5848
        %v5873 = vpack.c.b16 %v5851, %v5849
        %v5874 = vpack.c.b16 %v5854, %v5852
        %v5875 = vpack.c.b16 %v5855, %v5853
        %v5876 = vpack.c.b16 %v5858, %v5856
        %v5877 = vpack.c.b16 %v5859, %v5857
        %v5878 = vpack.c.b16 %v5862, %v5860
        %v5879 = vpack.c.b16 %v5863, %v5861
        %5896 = vmatpush.bf16.msra.mxu0 %v5878
        %5897 = vmatpush.bf16.msra.mxu0 %v5876
        %5898 = vmatpush.bf16.msra.mxu0 %v5874
        %5899 = vmatpush.bf16.msra.mxu0 %v5872
        %5900 = vmatpush.bf16.msra.mxu0 %v5870
        %5901 = vmatpush.bf16.msra.mxu0 %v5868
        %5902 = vmatpush.bf16.msra.mxu0 %v5866
        %5903 = vmatpush.bf16.msra.mxu0 %v5864
        %5904 = vmatmul.bf16.gmra.mxu0 %v5067
        %v5905 = vpop.f32.mrf.mxu0
        %v5906 = vadd.f32 0.0, %v5905
        %v5907 = vpop.f32.mrf.mxu0
        %5908 = vdwg.mxu0
        %5909 = vmatpush.bf16.msra.mxu0 %v5879
        %5910 = vmatpush.bf16.msra.mxu0 %v5877
        %5911 = vmatpush.bf16.msra.mxu0 %v5875
        %5912 = vmatpush.bf16.msra.mxu0 %v5873
        %5913 = vmatpush.bf16.msra.mxu0 %v5871
        %5914 = vmatpush.bf16.msra.mxu0 %v5869
        %5915 = vmatpush.bf16.msra.mxu0 %v5867
        %5916 = vmatpush.bf16.msra.mxu0 %v5865
        %5917 = vmatmul.bf16.gmra.mxu0 %v5067
        %v5918 = vpop.f32.mrf.mxu0
        %v5919 = vadd.f32 0.0, %v5918
        %v5920 = vpop.f32.mrf.mxu0
        %5921 = vdwg.mxu0
        %v5922 = vld [vmem:[#allocation6] sm:$0xf]
        %vm5923 = vcmask 1041408
        %v5924 = vsel %vm5923, %v5270, 0.0
        %v5925 = vsel %vm5923, %v5376, 0.0
        %v5926 = vadd.f32 %v5924, %v5925
        %v5927 = vsel %vm5923, %v5482, 0.0
        %v5928 = vadd.f32 %v5926, %v5927
        %v5929 = vsel %vm5923, %v5588, 0.0
        %v5930 = vadd.f32 %v5928, %v5929
        %v5931 = vsel %vm5923, %v5694, 0.0
        %v5932 = vadd.f32 %v5930, %v5931
        %v5933 = vsel %vm5923, %v5800, 0.0
        %v5934 = vadd.f32 %v5932, %v5933
        %v5935 = vsel %vm5923, %v5906, 0.0
        %v5936 = vadd.f32 %v5934, %v5935
        %v5937 = vsel %vm5923, %v5283, 0.0
        %v5938 = vsel %vm5923, %v5389, 0.0
        %v5939 = vadd.f32 %v5937, %v5938
        %v5940 = vsel %vm5923, %v5495, 0.0
        %v5941 = vadd.f32 %v5939, %v5940
        %v5942 = vsel %vm5923, %v5601, 0.0
        %v5943 = vadd.f32 %v5941, %v5942
        %v5944 = vsel %vm5923, %v5707, 0.0
        %v5945 = vadd.f32 %v5943, %v5944
        %v5946 = vsel %vm5923, %v5813, 0.0
        %v5947 = vadd.f32 %v5945, %v5946
        %v5948 = vsel %vm5923, %v5919, 0.0
        %v5949 = vadd.f32 %v5947, %v5948
        %v5952 = vrot.slane %v5949, 6
        %v5953 = vsel %vm5923, %v5936, %v5952
        %v5955 = vadd.f32 %v5922, %v5953
        %5956 = vst [vmem:[#allocation6] sm:$0xf] %v5955
        %p5957 = scmp.eq.s32.totalorder %s21, 5
        // Predicated region
        $region69: #{qnetwork_forward.1} parent=43 // pred_check
          %p5958 = pneg %p5957
        $region70: #{qnetwork_forward.1} parent=43 // pred_check_branch
          %5960 = sbr.rel (%p5958) target = $region72
        $region71: #{qnetwork_forward.1} parent=43 // pred_region
          %v5961 = vld [vmem:[#allocation6] sm:$0xf]
          %s5962 = scalar_lea.vmem [#allocation10], 3
          %v5963 = vld [vmem:[%s5962] ss:$8 sm:$0x3]
          %v5965 = vperm.slane %v5963, 0
          %v5966 = vperm.slane %v5963, 1
          %v5967 = vrot.slane %v5966, 6
          %v5968 = vsel %vm5923, %v5965, %v5967
          %v5970 = vadd.f32 %v5961, %v5968
          %v5971 = vmax.f32 %v5970, 0.0
          %5973 = vst [vmem:[#allocation1] ss:$4 sm:$0xff] %v5971
          %v5974 = vld.sshfl [vmem:[#allocation1] sm:$0xff pattern:$0x73625140]
          %v5975 = vld.sshfl [vmem:[#allocation1 + $0x8] sm:$0xff pattern:$0x73625140]
          %v5978 = vpack.c.bf16 %v5974, %v5974
          %v5979 = vpack.c.bf16 %v5975, %v5975
          %v5980 = vld [vmem:[#allocation13] sm:$0xf]
          %v5981 = vld [vmem:[#allocation13 + $0x4] sm:$0xf]
          %v5982 = vld [vmem:[#allocation13 + $0x8] sm:$0xf]
          %v5983 = vld [vmem:[#allocation13 + $0xc] sm:$0xf]
          %v5984 = vld [vmem:[#allocation13 + $0x10] sm:$0xf]
          %v5985 = vld [vmem:[#allocation13 + $0x14] sm:$0xf]
          %v5986 = vld [vmem:[#allocation13 + $0x18] sm:$0xf]
          %v5987 = vld [vmem:[#allocation13 + $0x1c] sm:$0xf]
          %v5988 = vld [vmem:[#allocation13 + $0x20] sm:$0xf]
          %v5989 = vld [vmem:[#allocation13 + $0x24] sm:$0xf]
          %v5990 = vld [vmem:[#allocation13 + $0x28] sm:$0xf]
          %v5991 = vld [vmem:[#allocation13 + $0x2c] sm:$0xf]
          %v5992 = vld [vmem:[#allocation13 + $0x30] sm:$0xf]
          %v5993 = vld [vmem:[#allocation13 + $0x34] sm:$0xf]
          %v5994 = vld [vmem:[#allocation13 + $0x38] sm:$0xf]
          %v5995 = vld [vmem:[#allocation13 + $0x3c] sm:$0xf]
          %v5996 = vld [vmem:[#allocation13 + $0x40] sm:$0xf]
          %v5997 = vld [vmem:[#allocation13 + $0x44] sm:$0xf]
          %v5998 = vld [vmem:[#allocation13 + $0x48] sm:$0xf]
          %v5999 = vld [vmem:[#allocation13 + $0x4c] sm:$0xf]
          %v6000 = vld [vmem:[#allocation13 + $0x50] sm:$0xf]
          %v6001 = vld [vmem:[#allocation13 + $0x54] sm:$0xf]
          %v6002 = vld [vmem:[#allocation13 + $0x58] sm:$0xf]
          %v6003 = vld [vmem:[#allocation13 + $0x5c] sm:$0xf]
          %v6004 = vld [vmem:[#allocation13 + $0x60] sm:$0xf]
          %v6005 = vld [vmem:[#allocation13 + $0x64] sm:$0xf]
          %v6006 = vld [vmem:[#allocation13 + $0x68] sm:$0xf]
          %v6007 = vld [vmem:[#allocation13 + $0x6c] sm:$0xf]
          %v6008 = vld [vmem:[#allocation13 + $0x70] sm:$0xf]
          %v6009 = vld [vmem:[#allocation13 + $0x74] sm:$0xf]
          %v6010 = vld [vmem:[#allocation13 + $0x78] sm:$0xf]
          %v6011 = vld [vmem:[#allocation13 + $0x7c] sm:$0xf]
          %v6012 = vld [vmem:[#allocation10 + $0x4] ss:$0 sm:$0xff]
          %v6045 = vunpack.c.l.b16 %v5980
          %v6046 = vunpack.c.l.b16 %v5981
          %v6047 = vunpack.c.l.b16 %v5982
          %v6048 = vunpack.c.l.b16 %v5983
          %v6049 = vunpack.c.l.b16 %v5984
          %v6050 = vunpack.c.l.b16 %v5985
          %v6051 = vunpack.c.l.b16 %v5986
          %v6052 = vunpack.c.l.b16 %v5987
          %v6053 = vunpack.c.l.b16 %v5988
          %v6054 = vunpack.c.l.b16 %v5989
          %v6055 = vunpack.c.l.b16 %v5990
          %v6056 = vunpack.c.l.b16 %v5991
          %v6057 = vunpack.c.l.b16 %v5992
          %v6058 = vunpack.c.l.b16 %v5993
          %v6059 = vunpack.c.l.b16 %v5994
          %v6060 = vunpack.c.l.b16 %v5995
          %v6061 = vunpack.c.l.b16 %v5996
          %v6062 = vunpack.c.l.b16 %v5997
          %v6063 = vunpack.c.l.b16 %v5998
          %v6064 = vunpack.c.l.b16 %v5999
          %v6065 = vunpack.c.l.b16 %v6000
          %v6066 = vunpack.c.l.b16 %v6001
          %v6067 = vunpack.c.l.b16 %v6002
          %v6068 = vunpack.c.l.b16 %v6003
          %v6069 = vunpack.c.l.b16 %v6004
          %v6070 = vunpack.c.l.b16 %v6005
          %v6071 = vunpack.c.l.b16 %v6006
          %v6072 = vunpack.c.l.b16 %v6007
          %v6073 = vunpack.c.l.b16 %v6008
          %v6074 = vunpack.c.l.b16 %v6009
          %v6075 = vunpack.c.l.b16 %v6010
          %v6076 = vunpack.c.l.b16 %v6011
          %v6077 = vpack.c.b16 %v6046, %v6045
          %v6078 = vpack.c.b16 %v6048, %v6047
          %v6079 = vpack.c.b16 %v6050, %v6049
          %v6080 = vpack.c.b16 %v6052, %v6051
          %v6081 = vpack.c.b16 %v6054, %v6053
          %v6082 = vpack.c.b16 %v6056, %v6055
          %v6083 = vpack.c.b16 %v6058, %v6057
          %v6084 = vpack.c.b16 %v6060, %v6059
          %v6085 = vpack.c.b16 %v6062, %v6061
          %v6086 = vpack.c.b16 %v6064, %v6063
          %v6087 = vpack.c.b16 %v6066, %v6065
          %v6088 = vpack.c.b16 %v6068, %v6067
          %v6089 = vpack.c.b16 %v6070, %v6069
          %v6090 = vpack.c.b16 %v6072, %v6071
          %v6091 = vpack.c.b16 %v6074, %v6073
          %v6092 = vpack.c.b16 %v6076, %v6075
          %6109 = vmatpush.bf16.msra.mxu0 %v6084
          %6110 = vmatpush.bf16.msra.mxu0 %v6083
          %6111 = vmatpush.bf16.msra.mxu0 %v6082
          %6112 = vmatpush.bf16.msra.mxu0 %v6081
          %6113 = vmatpush.bf16.msra.mxu0 %v6080
          %6114 = vmatpush.bf16.msra.mxu0 %v6079
          %6115 = vmatpush.bf16.msra.mxu0 %v6078
          %6116 = vmatpush.bf16.msra.mxu0 %v6077
          %6117 = vmatmul.bf16.gmra.mxu0 %v5978
          %v6118 = vpop.f32.mrf.mxu0
          %v6119 = vadd.f32 %v6012, %v6118
          %v6120 = vpop.f32.mrf.mxu0
          %6121 = vdwg.mxu0
          %6122 = vmatpush.bf16.msra.mxu0 %v6092
          %6123 = vmatpush.bf16.msra.mxu0 %v6091
          %6124 = vmatpush.bf16.msra.mxu0 %v6090
          %6125 = vmatpush.bf16.msra.mxu0 %v6089
          %6126 = vmatpush.bf16.msra.mxu0 %v6088
          %6127 = vmatpush.bf16.msra.mxu0 %v6087
          %6128 = vmatpush.bf16.msra.mxu0 %v6086
          %6129 = vmatpush.bf16.msra.mxu0 %v6085
          %6130 = vmatmul.bf16.gmra.mxu0 %v5979
          %v6131 = vpop.f32.mrf.mxu0
          %v6132 = vadd.f32 %v6119, %v6131
          %v6133 = vpop.f32.mrf.mxu0
          %6134 = vdwg.mxu0
          %v6135 = vmax.f32 %v6132, 0.0
          %v6136 = vpack.c.bf16 %v6135, %v6135
          %v6137 = vld [vmem:[#allocation14] sm:$0xf]
          %v6138 = vld [vmem:[#allocation14 + $0x4] sm:$0xf]
          %v6139 = vld [vmem:[#allocation14 + $0x8] sm:$0xf]
          %v6140 = vld [vmem:[#allocation14 + $0xc] sm:$0xf]
          %v6141 = vld [vmem:[#allocation14 + $0x10] sm:$0xf]
          %v6142 = vld [vmem:[#allocation14 + $0x14] sm:$0xf]
          %v6143 = vld [vmem:[#allocation14 + $0x18] sm:$0xf]
          %v6144 = vld [vmem:[#allocation14 + $0x1c] sm:$0xf]
          %v6145 = vld [vmem:[#allocation14 + $0x20] sm:$0xf]
          %v6146 = vld [vmem:[#allocation14 + $0x24] sm:$0xf]
          %v6147 = vld [vmem:[#allocation14 + $0x28] sm:$0xf]
          %v6148 = vld [vmem:[#allocation14 + $0x2c] sm:$0xf]
          %v6149 = vld [vmem:[#allocation14 + $0x30] sm:$0xf]
          %v6150 = vld [vmem:[#allocation14 + $0x34] sm:$0xf]
          %v6151 = vld [vmem:[#allocation14 + $0x38] sm:$0xf]
          %v6152 = vld [vmem:[#allocation14 + $0x3c] sm:$0xf]
          %v6153 = vld [vmem:[#allocation10 + $0x5] ss:$0 sm:$0xff]
          %v6170 = vunpack.c.l.b16 %v6137
          %v6171 = vunpack.c.l.b16 %v6138
          %v6172 = vunpack.c.l.b16 %v6139
          %v6173 = vunpack.c.l.b16 %v6140
          %v6174 = vunpack.c.l.b16 %v6141
          %v6175 = vunpack.c.l.b16 %v6142
          %v6176 = vunpack.c.l.b16 %v6143
          %v6177 = vunpack.c.l.b16 %v6144
          %v6178 = vunpack.c.l.b16 %v6145
          %v6179 = vunpack.c.l.b16 %v6146
          %v6180 = vunpack.c.l.b16 %v6147
          %v6181 = vunpack.c.l.b16 %v6148
          %v6182 = vunpack.c.l.b16 %v6149
          %v6183 = vunpack.c.l.b16 %v6150
          %v6184 = vunpack.c.l.b16 %v6151
          %v6185 = vunpack.c.l.b16 %v6152
          %v6186 = vpack.c.b16 %v6171, %v6170
          %v6187 = vpack.c.b16 %v6173, %v6172
          %v6188 = vpack.c.b16 %v6175, %v6174
          %v6189 = vpack.c.b16 %v6177, %v6176
          %v6190 = vpack.c.b16 %v6179, %v6178
          %v6191 = vpack.c.b16 %v6181, %v6180
          %v6192 = vpack.c.b16 %v6183, %v6182
          %v6193 = vpack.c.b16 %v6185, %v6184
          %6202 = vmatpush.bf16.msra.mxu0 %v6193
          %6203 = vmatpush.bf16.msra.mxu0 %v6192
          %6204 = vmatpush.bf16.msra.mxu0 %v6191
          %6205 = vmatpush.bf16.msra.mxu0 %v6190
          %6206 = vmatpush.bf16.msra.mxu0 %v6189
          %6207 = vmatpush.bf16.msra.mxu0 %v6188
          %6208 = vmatpush.bf16.msra.mxu0 %v6187
          %6209 = vmatpush.bf16.msra.mxu0 %v6186
          %6210 = vmatmul.bf16.gmra.mxu0 %v6136
          %v6211 = vpop.f32.mrf.mxu0
          %v6212 = vadd.f32 %v6153, %v6211
          %v6213 = vpop.f32.mrf.mxu0
          %6214 = vdwg.mxu0
          %6215 = vst [vmem:[#allocation16] sm:$0x3] %v6212
        $region72: #{qnetwork_forward.1} parent=43 // pred_fallthru
          _
        // Predicated region
        $region73: #{qnetwork_forward.1} parent=43 // pred_check
          %p6216 = pneg %p165
        $region74: #{qnetwork_forward.1} parent=43 // pred_check_branch
          %6218 = sbr.rel (%p6216) target = $region76
        $region75: #{qnetwork_forward.1} parent=43 // pred_region
          %6220 = vsyncadd [#allocation9], 0
          %s6222 = sshll.u32 [#allocation16], 4
          %s6223 = int_to_ptr.vmem [resolvable:$true] %s6222
          %s6224 = sshll.u32 %s6, 4
          %s6225 = int_to_ptr.hbm [resolvable:$true] %s6224
          %6227 = dma.vmem_to_hbm [thread:$0]  %s6223, 32, %s6225, [#allocation9]
        $region76: #{qnetwork_forward.1} parent=43 // pred_fallthru
          _
        // Predicated region
        $region77: #{qnetwork_forward.1} parent=43 // pred_check
          %p6228 = pneg %p165
        $region78: #{qnetwork_forward.1} parent=43 // pred_check_branch
          %6230 = sbr.rel (%p6228) target = $region80
        $region79: #{qnetwork_forward.1} parent=43 // pred_region
          %6232 = dma.done [#allocation9], 32
        $region80: #{qnetwork_forward.1} parent=43 // pred_fallthru
          _
      $region44: #{qnetwork_forward.1} parent=5 // pred_fallthru
        _
      %p6233 = scmp.le.s32.totalorder 2, %s16
      // Predicated region
      $region81: #{qnetwork_forward.1} parent=5 // pred_check
        %p6234 = pneg %p6233
      $region82: #{qnetwork_forward.1} parent=5 // pred_check_branch
        %6236 = sbr.rel (%p6234) target = $region84
      $region83: #{qnetwork_forward.1} parent=5 // pred_region
        %s6237 = ssub.s32 %s16, 2
      $region84: #{qnetwork_forward.1} parent=5 // pred_fallthru
        _
    $region6: #{qnetwork_forward.1} parent=1 // loop_footer
      %s20 = sadd.s32 1, %s16
    $region7: #{qnetwork_forward.1} parent=1 // loop_footer_branch
      %15 = sbr.rel target = $region3
    $region8: #{qnetwork_forward.1} parent=1 // loop_exit
      _
    %6238 = vsyncpa [#allocation8], 1
    %s6239 = scalar_lea.sflag [#allocation8], 1
    %6240 = vsyncpa %s6239, 1
    %6241 = vsyncpa [#allocation11], 1
    %6242 = vsyncpa [#allocation15], 1
    %6243 = vsyncpa [#allocation9], 1
    %s6244 = scalar_lea.sflag [#allocation9], 1
    %6245 = vsyncpa %s6244, 1

</llo_original>
